<compile_context>
chip_gen: v5e
topology: v5e:2x2
jax: 0.10.0
libtpu: 0.0.40
codegen_flags: <defaults>
</compile_context>

<pallas_src>
import math
import jax
import jax.numpy as jnp
from jax import lax
from jax.experimental import pallas as pl
from jax.experimental.pallas import tpu as pltpu

# ----------------------- small synthetic config ------------------------------
BATCH = 2
IN_CH = 3
IMG = 32
PATCH = 4
N_H = IMG // PATCH              # 8
N_W = IMG // PATCH              # 8
SEQ = N_H * N_W                 # 64 tokens
HIDDEN = 32                     # hidden_dim
MLP = 64                        # mlp dim
HEADS = 4
HEAD_DIM = HIDDEN // HEADS      # 8
FMAP_CH = 16                    # fmap_ch
NUM_LAYERS = 12
LN_EPS = 1e-6
TAP_START = 7                   # encoder_7 .. encoder_11 feed the head
NUM_TAPS = NUM_LAYERS - TAP_START
K0 = IN_CH * PATCH * PATCH      # 48  patch-embedding contraction size
K3 = 9 * FMAP_CH                # 144 im2col contraction size
ATT_SCALE = 1.0 / math.sqrt(HEAD_DIM)
GELU_C = math.sqrt(2.0 / math.pi)


# ------------------------------ helpers ---------------------------------------
def _ln(x, g, b):
    mu = jnp.mean(x, axis=-1, keepdims=True)
    var = jnp.mean(jnp.square(x - mu), axis=-1, keepdims=True)
    return (x - mu) * lax.rsqrt(var + LN_EPS) * g + b


def _gelu_tanh(x):
    # tanh-approximate GELU (runs on the EUP; torchvision uses exact erf GELU,
    # difference is ~1e-3 relative — adopted per perf review).
    return 0.5 * x * (1.0 + jnp.tanh(GELU_C * (x + 0.044715 * x * x * x)))


# ------------------------------ Pallas kernels --------------------------------
def _trunk_kernel(patch_ref, wproj_ref, bproj_ref,
                  ln1g_ref, ln1b_ref, wqkv_ref, bqkv_ref,
                  wo_ref, bo_ref, ln2g_ref, ln2b_ref,
                  w1_ref, b1_ref, w2_ref, b2_ref,
                  lnfg_ref, lnfb_ref, hw_ref, hb_ref,
                  taps_ref, x_sc):
    """Grid step (b, l) == one torchvision EncoderBlock on batch element b.

    The activation (SEQ, HIDDEN) stays resident in VMEM scratch across the
    layer axis. Layer 0 performs the conv_proj patch-embedding matmul; layers
    7..10 also write their 1x1-projected tap (stage_p{7..10}_1), layer 11
    writes stage_out_1(LN(encoder_11)).
    """
    l = pl.program_id(1)

    @pl.when(l == 0)
    def _():
        x_sc[...] = (jnp.dot(patch_ref[0].astype(jnp.bfloat16), wproj_ref[...],
                             preferred_element_type=jnp.float32)
                     + bproj_ref[...])

    x = x_sc[...]                                            # (SEQ, D) f32

    # ---------------- x + MHA(LN1(x)) : per-batch 64x64 attention -------------
    xn = _ln(x, ln1g_ref[l], ln1b_ref[l])
    qkv = (jnp.dot(xn.astype(jnp.bfloat16), wqkv_ref[l],
                   preferred_element_type=jnp.float32) + bqkv_ref[l])   # (SEQ, 3D)

    acc = x + bo_ref[l]                                      # residual + out-proj bias
    for h in range(HEADS):
        q = qkv[:, h * HEAD_DIM:(h + 1) * HEAD_DIM]          # scale folded into Wq/bq
        k = qkv[:, HIDDEN + h * HEAD_DIM: HIDDEN + (h + 1) * HEAD_DIM]
        v = qkv[:, 2 * HIDDEN + h * HEAD_DIM: 2 * HIDDEN + (h + 1) * HEAD_DIM]
        # q @ k^T without materializing a transpose (contract last dims).
        s = lax.dot_general(q.astype(jnp.bfloat16), k.astype(jnp.bfloat16),
                            (((1,), (1,)), ((), ())),
                            preferred_element_type=jnp.float32)          # (SEQ, SEQ)
        s = s - jnp.max(s, axis=-1, keepdims=True)
        p = jnp.exp(s)
        p = p * pl.reciprocal(jnp.sum(p, axis=-1, keepdims=True), approx=True)
        hv = jnp.dot(p.astype(jnp.bfloat16), v.astype(jnp.bfloat16),
                     preferred_element_type=jnp.float32)                 # (SEQ, HD)
        # per-head output projection; avoids lane-concatenating the heads.
        acc = acc + jnp.dot(hv.astype(jnp.bfloat16), wo_ref[l * HEADS + h],
                            preferred_element_type=jnp.float32)
    x1 = acc

    # ---------------- x1 + MLP(LN2(x1)) ----------------
    y = _ln(x1, ln2g_ref[l], ln2b_ref[l])
    hdn = (jnp.dot(y.astype(jnp.bfloat16), w1_ref[l],
                   preferred_element_type=jnp.float32) + b1_ref[l])
    hdn = _gelu_tanh(hdn)
    mlp = (jnp.dot(hdn.astype(jnp.bfloat16), w2_ref[l],
                   preferred_element_type=jnp.float32) + b2_ref[l])
    out = x1 + mlp                                           # (SEQ, D)

    x_sc[...] = out

    # ---------------- fused 1x1 FPN tap projections ----------------
    @pl.when(jnp.logical_and(l >= TAP_START, l < NUM_LAYERS - 1))
    def _():
        t = l - TAP_START                                    # 0..3 -> stage_p{7..10}_1
        taps_ref[0, 0] = (jnp.dot(out.astype(jnp.bfloat16), hw_ref[t],
                                  preferred_element_type=jnp.float32) + hb_ref[t])

    @pl.when(l == NUM_LAYERS - 1)
    def _():
        xf = _ln(out, lnfg_ref[...], lnfb_ref[...])          # encoder.ln
        taps_ref[0, 0] = (jnp.dot(xf.astype(jnp.bfloat16), hw_ref[NUM_TAPS - 1],
                                  preferred_element_type=jnp.float32)
                          + hb_ref[NUM_TAPS - 1])            # stage_out_1
    # TODO(synk): EncoderBlock Dropout layers are identity in eval mode.


def _head_kernel(cols7_ref, cols8_ref, cols9_ref, c10w_ref, cout_ref,
                 w7_ref, b7_ref, w8_ref, b8_ref, w9_ref, b9_ref,
                 p7_ref, p8_ref, p9_ref, c10_ref, out_ref):
    """Three 3x3 convs (im2col matmuls, K=144) + all three max-pools in one call.

    Row orderings (prepared by glue):
      cols7/cols8 : (b, y, x)                       -> unpooled outputs
      cols9/c10w  : (window_idx, b, y0, x0)         -> pool == max over leading
                                                       contiguous row slabs
      cout        : (b, token)                      -> pool(k=8) == per-batch max
    """
    def c3(cref, w, b):
        return (jnp.dot(cref[...].astype(jnp.bfloat16), w[...],
                        preferred_element_type=jnp.float32) + b[...])

    p7_ref[...] = c3(cols7_ref, w7_ref, b7_ref)              # stage_p7_2
    p8_ref[...] = c3(cols8_ref, w8_ref, b8_ref)              # stage_p8_2

    # stage_p9_2 followed by stage_p9_pool (k=2): 4 slabs of 32 rows.
    p9 = c3(cols9_ref, w9_ref, b9_ref)                       # (128, FMAP_CH)
    rows9 = BATCH * (N_H // 2) * (N_W // 2)                  # 32
    m9 = p9[0:rows9]
    for i in range(1, 4):
        m9 = jnp.maximum(m9, p9[i * rows9:(i + 1) * rows9])
    p9_ref[...] = m9

    # stage_p10_pool (k=4): 16 slabs of 8 rows.
    c10 = c10w_ref[...]
    rows10 = BATCH * (N_H // 4) * (N_W // 4)                 # 8
    m10 = c10[0:rows10]
    for i in range(1, 16):
        m10 = jnp.maximum(m10, c10[i * rows10:(i + 1) * rows10])
    c10_ref[...] = m10

    # stage_out_pool (k=8 == full map): per-batch max over the 64 tokens.
    co = cout_ref[...]
    for b in range(BATCH):
        out_ref[b:b + 1, :] = jnp.max(co[b * SEQ:(b + 1) * SEQ], axis=0,
                                      keepdims=True)


# ------------------------------ wrappers ---------------------------------------
def encoder_trunk(patches, p):
    full2 = lambda b, l: (0, 0)
    full3 = lambda b, l: (0, 0, 0)
    in_specs = [
        pl.BlockSpec((1, SEQ, K0), lambda b, l: (b, 0, 0)),          # patches (per batch)
        pl.BlockSpec((K0, HIDDEN), full2),                           # conv_proj W
        pl.BlockSpec((1, HIDDEN), full2),                            # conv_proj b
        pl.BlockSpec((NUM_LAYERS, 1, HIDDEN), full3),                # ln1 gamma (resident)
        pl.BlockSpec((NUM_LAYERS, 1, HIDDEN), full3),                # ln1 beta
        pl.BlockSpec((NUM_LAYERS, HIDDEN, 3 * HIDDEN), full3),       # Wqkv (resident)
        pl.BlockSpec((NUM_LAYERS, 1, 3 * HIDDEN), full3),            # bqkv
        pl.BlockSpec((NUM_LAYERS * HEADS, HEAD_DIM, HIDDEN), full3), # Wo per head
        pl.BlockSpec((NUM_LAYERS, 1, HIDDEN), full3),                # bo
        pl.BlockSpec((NUM_LAYERS, 1, HIDDEN), full3),                # ln2 gamma
        pl.BlockSpec((NUM_LAYERS, 1, HIDDEN), full3),                # ln2 beta
        pl.BlockSpec((NUM_LAYERS, HIDDEN, MLP), full3),              # W1
        pl.BlockSpec((NUM_LAYERS, 1, MLP), full3),                   # b1
        pl.BlockSpec((NUM_LAYERS, MLP, HIDDEN), full3),              # W2
        pl.BlockSpec((NUM_LAYERS, 1, HIDDEN), full3),                # b2
        pl.BlockSpec((1, HIDDEN), full2),                            # encoder.ln gamma
        pl.BlockSpec((1, HIDDEN), full2),                            # encoder.ln beta
        pl.BlockSpec((NUM_TAPS, HIDDEN, FMAP_CH), full3),            # fused 1x1 tap W
        pl.BlockSpec((NUM_TAPS, 1, FMAP_CH), full3),                 # fused 1x1 tap b
    ]
    # Tap slot t holds the 1x1-projected output of layer TAP_START+t; slot 4
    # holds stage_out_1(LN(encoder_11)).  Slot 0 commits when l reaches 8.
    out_spec = pl.BlockSpec(
        (1, 1, SEQ, FMAP_CH),
        lambda b, l: (jnp.maximum(l - TAP_START, 0), b, 0, 0))
    return pl.pallas_call(
        _trunk_kernel,
        out_shape=jax.ShapeDtypeStruct((NUM_TAPS, BATCH, SEQ, FMAP_CH), jnp.float32),
        grid=(BATCH, NUM_LAYERS),
        in_specs=in_specs,
        out_specs=out_spec,
        scratch_shapes=[pltpu.VMEM((SEQ, HIDDEN), jnp.float32)],
        compiler_params=pltpu.CompilerParams(
            dimension_semantics=("parallel", "arbitrary")),
    )(patches, p['wproj'], p['bproj'],
      p['ln1g'], p['ln1b'], p['wqkv'], p['bqkv'], p['wo'], p['bo'],
      p['ln2g'], p['ln2b'], p['w1'], p['b1'], p['w2'], p['b2'],
      p['lnfg'], p['lnfb'], p['hw'], p['hb'])


def fpn_head(cols7, cols8, cols9, c10w, cout_tok, p):
    nrow = BATCH * SEQ
    return pl.pallas_call(
        _head_kernel,
        out_shape=(jax.ShapeDtypeStruct((nrow, FMAP_CH), jnp.float32),        # p7
                   jax.ShapeDtypeStruct((nrow, FMAP_CH), jnp.float32),        # p8
                   jax.ShapeDtypeStruct((nrow // 4, FMAP_CH), jnp.float32),   # p9 pooled
                   jax.ShapeDtypeStruct((BATCH * 4, FMAP_CH), jnp.float32),   # e10 pooled
                   jax.ShapeDtypeStruct((BATCH, FMAP_CH), jnp.float32)),      # out pooled
    )(cols7, cols8, cols9, c10w, cout_tok,
      p['p7_2'][0], p['p7_2'][1], p['p8_2'][0], p['p8_2'][1],
      p['p9_2'][0], p['p9_2'][1])


# ------------------------------ layout glue (plain JAX) -------------------------
def _im2col3x3_map(x):
    """NHWC (N,H,W,C) -> (N,H,W,9C) im2col feature map; cols ordered (dy,dx,c)."""
    n, h, w, c = x.shape
    xp = jnp.pad(x, ((0, 0), (1, 1), (1, 1), (0, 0)))
    cols = [xp[:, dy:dy + h, dx:dx + w, :] for dy in range(3) for dx in range(3)]
    return jnp.concatenate(cols, axis=-1)


def _window_major(x, k):
    """NHWC (N,H,W,C) -> rows ordered (window_idx, b, y0, x0): (k*k*N*Ho*Wo, C).

    With this ordering a k x k max-pool is a max over k*k leading contiguous
    row slabs inside the head kernel (no in-kernel gathers/transposes).
    """
    n, h, w, c = x.shape
    ho, wo = h // k, w // k   # pools divide exactly here, so ceil_mode is a no-op
    return (x.reshape(n, ho, k, wo, k, c)
             .transpose(2, 4, 0, 1, 3, 5)
             .reshape(k * k * n * ho * wo, c))


# ------------------------------ parameters -------------------------------------
def init_params(key):
    keys = iter(jax.random.split(key, 128))

    def nrm(shape, scale=0.02):
        return scale * jax.random.normal(next(keys), shape, jnp.float32)

    p = {}
    # conv_proj: Conv2d(IN_CH, HIDDEN, kernel=PATCH, stride=PATCH)
    wproj = nrm((HIDDEN, IN_CH, PATCH, PATCH))
    p['wproj'] = wproj.reshape(HIDDEN, K0).T.astype(jnp.bfloat16)      # (K0, D)
    p['bproj'] = nrm((1, HIDDEN))

    ln1g, ln1b, wqkv, bqkv, wo, bo = [], [], [], [], [], []
    ln2g, ln2b, w1, b1, w2, b2 = [], [], [], [], [], []
    for _ in range(NUM_LAYERS):
        in_w = nrm((3 * HIDDEN, HIDDEN))          # torch MHA in_proj_weight
        in_b = nrm((3 * HIDDEN,))
        out_w = nrm((HIDDEN, HIDDEN))
        m1 = nrm((MLP, HIDDEN))
        m2 = nrm((HIDDEN, MLP))

        wq = in_w.T                               # (D, 3D) == [Wq | Wk | Wv] cols
        bq = in_b
        # fold 1/sqrt(head_dim) into the Q weight/bias columns (compile-time).
        wq = wq.at[:, :HIDDEN].multiply(ATT_SCALE)
        bq = bq.at[:HIDDEN].multiply(ATT_SCALE)

        ln1g.append(jnp.ones((1, HIDDEN), jnp.float32))
        ln1b.append(jnp.zeros((1, HIDDEN), jnp.float32))
        wqkv.append(wq)
        bqkv.append(bq.reshape(1, 3 * HIDDEN))
        # per-head out-proj slices: ctx[:, h*HD:(h+1)*HD] @ out_w.T[h*HD:(h+1)*HD, :]
        wo.append(out_w.T.reshape(HEADS, HEAD_DIM, HIDDEN))
        bo.append(nrm((1, HIDDEN)))
        ln2g.append(jnp.ones((1, HIDDEN), jnp.float32))
        ln2b.append(jnp.zeros((1, HIDDEN), jnp.float32))
        w1.append(m1.T)
        b1.append(nrm((1, MLP)))
        w2.append(m2.T)
        b2.append(nrm((1, HIDDEN)))

    def stack(xs, dt=jnp.float32):
        return jnp.stack(xs).astype(dt)

    p['ln1g'], p['ln1b'] = stack(ln1g), stack(ln1b)
    p['wqkv'], p['bqkv'] = stack(wqkv, jnp.bfloat16), stack(bqkv)
    p['wo'] = stack(wo, jnp.bfloat16).reshape(NUM_LAYERS * HEADS, HEAD_DIM, HIDDEN)
    p['bo'] = stack(bo)
    p['ln2g'], p['ln2b'] = stack(ln2g), stack(ln2b)
    p['w1'], p['b1'] = stack(w1, jnp.bfloat16), stack(b1)
    p['w2'], p['b2'] = stack(w2, jnp.bfloat16), stack(b2)
    p['lnfg'] = jnp.ones((1, HIDDEN), jnp.float32)             # encoder.ln
    p['lnfb'] = jnp.zeros((1, HIDDEN), jnp.float32)

    def conv1x1_p(cin, cout):
        wc = nrm((cout, cin, 1, 1))
        return wc[:, :, 0, 0].T, nrm((1, cout))

    def conv3x3_p(cin, cout):
        wc = nrm((cout, cin, 3, 3))
        # row order (ky, kx, cin) matches the im2col column order.
        return (wc.transpose(2, 3, 1, 0).reshape(9 * cin, cout).astype(jnp.bfloat16),
                nrm((1, cout)))

    # fused 1x1 tap projections in trunk: [p7_1, p8_1, p9_1, p10_1, out_1]
    hws, hbs = [], []
    for _ in range(NUM_TAPS):
        w, b = conv1x1_p(HIDDEN, FMAP_CH)
        hws.append(w)
        hbs.append(b)
    p['hw'] = jnp.stack(hws).astype(jnp.bfloat16)              # (5, HIDDEN, FMAP_CH)
    p['hb'] = jnp.stack(hbs)                                   # (5, 1, FMAP_CH)

    p['p9_2'] = conv3x3_p(FMAP_CH, FMAP_CH)
    p['p8_2'] = conv3x3_p(FMAP_CH, FMAP_CH)
    p['p7_2'] = conv3x3_p(FMAP_CH, FMAP_CH)
    return p


# ------------------------------ forward ----------------------------------------
def vit_b16_forward(image_nchw, params, num_level=5):
    assert num_level > 0, "'num_level' must be larger than zero"
    n = image_nchw.shape[0]

    # _process_input: conv_proj (stride=kernel=patch) == patch extract + matmul.
    patches = (image_nchw.reshape(n, IN_CH, N_H, PATCH, N_W, PATCH)
               .transpose(0, 2, 4, 1, 3, 5)
               .reshape(n, SEQ, K0))

    # Fused trunk with in-kernel 1x1 tap projections:
    # taps = [p7_1(e7), p8_1(e8), p9_1(e9), p10_1(e10), out_1(LN(e11))]
    taps = encoder_trunk(patches, params)                    # (5, N, SEQ, FMAP_CH)
    c7, c8, c9, c10, cout = (taps[i] for i in range(NUM_TAPS))

    # FPN residual chain of the projected taps (tiny adds, layout glue).
    _p9 = c9
    _p8 = c8 + _p9
    _p7 = c7 + _p8

    to_nhwc = lambda t: t.reshape(n, N_H, N_W, FMAP_CH)
    cols7 = _im2col3x3_map(to_nhwc(_p7)).reshape(n * SEQ, K3)
    cols8 = _im2col3x3_map(to_nhwc(_p8)).reshape(n * SEQ, K3)
    cols9 = _window_major(_im2col3x3_map(to_nhwc(_p9)), 2)   # pool-friendly rows
    c10w = _window_major(to_nhwc(c10), 4)
    cout_tok = cout.reshape(n * SEQ, FMAP_CH)

    # Single fused head kernel: three 3x3 convs + three max-pools.
    p7f, p8f, p9p, c10p, outp = fpn_head(cols7, cols8, cols9, c10w, cout_tok, params)

    p7 = p7f.reshape(n, N_H, N_W, FMAP_CH)
    p7 = jnp.repeat(jnp.repeat(p7, 2, axis=1), 2, axis=2)    # stage_p7_up nearest x2
    p8 = p8f.reshape(n, N_H, N_W, FMAP_CH)
    # stage_p9_up / stage_p8_up are Upsample(scale_factor=1) -> identity (no-op).
    p9 = p9p.reshape(n, N_H // 2, N_W // 2, FMAP_CH)
    e10 = c10p.reshape(n, N_H // 4, N_W // 4, FMAP_CH)
    out = outp.reshape(n, N_H // 8, N_W // 8, FMAP_CH)

    zoo = [p7, p8, p9, e10, out][:num_level]
    # return NCHW to match the PyTorch module's output layout
    return [z.transpose(0, 3, 1, 2) for z in zoo]


# ------------------------------ main --------------------------------------------
if __name__ == "__main__":
    key = jax.random.PRNGKey(0)
    k_img, k_par = jax.random.split(key)
    image = jax.random.normal(k_img, (BATCH, IN_CH, IMG, IMG), jnp.float32)
    params = init_params(k_par)

    fwd = jax.jit(lambda img, prm: vit_b16_forward(img, prm, num_level=5))
    outputs = fwd(image, params)
    outputs = jax.block_until_ready(outputs)
    # expected NCHW shapes: (2,16,16,16), (2,16,8,8), (2,16,4,4), (2,16,2,2), (2,16,1,1)
    print("KERNEL_OK")
</pallas_src>

<mosaic_0001>
module attributes {stable_mosaic.version = 11 : i64} {
  func.func @_trunk_kernel(%arg0: i32, %arg1: i32, %arg2: memref<1x64x48xf32, #tpu.memory_space<vmem>>, %arg3: memref<48x32xbf16, #tpu.memory_space<vmem>>, %arg4: memref<1x32xf32, #tpu.memory_space<vmem>>, %arg5: memref<12x1x32xf32, #tpu.memory_space<vmem>>, %arg6: memref<12x1x32xf32, #tpu.memory_space<vmem>>, %arg7: memref<12x32x96xbf16, #tpu.memory_space<vmem>>, %arg8: memref<12x1x96xf32, #tpu.memory_space<vmem>>, %arg9: memref<48x8x32xbf16, #tpu.memory_space<vmem>>, %arg10: memref<12x1x32xf32, #tpu.memory_space<vmem>>, %arg11: memref<12x1x32xf32, #tpu.memory_space<vmem>>, %arg12: memref<12x1x32xf32, #tpu.memory_space<vmem>>, %arg13: memref<12x32x64xbf16, #tpu.memory_space<vmem>>, %arg14: memref<12x1x64xf32, #tpu.memory_space<vmem>>, %arg15: memref<12x64x32xbf16, #tpu.memory_space<vmem>>, %arg16: memref<12x1x32xf32, #tpu.memory_space<vmem>>, %arg17: memref<1x32xf32, #tpu.memory_space<vmem>>, %arg18: memref<1x32xf32, #tpu.memory_space<vmem>>, %arg19: memref<5x32x16xbf16, #tpu.memory_space<vmem>>, %arg20: memref<5x1x16xf32, #tpu.memory_space<vmem>>, %arg21: memref<1x1x64x16xf32, #tpu.memory_space<vmem>>, %arg22: memref<64x32xf32, #tpu.memory_space<vmem>>) attributes {dimension_semantics = [#tpu.dimension_semantics<parallel>, #tpu.dimension_semantics<arbitrary>], iteration_bounds = array<i64: 2, 12>, scalar_prefetch = 0 : i64, scratch_operands = 1 : i64, tpu.core_type = #tpu.core_type<tc>, window_params = [{transform_indices = @transform_0, window_bounds = array<i64: 1, 64, 48>}, {pipeline_mode = #tpu.pipeline_mode<synchronous>, transform_indices = @transform_1, window_bounds = array<i64: 48, 32>}, {pipeline_mode = #tpu.pipeline_mode<synchronous>, transform_indices = @transform_2, window_bounds = array<i64: 1, 32>}, {pipeline_mode = #tpu.pipeline_mode<synchronous>, transform_indices = @transform_3, window_bounds = array<i64: 12, 1, 32>}, {pipeline_mode = #tpu.pipeline_mode<synchronous>, transform_indices = @transform_4, window_bounds = array<i64: 12, 1, 32>}, {pipeline_mode = #tpu.pipeline_mode<synchronous>, transform_indices = @transform_5, window_bounds = array<i64: 12, 32, 96>}, {pipeline_mode = #tpu.pipeline_mode<synchronous>, transform_indices = @transform_6, window_bounds = array<i64: 12, 1, 96>}, {pipeline_mode = #tpu.pipeline_mode<synchronous>, transform_indices = @transform_7, window_bounds = array<i64: 48, 8, 32>}, {pipeline_mode = #tpu.pipeline_mode<synchronous>, transform_indices = @transform_8, window_bounds = array<i64: 12, 1, 32>}, {pipeline_mode = #tpu.pipeline_mode<synchronous>, transform_indices = @transform_9, window_bounds = array<i64: 12, 1, 32>}, {pipeline_mode = #tpu.pipeline_mode<synchronous>, transform_indices = @transform_10, window_bounds = array<i64: 12, 1, 32>}, {pipeline_mode = #tpu.pipeline_mode<synchronous>, transform_indices = @transform_11, window_bounds = array<i64: 12, 32, 64>}, {pipeline_mode = #tpu.pipeline_mode<synchronous>, transform_indices = @transform_12, window_bounds = array<i64: 12, 1, 64>}, {pipeline_mode = #tpu.pipeline_mode<synchronous>, transform_indices = @transform_13, window_bounds = array<i64: 12, 64, 32>}, {pipeline_mode = #tpu.pipeline_mode<synchronous>, transform_indices = @transform_14, window_bounds = array<i64: 12, 1, 32>}, {pipeline_mode = #tpu.pipeline_mode<synchronous>, transform_indices = @transform_15, window_bounds = array<i64: 1, 32>}, {pipeline_mode = #tpu.pipeline_mode<synchronous>, transform_indices = @transform_16, window_bounds = array<i64: 1, 32>}, {pipeline_mode = #tpu.pipeline_mode<synchronous>, transform_indices = @transform_17, window_bounds = array<i64: 5, 32, 16>}, {pipeline_mode = #tpu.pipeline_mode<synchronous>, transform_indices = @transform_18, window_bounds = array<i64: 5, 1, 16>}, {transform_indices = @transform_19, window_bounds = array<i64: 1, 1, 64, 16>}]} {
    %c0_i32 = arith.constant 0 : i32
    %0 = arith.cmpi eq, %arg1, %c0_i32 : i32
    %1 = arith.extui %0 : i1 to i32
    %c0_i32_0 = arith.constant 0 : i32
    %2 = arith.cmpi ne, %1, %c0_i32_0 : i32
    scf.if %2 {
      %c0_77 = arith.constant 0 : index
      %c0_78 = arith.constant 0 : index
      %c0_79 = arith.constant 0 : index
      %226 = vector.load %arg2[%c0_77, %c0_78, %c0_79] : memref<1x64x48xf32, #tpu.memory_space<vmem>>, vector<1x64x48xf32>
      %227 = vector.shape_cast %226 : vector<1x64x48xf32> to vector<64x48xf32>
      %228 = arith.truncf %227 : vector<64x48xf32> to vector<64x48xbf16>
      %c0_80 = arith.constant 0 : index
      %c0_81 = arith.constant 0 : index
      %229 = vector.load %arg3[%c0_80, %c0_81] : memref<48x32xbf16, #tpu.memory_space<vmem>>, vector<48x32xbf16>
      %cst_82 = arith.constant dense<0.000000e+00> : vector<64x32xf32>
      %230 = tpu.matmul %228, %229, %cst_82 {dimension_numbers = #tpu.dot_dimension_numbers<[1], [0], [0], [1], [0, 0, 1, 1], [], []>} : vector<64x48xbf16>, vector<48x32xbf16>, vector<64x32xf32> -> vector<64x32xf32>
      %c0_83 = arith.constant 0 : index
      %c0_84 = arith.constant 0 : index
      %231 = vector.load %arg4[%c0_83, %c0_84] : memref<1x32xf32, #tpu.memory_space<vmem>>, vector<1x32xf32>
      %232 = vector.broadcast %231 : vector<1x32xf32> to vector<64x32xf32>
      %233 = arith.addf %230, %232 : vector<64x32xf32>
      %c0_85 = arith.constant 0 : index
      %c0_86 = arith.constant 0 : index
      %234 = vector.load %arg22[%c0_85, %c0_86] : memref<64x32xf32, #tpu.memory_space<vmem>>, vector<64x32xf32>
      tpu.vector_store %arg22[%c0_85, %c0_86], %233 {strides = array<i32>} : memref<64x32xf32, #tpu.memory_space<vmem>>, vector<64x32xf32>,
    } else {
    }
    %c0 = arith.constant 0 : index
    %c0_1 = arith.constant 0 : index
    %3 = vector.load %arg22[%c0, %c0_1] : memref<64x32xf32, #tpu.memory_space<vmem>>, vector<64x32xf32>
    %4 = arith.index_cast %arg1 : i32 to index
    %c0_2 = arith.constant 0 : index
    %c0_3 = arith.constant 0 : index
    %5 = vector.load %arg5[%4, %c0_2, %c0_3] : memref<12x1x32xf32, #tpu.memory_space<vmem>>, vector<1x1x32xf32>
    %6 = vector.shape_cast %5 : vector<1x1x32xf32> to vector<1x32xf32>
    %7 = arith.index_cast %arg1 : i32 to index
    %c0_4 = arith.constant 0 : index
    %c0_5 = arith.constant 0 : index
    %8 = vector.load %arg6[%7, %c0_4, %c0_5] : memref<12x1x32xf32, #tpu.memory_space<vmem>>, vector<1x1x32xf32>
    %9 = vector.shape_cast %8 : vector<1x1x32xf32> to vector<1x32xf32>
    %cst = arith.constant dense<0.000000e+00> : vector<64xf32>
    %10 = vector.multi_reduction <add>, %3, %cst [1] : vector<64x32xf32> to vector<64xf32>
    %11 = vector.shape_cast %10 : vector<64xf32> to vector<64x1xf32>
    %cst_6 = arith.constant 3.200000e+01 : f32
    %12 = vector.broadcast %cst_6 : f32 to vector<64x1xf32>
    %13 = arith.divf %11, %12 : vector<64x1xf32>
    %14 = vector.broadcast %13 : vector<64x1xf32> to vector<64x32xf32>
    %15 = arith.subf %3, %14 : vector<64x32xf32>
    %16 = arith.mulf %15, %15 : vector<64x32xf32>
    %cst_7 = arith.constant dense<0.000000e+00> : vector<64xf32>
    %17 = vector.multi_reduction <add>, %16, %cst_7 [1] : vector<64x32xf32> to vector<64xf32>
    %18 = vector.shape_cast %17 : vector<64xf32> to vector<64x1xf32>
    %cst_8 = arith.constant 3.200000e+01 : f32
    %19 = vector.broadcast %cst_8 : f32 to vector<64x1xf32>
    %20 = arith.divf %18, %19 : vector<64x1xf32>
    %21 = vector.broadcast %13 : vector<64x1xf32> to vector<64x32xf32>
    %22 = arith.subf %3, %21 : vector<64x32xf32>
    %cst_9 = arith.constant 9.99999997E-7 : f32
    %23 = vector.broadcast %cst_9 : f32 to vector<64x1xf32>
    %24 = arith.addf %20, %23 : vector<64x1xf32>
    %25 = math.rsqrt %24 : vector<64x1xf32>
    %26 = vector.broadcast %25 : vector<64x1xf32> to vector<64x32xf32>
    %27 = arith.mulf %22, %26 : vector<64x32xf32>
    %28 = vector.broadcast %6 : vector<1x32xf32> to vector<64x32xf32>
    %29 = arith.mulf %27, %28 : vector<64x32xf32>
    %30 = vector.broadcast %9 : vector<1x32xf32> to vector<64x32xf32>
    %31 = arith.addf %29, %30 : vector<64x32xf32>
    %32 = arith.truncf %31 : vector<64x32xf32> to vector<64x32xbf16>
    %33 = arith.index_cast %arg1 : i32 to index
    %c0_10 = arith.constant 0 : index
    %c0_11 = arith.constant 0 : index
    %34 = vector.load %arg7[%33, %c0_10, %c0_11] : memref<12x32x96xbf16, #tpu.memory_space<vmem>>, vector<1x32x96xbf16>
    %35 = vector.shape_cast %34 : vector<1x32x96xbf16> to vector<32x96xbf16>
    %cst_12 = arith.constant dense<0.000000e+00> : vector<64x96xf32>
    %36 = tpu.matmul %32, %35, %cst_12 {dimension_numbers = #tpu.dot_dimension_numbers<[1], [0], [0], [1], [0, 0, 1, 1], [], []>} : vector<64x32xbf16>, vector<32x96xbf16>, vector<64x96xf32> -> vector<64x96xf32>
    %37 = arith.index_cast %arg1 : i32 to index
    %c0_13 = arith.constant 0 : index
    %c0_14 = arith.constant 0 : index
    %38 = vector.load %arg8[%37, %c0_13, %c0_14] : memref<12x1x96xf32, #tpu.memory_space<vmem>>, vector<1x1x96xf32>
    %39 = vector.shape_cast %38 : vector<1x1x96xf32> to vector<1x96xf32>
    %40 = vector.broadcast %39 : vector<1x96xf32> to vector<64x96xf32>
    %41 = arith.addf %36, %40 : vector<64x96xf32>
    %42 = arith.index_cast %arg1 : i32 to index
    %c0_15 = arith.constant 0 : index
    %c0_16 = arith.constant 0 : index
    %43 = vector.load %arg10[%42, %c0_15, %c0_16] : memref<12x1x32xf32, #tpu.memory_space<vmem>>, vector<1x1x32xf32>
    %44 = vector.shape_cast %43 : vector<1x1x32xf32> to vector<1x32xf32>
    %45 = vector.broadcast %44 : vector<1x32xf32> to vector<64x32xf32>
    %46 = arith.addf %3, %45 : vector<64x32xf32>
    %47 = vector.extract_strided_slice %41 {offsets = [0, 0], sizes = [64, 8], strides = [1, 1]} : vector<64x96xf32> to vector<64x8xf32>
    %48 = vector.extract_strided_slice %41 {offsets = [0, 32], sizes = [64, 8], strides = [1, 1]} : vector<64x96xf32> to vector<64x8xf32>
    %49 = vector.extract_strided_slice %41 {offsets = [0, 64], sizes = [64, 8], strides = [1, 1]} : vector<64x96xf32> to vector<64x8xf32>
    %50 = arith.truncf %47 : vector<64x8xf32> to vector<64x8xbf16>
    %51 = arith.truncf %48 : vector<64x8xf32> to vector<64x8xbf16>
    %cst_17 = arith.constant dense<0.000000e+00> : vector<64x64xf32>
    %52 = tpu.matmul %50, %51, %cst_17 {dimension_numbers = #tpu.dot_dimension_numbers<[1], [1], [0], [0], [0, 0, 1, 0], [], []>} : vector<64x8xbf16>, vector<64x8xbf16>, vector<64x64xf32> -> vector<64x64xf32>
    %cst_18 = arith.constant dense<0xFF800000> : vector<64xf32>
    %53 = vector.multi_reduction <maximumf>, %52, %cst_18 [1] : vector<64x64xf32> to vector<64xf32>
    %54 = vector.shape_cast %53 : vector<64xf32> to vector<64x1xf32>
    %55 = vector.broadcast %54 : vector<64x1xf32> to vector<64x64xf32>
    %56 = arith.subf %52, %55 : vector<64x64xf32>
    %57 = math.exp %56 : vector<64x64xf32>
    %cst_19 = arith.constant dense<0.000000e+00> : vector<64xf32>
    %58 = vector.multi_reduction <add>, %57, %cst_19 [1] : vector<64x64xf32> to vector<64xf32>
    %59 = vector.shape_cast %58 : vector<64xf32> to vector<64x1xf32>
    %60 = tpu.reciprocal %59 {approx = true} : vector<64x1xf32> -> vector<64x1xf32>
    %61 = vector.broadcast %60 : vector<64x1xf32> to vector<64x64xf32>
    %62 = arith.mulf %57, %61 : vector<64x64xf32>
    %63 = arith.truncf %62 : vector<64x64xf32> to vector<64x64xbf16>
    %64 = arith.truncf %49 : vector<64x8xf32> to vector<64x8xbf16>
    %cst_20 = arith.constant dense<0.000000e+00> : vector<64x8xf32>
    %65 = tpu.matmul %63, %64, %cst_20 {dimension_numbers = #tpu.dot_dimension_numbers<[1], [0], [0], [1], [0, 0, 1, 1], [], []>} : vector<64x64xbf16>, vector<64x8xbf16>, vector<64x8xf32> -> vector<64x8xf32>
    %66 = arith.truncf %65 : vector<64x8xf32> to vector<64x8xbf16>
    %c4_i32 = arith.constant 4 : i32
    %67 = arith.muli %arg1, %c4_i32 : i32
    %c0_i32_21 = arith.constant 0 : i32
    %68 = arith.addi %67, %c0_i32_21 : i32
    %69 = arith.index_cast %68 : i32 to index
    %c0_22 = arith.constant 0 : index
    %c0_23 = arith.constant 0 : index
    %70 = vector.load %arg9[%69, %c0_22, %c0_23] : memref<48x8x32xbf16, #tpu.memory_space<vmem>>, vector<1x8x32xbf16>
    %71 = vector.shape_cast %70 : vector<1x8x32xbf16> to vector<8x32xbf16>
    %cst_24 = arith.constant dense<0.000000e+00> : vector<64x32xf32>
    %72 = tpu.matmul %66, %71, %cst_24 {dimension_numbers = #tpu.dot_dimension_numbers<[1], [0], [0], [1], [0, 0, 1, 1], [], []>} : vector<64x8xbf16>, vector<8x32xbf16>, vector<64x32xf32> -> vector<64x32xf32>
    %73 = arith.addf %46, %72 : vector<64x32xf32>
    %74 = vector.extract_strided_slice %41 {offsets = [0, 8], sizes = [64, 8], strides = [1, 1]} : vector<64x96xf32> to vector<64x8xf32>
    %75 = vector.extract_strided_slice %41 {offsets = [0, 40], sizes = [64, 8], strides = [1, 1]} : vector<64x96xf32> to vector<64x8xf32>
    %76 = vector.extract_strided_slice %41 {offsets = [0, 72], sizes = [64, 8], strides = [1, 1]} : vector<64x96xf32> to vector<64x8xf32>
    %77 = arith.truncf %74 : vector<64x8xf32> to vector<64x8xbf16>
    %78 = arith.truncf %75 : vector<64x8xf32> to vector<64x8xbf16>
    %cst_25 = arith.constant dense<0.000000e+00> : vector<64x64xf32>
    %79 = tpu.matmul %77, %78, %cst_25 {dimension_numbers = #tpu.dot_dimension_numbers<[1], [1], [0], [0], [0, 0, 1, 0], [], []>} : vector<64x8xbf16>, vector<64x8xbf16>, vector<64x64xf32> -> vector<64x64xf32>
    %cst_26 = arith.constant dense<0xFF800000> : vector<64xf32>
    %80 = vector.multi_reduction <maximumf>, %79, %cst_26 [1] : vector<64x64xf32> to vector<64xf32>
    %81 = vector.shape_cast %80 : vector<64xf32> to vector<64x1xf32>
    %82 = vector.broadcast %81 : vector<64x1xf32> to vector<64x64xf32>
    %83 = arith.subf %79, %82 : vector<64x64xf32>
    %84 = math.exp %83 : vector<64x64xf32>
    %cst_27 = arith.constant dense<0.000000e+00> : vector<64xf32>
    %85 = vector.multi_reduction <add>, %84, %cst_27 [1] : vector<64x64xf32> to vector<64xf32>
    %86 = vector.shape_cast %85 : vector<64xf32> to vector<64x1xf32>
    %87 = tpu.reciprocal %86 {approx = true} : vector<64x1xf32> -> vector<64x1xf32>
    %88 = vector.broadcast %87 : vector<64x1xf32> to vector<64x64xf32>
    %89 = arith.mulf %84, %88 : vector<64x64xf32>
    %90 = arith.truncf %89 : vector<64x64xf32> to vector<64x64xbf16>
    %91 = arith.truncf %76 : vector<64x8xf32> to vector<64x8xbf16>
    %cst_28 = arith.constant dense<0.000000e+00> : vector<64x8xf32>
    %92 = tpu.matmul %90, %91, %cst_28 {dimension_numbers = #tpu.dot_dimension_numbers<[1], [0], [0], [1], [0, 0, 1, 1], [], []>} : vector<64x64xbf16>, vector<64x8xbf16>, vector<64x8xf32> -> vector<64x8xf32>
    %93 = arith.truncf %92 : vector<64x8xf32> to vector<64x8xbf16>
    %c4_i32_29 = arith.constant 4 : i32
    %94 = arith.muli %arg1, %c4_i32_29 : i32
    %c1_i32 = arith.constant 1 : i32
    %95 = arith.addi %94, %c1_i32 : i32
    %96 = arith.index_cast %95 : i32 to index
    %c0_30 = arith.constant 0 : index
    %c0_31 = arith.constant 0 : index
    %97 = vector.load %arg9[%96, %c0_30, %c0_31] : memref<48x8x32xbf16, #tpu.memory_space<vmem>>, vector<1x8x32xbf16>
    %98 = vector.shape_cast %97 : vector<1x8x32xbf16> to vector<8x32xbf16>
    %cst_32 = arith.constant dense<0.000000e+00> : vector<64x32xf32>
    %99 = tpu.matmul %93, %98, %cst_32 {dimension_numbers = #tpu.dot_dimension_numbers<[1], [0], [0], [1], [0, 0, 1, 1], [], []>} : vector<64x8xbf16>, vector<8x32xbf16>, vector<64x32xf32> -> vector<64x32xf32>
    %100 = arith.addf %73, %99 : vector<64x32xf32>
    %101 = vector.extract_strided_slice %41 {offsets = [0, 16], sizes = [64, 8], strides = [1, 1]} : vector<64x96xf32> to vector<64x8xf32>
    %102 = vector.extract_strided_slice %41 {offsets = [0, 48], sizes = [64, 8], strides = [1, 1]} : vector<64x96xf32> to vector<64x8xf32>
    %103 = vector.extract_strided_slice %41 {offsets = [0, 80], sizes = [64, 8], strides = [1, 1]} : vector<64x96xf32> to vector<64x8xf32>
    %104 = arith.truncf %101 : vector<64x8xf32> to vector<64x8xbf16>
    %105 = arith.truncf %102 : vector<64x8xf32> to vector<64x8xbf16>
    %cst_33 = arith.constant dense<0.000000e+00> : vector<64x64xf32>
    %106 = tpu.matmul %104, %105, %cst_33 {dimension_numbers = #tpu.dot_dimension_numbers<[1], [1], [0], [0], [0, 0, 1, 0], [], []>} : vector<64x8xbf16>, vector<64x8xbf16>, vector<64x64xf32> -> vector<64x64xf32>
    %cst_34 = arith.constant dense<0xFF800000> : vector<64xf32>
    %107 = vector.multi_reduction <maximumf>, %106, %cst_34 [1] : vector<64x64xf32> to vector<64xf32>
    %108 = vector.shape_cast %107 : vector<64xf32> to vector<64x1xf32>
    %109 = vector.broadcast %108 : vector<64x1xf32> to vector<64x64xf32>
    %110 = arith.subf %106, %109 : vector<64x64xf32>
    %111 = math.exp %110 : vector<64x64xf32>
    %cst_35 = arith.constant dense<0.000000e+00> : vector<64xf32>
    %112 = vector.multi_reduction <add>, %111, %cst_35 [1] : vector<64x64xf32> to vector<64xf32>
    %113 = vector.shape_cast %112 : vector<64xf32> to vector<64x1xf32>
    %114 = tpu.reciprocal %113 {approx = true} : vector<64x1xf32> -> vector<64x1xf32>
    %115 = vector.broadcast %114 : vector<64x1xf32> to vector<64x64xf32>
    %116 = arith.mulf %111, %115 : vector<64x64xf32>
    %117 = arith.truncf %116 : vector<64x64xf32> to vector<64x64xbf16>
    %118 = arith.truncf %103 : vector<64x8xf32> to vector<64x8xbf16>
    %cst_36 = arith.constant dense<0.000000e+00> : vector<64x8xf32>
    %119 = tpu.matmul %117, %118, %cst_36 {dimension_numbers = #tpu.dot_dimension_numbers<[1], [0], [0], [1], [0, 0, 1, 1], [], []>} : vector<64x64xbf16>, vector<64x8xbf16>, vector<64x8xf32> -> vector<64x8xf32>
    %120 = arith.truncf %119 : vector<64x8xf32> to vector<64x8xbf16>
    %c4_i32_37 = arith.constant 4 : i32
    %121 = arith.muli %arg1, %c4_i32_37 : i32
    %c2_i32 = arith.constant 2 : i32
    %122 = arith.addi %121, %c2_i32 : i32
    %123 = arith.index_cast %122 : i32 to index
    %c0_38 = arith.constant 0 : index
    %c0_39 = arith.constant 0 : index
    %124 = vector.load %arg9[%123, %c0_38, %c0_39] : memref<48x8x32xbf16, #tpu.memory_space<vmem>>, vector<1x8x32xbf16>
    %125 = vector.shape_cast %124 : vector<1x8x32xbf16> to vector<8x32xbf16>
    %cst_40 = arith.constant dense<0.000000e+00> : vector<64x32xf32>
    %126 = tpu.matmul %120, %125, %cst_40 {dimension_numbers = #tpu.dot_dimension_numbers<[1], [0], [0], [1], [0, 0, 1, 1], [], []>} : vector<64x8xbf16>, vector<8x32xbf16>, vector<64x32xf32> -> vector<64x32xf32>
    %127 = arith.addf %100, %126 : vector<64x32xf32>
    %128 = vector.extract_strided_slice %41 {offsets = [0, 24], sizes = [64, 8], strides = [1, 1]} : vector<64x96xf32> to vector<64x8xf32>
    %129 = vector.extract_strided_slice %41 {offsets = [0, 56], sizes = [64, 8], strides = [1, 1]} : vector<64x96xf32> to vector<64x8xf32>
    %130 = vector.extract_strided_slice %41 {offsets = [0, 88], sizes = [64, 8], strides = [1, 1]} : vector<64x96xf32> to vector<64x8xf32>
    %131 = arith.truncf %128 : vector<64x8xf32> to vector<64x8xbf16>
    %132 = arith.truncf %129 : vector<64x8xf32> to vector<64x8xbf16>
    %cst_41 = arith.constant dense<0.000000e+00> : vector<64x64xf32>
    %133 = tpu.matmul %131, %132, %cst_41 {dimension_numbers = #tpu.dot_dimension_numbers<[1], [1], [0], [0], [0, 0, 1, 0], [], []>} : vector<64x8xbf16>, vector<64x8xbf16>, vector<64x64xf32> -> vector<64x64xf32>
    %cst_42 = arith.constant dense<0xFF800000> : vector<64xf32>
    %134 = vector.multi_reduction <maximumf>, %133, %cst_42 [1] : vector<64x64xf32> to vector<64xf32>
    %135 = vector.shape_cast %134 : vector<64xf32> to vector<64x1xf32>
    %136 = vector.broadcast %135 : vector<64x1xf32> to vector<64x64xf32>
    %137 = arith.subf %133, %136 : vector<64x64xf32>
    %138 = math.exp %137 : vector<64x64xf32>
    %cst_43 = arith.constant dense<0.000000e+00> : vector<64xf32>
    %139 = vector.multi_reduction <add>, %138, %cst_43 [1] : vector<64x64xf32> to vector<64xf32>
    %140 = vector.shape_cast %139 : vector<64xf32> to vector<64x1xf32>
    %141 = tpu.reciprocal %140 {approx = true} : vector<64x1xf32> -> vector<64x1xf32>
    %142 = vector.broadcast %141 : vector<64x1xf32> to vector<64x64xf32>
    %143 = arith.mulf %138, %142 : vector<64x64xf32>
    %144 = arith.truncf %143 : vector<64x64xf32> to vector<64x64xbf16>
    %145 = arith.truncf %130 : vector<64x8xf32> to vector<64x8xbf16>
    %cst_44 = arith.constant dense<0.000000e+00> : vector<64x8xf32>
    %146 = tpu.matmul %144, %145, %cst_44 {dimension_numbers = #tpu.dot_dimension_numbers<[1], [0], [0], [1], [0, 0, 1, 1], [], []>} : vector<64x64xbf16>, vector<64x8xbf16>, vector<64x8xf32> -> vector<64x8xf32>
    %147 = arith.truncf %146 : vector<64x8xf32> to vector<64x8xbf16>
    %c4_i32_45 = arith.constant 4 : i32
    %148 = arith.muli %arg1, %c4_i32_45 : i32
    %c3_i32 = arith.constant 3 : i32
    %149 = arith.addi %148, %c3_i32 : i32
    %150 = arith.index_cast %149 : i32 to index
    %c0_46 = arith.constant 0 : index
    %c0_47 = arith.constant 0 : index
    %151 = vector.load %arg9[%150, %c0_46, %c0_47] : memref<48x8x32xbf16, #tpu.memory_space<vmem>>, vector<1x8x32xbf16>
    %152 = vector.shape_cast %151 : vector<1x8x32xbf16> to vector<8x32xbf16>
    %cst_48 = arith.constant dense<0.000000e+00> : vector<64x32xf32>
    %153 = tpu.matmul %147, %152, %cst_48 {dimension_numbers = #tpu.dot_dimension_numbers<[1], [0], [0], [1], [0, 0, 1, 1], [], []>} : vector<64x8xbf16>, vector<8x32xbf16>, vector<64x32xf32> -> vector<64x32xf32>
    %154 = arith.addf %127, %153 : vector<64x32xf32>
    %155 = arith.index_cast %arg1 : i32 to index
    %c0_49 = arith.constant 0 : index
    %c0_50 = arith.constant 0 : index
    %156 = vector.load %arg11[%155, %c0_49, %c0_50] : memref<12x1x32xf32, #tpu.memory_space<vmem>>, vector<1x1x32xf32>
    %157 = vector.shape_cast %156 : vector<1x1x32xf32> to vector<1x32xf32>
    %158 = arith.index_cast %arg1 : i32 to index
    %c0_51 = arith.constant 0 : index
    %c0_52 = arith.constant 0 : index
    %159 = vector.load %arg12[%158, %c0_51, %c0_52] : memref<12x1x32xf32, #tpu.memory_space<vmem>>, vector<1x1x32xf32>
    %160 = vector.shape_cast %159 : vector<1x1x32xf32> to vector<1x32xf32>
    %cst_53 = arith.constant dense<0.000000e+00> : vector<64xf32>
    %161 = vector.multi_reduction <add>, %154, %cst_53 [1] : vector<64x32xf32> to vector<64xf32>
    %162 = vector.shape_cast %161 : vector<64xf32> to vector<64x1xf32>
    %cst_54 = arith.constant 3.200000e+01 : f32
    %163 = vector.broadcast %cst_54 : f32 to vector<64x1xf32>
    %164 = arith.divf %162, %163 : vector<64x1xf32>
    %165 = vector.broadcast %164 : vector<64x1xf32> to vector<64x32xf32>
    %166 = arith.subf %154, %165 : vector<64x32xf32>
    %167 = arith.mulf %166, %166 : vector<64x32xf32>
    %cst_55 = arith.constant dense<0.000000e+00> : vector<64xf32>
    %168 = vector.multi_reduction <add>, %167, %cst_55 [1] : vector<64x32xf32> to vector<64xf32>
    %169 = vector.shape_cast %168 : vector<64xf32> to vector<64x1xf32>
    %cst_56 = arith.constant 3.200000e+01 : f32
    %170 = vector.broadcast %cst_56 : f32 to vector<64x1xf32>
    %171 = arith.divf %169, %170 : vector<64x1xf32>
    %172 = vector.broadcast %164 : vector<64x1xf32> to vector<64x32xf32>
    %173 = arith.subf %154, %172 : vector<64x32xf32>
    %cst_57 = arith.constant 9.99999997E-7 : f32
    %174 = vector.broadcast %cst_57 : f32 to vector<64x1xf32>
    %175 = arith.addf %171, %174 : vector<64x1xf32>
    %176 = math.rsqrt %175 : vector<64x1xf32>
    %177 = vector.broadcast %176 : vector<64x1xf32> to vector<64x32xf32>
    %178 = arith.mulf %173, %177 : vector<64x32xf32>
    %179 = vector.broadcast %157 : vector<1x32xf32> to vector<64x32xf32>
    %180 = arith.mulf %178, %179 : vector<64x32xf32>
    %181 = vector.broadcast %160 : vector<1x32xf32> to vector<64x32xf32>
    %182 = arith.addf %180, %181 : vector<64x32xf32>
    %183 = arith.truncf %182 : vector<64x32xf32> to vector<64x32xbf16>
    %184 = arith.index_cast %arg1 : i32 to index
    %c0_58 = arith.constant 0 : index
    %c0_59 = arith.constant 0 : index
    %185 = vector.load %arg13[%184, %c0_58, %c0_59] : memref<12x32x64xbf16, #tpu.memory_space<vmem>>, vector<1x32x64xbf16>
    %186 = vector.shape_cast %185 : vector<1x32x64xbf16> to vector<32x64xbf16>
    %cst_60 = arith.constant dense<0.000000e+00> : vector<64x64xf32>
    %187 = tpu.matmul %183, %186, %cst_60 {dimension_numbers = #tpu.dot_dimension_numbers<[1], [0], [0], [1], [0, 0, 1, 1], [], []>} : vector<64x32xbf16>, vector<32x64xbf16>, vector<64x64xf32> -> vector<64x64xf32>
    %188 = arith.index_cast %arg1 : i32 to index
    %c0_61 = arith.constant 0 : index
    %c0_62 = arith.constant 0 : index
    %189 = vector.load %arg14[%188, %c0_61, %c0_62] : memref<12x1x64xf32, #tpu.memory_space<vmem>>, vector<1x1x64xf32>
    %190 = vector.shape_cast %189 : vector<1x1x64xf32> to vector<1x64xf32>
    %191 = vector.broadcast %190 : vector<1x64xf32> to vector<64x64xf32>
    %192 = arith.addf %187, %191 : vector<64x64xf32>
    %cst_63 = arith.constant 5.000000e-01 : f32
    %193 = vector.broadcast %cst_63 : f32 to vector<64x64xf32>
    %194 = arith.mulf %193, %192 : vector<64x64xf32>
    %cst_64 = arith.constant 4.471500e-02 : f32
    %195 = vector.broadcast %cst_64 : f32 to vector<64x64xf32>
    %196 = arith.mulf %195, %192 : vector<64x64xf32>
    %197 = arith.mulf %196, %192 : vector<64x64xf32>
    %198 = arith.mulf %197, %192 : vector<64x64xf32>
    %199 = arith.addf %192, %198 : vector<64x64xf32>
    %cst_65 = arith.constant 0.797884583 : f32
    %200 = vector.broadcast %cst_65 : f32 to vector<64x64xf32>
    %201 = arith.mulf %200, %199 : vector<64x64xf32>
    %202 = math.tanh %201 : vector<64x64xf32>
    %cst_66 = arith.constant 1.000000e+00 : f32
    %203 = vector.broadcast %cst_66 : f32 to vector<64x64xf32>
    %204 = arith.addf %203, %202 : vector<64x64xf32>
    %205 = arith.mulf %194, %204 : vector<64x64xf32>
    %206 = arith.truncf %205 : vector<64x64xf32> to vector<64x64xbf16>
    %207 = arith.index_cast %arg1 : i32 to index
    %c0_67 = arith.constant 0 : index
    %c0_68 = arith.constant 0 : index
    %208 = vector.load %arg15[%207, %c0_67, %c0_68] : memref<12x64x32xbf16, #tpu.memory_space<vmem>>, vector<1x64x32xbf16>
    %209 = vector.shape_cast %208 : vector<1x64x32xbf16> to vector<64x32xbf16>
    %cst_69 = arith.constant dense<0.000000e+00> : vector<64x32xf32>
    %210 = tpu.matmul %206, %209, %cst_69 {dimension_numbers = #tpu.dot_dimension_numbers<[1], [0], [0], [1], [0, 0, 1, 1], [], []>} : vector<64x64xbf16>, vector<64x32xbf16>, vector<64x32xf32> -> vector<64x32xf32>
    %211 = arith.index_cast %arg1 : i32 to index
    %c0_70 = arith.constant 0 : index
    %c0_71 = arith.constant 0 : index
    %212 = vector.load %arg16[%211, %c0_70, %c0_71] : memref<12x1x32xf32, #tpu.memory_space<vmem>>, vector<1x1x32xf32>
    %213 = vector.shape_cast %212 : vector<1x1x32xf32> to vector<1x32xf32>
    %214 = vector.broadcast %213 : vector<1x32xf32> to vector<64x32xf32>
    %215 = arith.addf %210, %214 : vector<64x32xf32>
    %216 = arith.addf %154, %215 : vector<64x32xf32>
    %c0_72 = arith.constant 0 : index
    %c0_73 = arith.constant 0 : index
    %217 = vector.load %arg22[%c0_72, %c0_73] : memref<64x32xf32, #tpu.memory_space<vmem>>, vector<64x32xf32>
    tpu.vector_store %arg22[%c0_72, %c0_73], %216 {strides = array<i32>} : memref<64x32xf32, #tpu.memory_space<vmem>>, vector<64x32xf32>,
    %c7_i32 = arith.constant 7 : i32
    %218 = arith.cmpi sge, %arg1, %c7_i32 : i32
    %c11_i32 = arith.constant 11 : i32
    %219 = arith.cmpi slt, %arg1, %c11_i32 : i32
    %220 = arith.andi %218, %219 : i1
    %221 = arith.extui %220 : i1 to i32
    %c0_i32_74 = arith.constant 0 : i32
    %222 = arith.cmpi ne, %221, %c0_i32_74 : i32
    scf.if %222 {
      %c7_i32_77 = arith.constant 7 : i32
      %226 = arith.subi %arg1, %c7_i32_77 : i32
      %227 = arith.truncf %216 : vector<64x32xf32> to vector<64x32xbf16>
      %228 = arith.index_cast %226 : i32 to index
      %c0_78 = arith.constant 0 : index
      %c0_79 = arith.constant 0 : index
      %229 = vector.load %arg19[%228, %c0_78, %c0_79] : memref<5x32x16xbf16, #tpu.memory_space<vmem>>, vector<1x32x16xbf16>
      %230 = vector.shape_cast %229 : vector<1x32x16xbf16> to vector<32x16xbf16>
      %cst_80 = arith.constant dense<0.000000e+00> : vector<64x16xf32>
      %231 = tpu.matmul %227, %230, %cst_80 {dimension_numbers = #tpu.dot_dimension_numbers<[1], [0], [0], [1], [0, 0, 1, 1], [], []>} : vector<64x32xbf16>, vector<32x16xbf16>, vector<64x16xf32> -> vector<64x16xf32>
      %232 = arith.index_cast %226 : i32 to index
      %c0_81 = arith.constant 0 : index
      %c0_82 = arith.constant 0 : index
      %233 = vector.load %arg20[%232, %c0_81, %c0_82] : memref<5x1x16xf32, #tpu.memory_space<vmem>>, vector<1x1x16xf32>
      %234 = vector.shape_cast %233 : vector<1x1x16xf32> to vector<1x16xf32>
      %235 = vector.broadcast %234 : vector<1x16xf32> to vector<64x16xf32>
      %236 = arith.addf %231, %235 : vector<64x16xf32>
      %c0_83 = arith.constant 0 : index
      %c0_84 = arith.constant 0 : index
      %c0_85 = arith.constant 0 : index
      %c0_86 = arith.constant 0 : index
      %237 = vector.load %arg21[%c0_83, %c0_84, %c0_85, %c0_86] : memref<1x1x64x16xf32, #tpu.memory_space<vmem>>, vector<1x1x64x16xf32>
      %238 = vector.shape_cast %237 : vector<1x1x64x16xf32> to vector<64x16xf32>
      %239 = vector.shape_cast %236 : vector<64x16xf32> to vector<1x1x64x16xf32>
      tpu.vector_store %arg21[%c0_83, %c0_84, %c0_85, %c0_86], %239 {strides = array<i32>} : memref<1x1x64x16xf32, #tpu.memory_space<vmem>>, vector<1x1x64x16xf32>,
    } else {
    }
    %c11_i32_75 = arith.constant 11 : i32
    %223 = arith.cmpi eq, %arg1, %c11_i32_75 : i32
    %224 = arith.extui %223 : i1 to i32
    %c0_i32_76 = arith.constant 0 : i32
    %225 = arith.cmpi ne, %224, %c0_i32_76 : i32
    scf.if %225 {
      %c0_77 = arith.constant 0 : index
      %c0_78 = arith.constant 0 : index
      %226 = vector.load %arg17[%c0_77, %c0_78] : memref<1x32xf32, #tpu.memory_space<vmem>>, vector<1x32xf32>
      %c0_79 = arith.constant 0 : index
      %c0_80 = arith.constant 0 : index
      %227 = vector.load %arg18[%c0_79, %c0_80] : memref<1x32xf32, #tpu.memory_space<vmem>>, vector<1x32xf32>
      %cst_81 = arith.constant dense<0.000000e+00> : vector<64xf32>
      %228 = vector.multi_reduction <add>, %216, %cst_81 [1] : vector<64x32xf32> to vector<64xf32>
      %229 = vector.shape_cast %228 : vector<64xf32> to vector<64x1xf32>
      %cst_82 = arith.constant 3.200000e+01 : f32
      %230 = vector.broadcast %cst_82 : f32 to vector<64x1xf32>
      %231 = arith.divf %229, %230 : vector<64x1xf32>
      %232 = vector.broadcast %231 : vector<64x1xf32> to vector<64x32xf32>
      %233 = arith.subf %216, %232 : vector<64x32xf32>
      %234 = arith.mulf %233, %233 : vector<64x32xf32>
      %cst_83 = arith.constant dense<0.000000e+00> : vector<64xf32>
      %235 = vector.multi_reduction <add>, %234, %cst_83 [1] : vector<64x32xf32> to vector<64xf32>
      %236 = vector.shape_cast %235 : vector<64xf32> to vector<64x1xf32>
      %cst_84 = arith.constant 3.200000e+01 : f32
      %237 = vector.broadcast %cst_84 : f32 to vector<64x1xf32>
      %238 = arith.divf %236, %237 : vector<64x1xf32>
      %239 = vector.broadcast %231 : vector<64x1xf32> to vector<64x32xf32>
      %240 = arith.subf %216, %239 : vector<64x32xf32>
      %cst_85 = arith.constant 9.99999997E-7 : f32
      %241 = vector.broadcast %cst_85 : f32 to vector<64x1xf32>
      %242 = arith.addf %238, %241 : vector<64x1xf32>
      %243 = math.rsqrt %242 : vector<64x1xf32>
      %244 = vector.broadcast %243 : vector<64x1xf32> to vector<64x32xf32>
      %245 = arith.mulf %240, %244 : vector<64x32xf32>
      %246 = vector.broadcast %226 : vector<1x32xf32> to vector<64x32xf32>
      %247 = arith.mulf %245, %246 : vector<64x32xf32>
      %248 = vector.broadcast %227 : vector<1x32xf32> to vector<64x32xf32>
      %249 = arith.addf %247, %248 : vector<64x32xf32>
      %250 = arith.truncf %249 : vector<64x32xf32> to vector<64x32xbf16>
      %c4 = arith.constant 4 : index
      %c0_86 = arith.constant 0 : index
      %c0_87 = arith.constant 0 : index
      %251 = vector.load %arg19[%c4, %c0_86, %c0_87] : memref<5x32x16xbf16, #tpu.memory_space<vmem>>, vector<1x32x16xbf16>
      %252 = vector.shape_cast %251 : vector<1x32x16xbf16> to vector<32x16xbf16>
      %cst_88 = arith.constant dense<0.000000e+00> : vector<64x16xf32>
      %253 = tpu.matmul %250, %252, %cst_88 {dimension_numbers = #tpu.dot_dimension_numbers<[1], [0], [0], [1], [0, 0, 1, 1], [], []>} : vector<64x32xbf16>, vector<32x16xbf16>, vector<64x16xf32> -> vector<64x16xf32>
      %c4_89 = arith.constant 4 : index
      %c0_90 = arith.constant 0 : index
      %c0_91 = arith.constant 0 : index
      %254 = vector.load %arg20[%c4_89, %c0_90, %c0_91] : memref<5x1x16xf32, #tpu.memory_space<vmem>>, vector<1x1x16xf32>
      %255 = vector.shape_cast %254 : vector<1x1x16xf32> to vector<1x16xf32>
      %256 = vector.broadcast %255 : vector<1x16xf32> to vector<64x16xf32>
      %257 = arith.addf %253, %256 : vector<64x16xf32>
      %c0_92 = arith.constant 0 : index
      %c0_93 = arith.constant 0 : index
      %c0_94 = arith.constant 0 : index
      %c0_95 = arith.constant 0 : index
      %258 = vector.load %arg21[%c0_92, %c0_93, %c0_94, %c0_95] : memref<1x1x64x16xf32, #tpu.memory_space<vmem>>, vector<1x1x64x16xf32>
      %259 = vector.shape_cast %258 : vector<1x1x64x16xf32> to vector<64x16xf32>
      %260 = vector.shape_cast %257 : vector<64x16xf32> to vector<1x1x64x16xf32>
      tpu.vector_store %arg21[%c0_92, %c0_93, %c0_94, %c0_95], %260 {strides = array<i32>} : memref<1x1x64x16xf32, #tpu.memory_space<vmem>>, vector<1x1x64x16xf32>,
    } else {
    }
    return
  }
  func.func @transform_0(%arg0: i32, %arg1: i32) -> (i32, i32, i32) {
    %c0_i32 = arith.constant 0 : i32
    %c0_i32_0 = arith.constant 0 : i32
    %c0_i32_1 = arith.constant 0 : i32
    return %arg0, %c0_i32, %c0_i32_0 : i32, i32, i32
  }
  func.func @transform_1(%arg0: i32, %arg1: i32) -> (i32, i32) {
    %c0_i32 = arith.constant 0 : i32
    %c0_i32_0 = arith.constant 0 : i32
    %c0_i32_1 = arith.constant 0 : i32
    return %c0_i32, %c0_i32_0 : i32, i32
  }
  func.func @transform_2(%arg0: i32, %arg1: i32) -> (i32, i32) {
    %c0_i32 = arith.constant 0 : i32
    %c0_i32_0 = arith.constant 0 : i32
    %c0_i32_1 = arith.constant 0 : i32
    return %c0_i32, %c0_i32_0 : i32, i32
  }
  func.func @transform_3(%arg0: i32, %arg1: i32) -> (i32, i32, i32) {
    %c0_i32 = arith.constant 0 : i32
    %c0_i32_0 = arith.constant 0 : i32
    %c0_i32_1 = arith.constant 0 : i32
    %c0_i32_2 = arith.constant 0 : i32
    return %c0_i32, %c0_i32_0, %c0_i32_1 : i32, i32, i32
  }
  func.func @transform_4(%arg0: i32, %arg1: i32) -> (i32, i32, i32) {
    %c0_i32 = arith.constant 0 : i32
    %c0_i32_0 = arith.constant 0 : i32
    %c0_i32_1 = arith.constant 0 : i32
    %c0_i32_2 = arith.constant 0 : i32
    return %c0_i32, %c0_i32_0, %c0_i32_1 : i32, i32, i32
  }
  func.func @transform_5(%arg0: i32, %arg1: i32) -> (i32, i32, i32) {
    %c0_i32 = arith.constant 0 : i32
    %c0_i32_0 = arith.constant 0 : i32
    %c0_i32_1 = arith.constant 0 : i32
    %c0_i32_2 = arith.constant 0 : i32
    return %c0_i32, %c0_i32_0, %c0_i32_1 : i32, i32, i32
  }
  func.func @transform_6(%arg0: i32, %arg1: i32) -> (i32, i32, i32) {
    %c0_i32 = arith.constant 0 : i32
    %c0_i32_0 = arith.constant 0 : i32
    %c0_i32_1 = arith.constant 0 : i32
    %c0_i32_2 = arith.constant 0 : i32
    return %c0_i32, %c0_i32_0, %c0_i32_1 : i32, i32, i32
  }
  func.func @transform_7(%arg0: i32, %arg1: i32) -> (i32, i32, i32) {
    %c0_i32 = arith.constant 0 : i32
    %c0_i32_0 = arith.constant 0 : i32
    %c0_i32_1 = arith.constant 0 : i32
    %c0_i32_2 = arith.constant 0 : i32
    return %c0_i32, %c0_i32_0, %c0_i32_1 : i32, i32, i32
  }
  func.func @transform_8(%arg0: i32, %arg1: i32) -> (i32, i32, i32) {
    %c0_i32 = arith.constant 0 : i32
    %c0_i32_0 = arith.constant 0 : i32
    %c0_i32_1 = arith.constant 0 : i32
    %c0_i32_2 = arith.constant 0 : i32
    return %c0_i32, %c0_i32_0, %c0_i32_1 : i32, i32, i32
  }
  func.func @transform_9(%arg0: i32, %arg1: i32) -> (i32, i32, i32) {
    %c0_i32 = arith.constant 0 : i32
    %c0_i32_0 = arith.constant 0 : i32
    %c0_i32_1 = arith.constant 0 : i32
    %c0_i32_2 = arith.constant 0 : i32
    return %c0_i32, %c0_i32_0, %c0_i32_1 : i32, i32, i32
  }
  func.func @transform_10(%arg0: i32, %arg1: i32) -> (i32, i32, i32) {
    %c0_i32 = arith.constant 0 : i32
    %c0_i32_0 = arith.constant 0 : i32
    %c0_i32_1 = arith.constant 0 : i32
    %c0_i32_2 = arith.constant 0 : i32
    return %c0_i32, %c0_i32_0, %c0_i32_1 : i32, i32, i32
  }
  func.func @transform_11(%arg0: i32, %arg1: i32) -> (i32, i32, i32) {
    %c0_i32 = arith.constant 0 : i32
    %c0_i32_0 = arith.constant 0 : i32
    %c0_i32_1 = arith.constant 0 : i32
    %c0_i32_2 = arith.constant 0 : i32
    return %c0_i32, %c0_i32_0, %c0_i32_1 : i32, i32, i32
  }
  func.func @transform_12(%arg0: i32, %arg1: i32) -> (i32, i32, i32) {
    %c0_i32 = arith.constant 0 : i32
    %c0_i32_0 = arith.constant 0 : i32
    %c0_i32_1 = arith.constant 0 : i32
    %c0_i32_2 = arith.constant 0 : i32
    return %c0_i32, %c0_i32_0, %c0_i32_1 : i32, i32, i32
  }
  func.func @transform_13(%arg0: i32, %arg1: i32) -> (i32, i32, i32) {
    %c0_i32 = arith.constant 0 : i32
    %c0_i32_0 = arith.constant 0 : i32
    %c0_i32_1 = arith.constant 0 : i32
    %c0_i32_2 = arith.constant 0 : i32
    return %c0_i32, %c0_i32_0, %c0_i32_1 : i32, i32, i32
  }
  func.func @transform_14(%arg0: i32, %arg1: i32) -> (i32, i32, i32) {
    %c0_i32 = arith.constant 0 : i32
    %c0_i32_0 = arith.constant 0 : i32
    %c0_i32_1 = arith.constant 0 : i32
    %c0_i32_2 = arith.constant 0 : i32
    return %c0_i32, %c0_i32_0, %c0_i32_1 : i32, i32, i32
  }
  func.func @transform_15(%arg0: i32, %arg1: i32) -> (i32, i32) {
    %c0_i32 = arith.constant 0 : i32
    %c0_i32_0 = arith.constant 0 : i32
    %c0_i32_1 = arith.constant 0 : i32
    return %c0_i32, %c0_i32_0 : i32, i32
  }
  func.func @transform_16(%arg0: i32, %arg1: i32) -> (i32, i32) {
    %c0_i32 = arith.constant 0 : i32
    %c0_i32_0 = arith.constant 0 : i32
    %c0_i32_1 = arith.constant 0 : i32
    return %c0_i32, %c0_i32_0 : i32, i32
  }
  func.func @transform_17(%arg0: i32, %arg1: i32) -> (i32, i32, i32) {
    %c0_i32 = arith.constant 0 : i32
    %c0_i32_0 = arith.constant 0 : i32
    %c0_i32_1 = arith.constant 0 : i32
    %c0_i32_2 = arith.constant 0 : i32
    return %c0_i32, %c0_i32_0, %c0_i32_1 : i32, i32, i32
  }
  func.func @transform_18(%arg0: i32, %arg1: i32) -> (i32, i32, i32) {
    %c0_i32 = arith.constant 0 : i32
    %c0_i32_0 = arith.constant 0 : i32
    %c0_i32_1 = arith.constant 0 : i32
    %c0_i32_2 = arith.constant 0 : i32
    return %c0_i32, %c0_i32_0, %c0_i32_1 : i32, i32, i32
  }
  func.func @transform_19(%arg0: i32, %arg1: i32) -> (i32, i32, i32, i32) {
    %c7_i32 = arith.constant 7 : i32
    %0 = arith.subi %arg1, %c7_i32 : i32
    %c0_i32 = arith.constant 0 : i32
    %1 = arith.maxsi %0, %c0_i32 : i32
    %c0_i32_0 = arith.constant 0 : i32
    %c0_i32_1 = arith.constant 0 : i32
    %c0_i32_2 = arith.constant 0 : i32
    return %1, %arg0, %c0_i32_0, %c0_i32_1 : i32, i32, i32, i32
  }
}

module attributes {stable_mosaic.version = 11 : i64} {
  func.func @_head_kernel(%arg0: memref<128x144xf32, #tpu.memory_space<vmem>>, %arg1: memref<128x144xf32, #tpu.memory_space<vmem>>, %arg2: memref<128x144xf32, #tpu.memory_space<vmem>>, %arg3: memref<128x16xf32, #tpu.memory_space<vmem>>, %arg4: memref<128x16xf32, #tpu.memory_space<vmem>>, %arg5: memref<144x16xbf16, #tpu.memory_space<vmem>>, %arg6: memref<1x16xf32, #tpu.memory_space<vmem>>, %arg7: memref<144x16xbf16, #tpu.memory_space<vmem>>, %arg8: memref<1x16xf32, #tpu.memory_space<vmem>>, %arg9: memref<144x16xbf16, #tpu.memory_space<vmem>>, %arg10: memref<1x16xf32, #tpu.memory_space<vmem>>, %arg11: memref<128x16xf32, #tpu.memory_space<vmem>>, %arg12: memref<128x16xf32, #tpu.memory_space<vmem>>, %arg13: memref<32x16xf32, #tpu.memory_space<vmem>>, %arg14: memref<8x16xf32, #tpu.memory_space<vmem>>, %arg15: memref<2x16xf32, #tpu.memory_space<vmem>>) attributes {dimension_semantics = [], scalar_prefetch = 0 : i64, scratch_operands = 0 : i64, tpu.core_type = #tpu.core_type<tc>} {
    %c0 = arith.constant 0 : index
    %c0_0 = arith.constant 0 : index
    %0 = vector.load %arg0[%c0, %c0_0] : memref<128x144xf32, #tpu.memory_space<vmem>>, vector<128x144xf32>
    %1 = arith.truncf %0 : vector<128x144xf32> to vector<128x144xbf16>
    %c0_1 = arith.constant 0 : index
    %c0_2 = arith.constant 0 : index
    %2 = vector.load %arg5[%c0_1, %c0_2] : memref<144x16xbf16, #tpu.memory_space<vmem>>, vector<144x16xbf16>
    %cst = arith.constant dense<0.000000e+00> : vector<128x16xf32>
    %3 = tpu.matmul %1, %2, %cst {dimension_numbers = #tpu.dot_dimension_numbers<[1], [0], [0], [1], [0, 0, 1, 1], [], []>} : vector<128x144xbf16>, vector<144x16xbf16>, vector<128x16xf32> -> vector<128x16xf32>
    %c0_3 = arith.constant 0 : index
    %c0_4 = arith.constant 0 : index
    %4 = vector.load %arg6[%c0_3, %c0_4] : memref<1x16xf32, #tpu.memory_space<vmem>>, vector<1x16xf32>
    %5 = vector.broadcast %4 : vector<1x16xf32> to vector<128x16xf32>
    %6 = arith.addf %3, %5 : vector<128x16xf32>
    %c0_5 = arith.constant 0 : index
    %c0_6 = arith.constant 0 : index
    %7 = vector.load %arg11[%c0_5, %c0_6] : memref<128x16xf32, #tpu.memory_space<vmem>>, vector<128x16xf32>
    tpu.vector_store %arg11[%c0_5, %c0_6], %6 {strides = array<i32>} : memref<128x16xf32, #tpu.memory_space<vmem>>, vector<128x16xf32>,
    %c0_7 = arith.constant 0 : index
    %c0_8 = arith.constant 0 : index
    %8 = vector.load %arg1[%c0_7, %c0_8] : memref<128x144xf32, #tpu.memory_space<vmem>>, vector<128x144xf32>
    %9 = arith.truncf %8 : vector<128x144xf32> to vector<128x144xbf16>
    %c0_9 = arith.constant 0 : index
    %c0_10 = arith.constant 0 : index
    %10 = vector.load %arg7[%c0_9, %c0_10] : memref<144x16xbf16, #tpu.memory_space<vmem>>, vector<144x16xbf16>
    %cst_11 = arith.constant dense<0.000000e+00> : vector<128x16xf32>
    %11 = tpu.matmul %9, %10, %cst_11 {dimension_numbers = #tpu.dot_dimension_numbers<[1], [0], [0], [1], [0, 0, 1, 1], [], []>} : vector<128x144xbf16>, vector<144x16xbf16>, vector<128x16xf32> -> vector<128x16xf32>
    %c0_12 = arith.constant 0 : index
    %c0_13 = arith.constant 0 : index
    %12 = vector.load %arg8[%c0_12, %c0_13] : memref<1x16xf32, #tpu.memory_space<vmem>>, vector<1x16xf32>
    %13 = vector.broadcast %12 : vector<1x16xf32> to vector<128x16xf32>
    %14 = arith.addf %11, %13 : vector<128x16xf32>
    %c0_14 = arith.constant 0 : index
    %c0_15 = arith.constant 0 : index
    %15 = vector.load %arg12[%c0_14, %c0_15] : memref<128x16xf32, #tpu.memory_space<vmem>>, vector<128x16xf32>
    tpu.vector_store %arg12[%c0_14, %c0_15], %14 {strides = array<i32>} : memref<128x16xf32, #tpu.memory_space<vmem>>, vector<128x16xf32>,
    %c0_16 = arith.constant 0 : index
    %c0_17 = arith.constant 0 : index
    %16 = vector.load %arg2[%c0_16, %c0_17] : memref<128x144xf32, #tpu.memory_space<vmem>>, vector<128x144xf32>
    %17 = arith.truncf %16 : vector<128x144xf32> to vector<128x144xbf16>
    %c0_18 = arith.constant 0 : index
    %c0_19 = arith.constant 0 : index
    %18 = vector.load %arg9[%c0_18, %c0_19] : memref<144x16xbf16, #tpu.memory_space<vmem>>, vector<144x16xbf16>
    %cst_20 = arith.constant dense<0.000000e+00> : vector<128x16xf32>
    %19 = tpu.matmul %17, %18, %cst_20 {dimension_numbers = #tpu.dot_dimension_numbers<[1], [0], [0], [1], [0, 0, 1, 1], [], []>} : vector<128x144xbf16>, vector<144x16xbf16>, vector<128x16xf32> -> vector<128x16xf32>
    %c0_21 = arith.constant 0 : index
    %c0_22 = arith.constant 0 : index
    %20 = vector.load %arg10[%c0_21, %c0_22] : memref<1x16xf32, #tpu.memory_space<vmem>>, vector<1x16xf32>
    %21 = vector.broadcast %20 : vector<1x16xf32> to vector<128x16xf32>
    %22 = arith.addf %19, %21 : vector<128x16xf32>
    %23 = vector.extract_strided_slice %22 {offsets = [0, 0], sizes = [32, 16], strides = [1, 1]} : vector<128x16xf32> to vector<32x16xf32>
    %24 = vector.extract_strided_slice %22 {offsets = [32, 0], sizes = [32, 16], strides = [1, 1]} : vector<128x16xf32> to vector<32x16xf32>
    %25 = arith.maximumf %23, %24 : vector<32x16xf32>
    %26 = vector.extract_strided_slice %22 {offsets = [64, 0], sizes = [32, 16], strides = [1, 1]} : vector<128x16xf32> to vector<32x16xf32>
    %27 = arith.maximumf %25, %26 : vector<32x16xf32>
    %28 = vector.extract_strided_slice %22 {offsets = [96, 0], sizes = [32, 16], strides = [1, 1]} : vector<128x16xf32> to vector<32x16xf32>
    %29 = arith.maximumf %27, %28 : vector<32x16xf32>
    %c0_23 = arith.constant 0 : index
    %c0_24 = arith.constant 0 : index
    %30 = vector.load %arg13[%c0_23, %c0_24] : memref<32x16xf32, #tpu.memory_space<vmem>>, vector<32x16xf32>
    tpu.vector_store %arg13[%c0_23, %c0_24], %29 {strides = array<i32>} : memref<32x16xf32, #tpu.memory_space<vmem>>, vector<32x16xf32>,
    %c0_25 = arith.constant 0 : index
    %c0_26 = arith.constant 0 : index
    %31 = vector.load %arg3[%c0_25, %c0_26] : memref<128x16xf32, #tpu.memory_space<vmem>>, vector<128x16xf32>
    %32 = vector.extract_strided_slice %31 {offsets = [0, 0], sizes = [8, 16], strides = [1, 1]} : vector<128x16xf32> to vector<8x16xf32>
    %33 = vector.extract_strided_slice %31 {offsets = [8, 0], sizes = [8, 16], strides = [1, 1]} : vector<128x16xf32> to vector<8x16xf32>
    %34 = arith.maximumf %32, %33 : vector<8x16xf32>
    %35 = vector.extract_strided_slice %31 {offsets = [16, 0], sizes = [8, 16], strides = [1, 1]} : vector<128x16xf32> to vector<8x16xf32>
    %36 = arith.maximumf %34, %35 : vector<8x16xf32>
    %37 = vector.extract_strided_slice %31 {offsets = [24, 0], sizes = [8, 16], strides = [1, 1]} : vector<128x16xf32> to vector<8x16xf32>
    %38 = arith.maximumf %36, %37 : vector<8x16xf32>
    %39 = vector.extract_strided_slice %31 {offsets = [32, 0], sizes = [8, 16], strides = [1, 1]} : vector<128x16xf32> to vector<8x16xf32>
    %40 = arith.maximumf %38, %39 : vector<8x16xf32>
    %41 = vector.extract_strided_slice %31 {offsets = [40, 0], sizes = [8, 16], strides = [1, 1]} : vector<128x16xf32> to vector<8x16xf32>
    %42 = arith.maximumf %40, %41 : vector<8x16xf32>
    %43 = vector.extract_strided_slice %31 {offsets = [48, 0], sizes = [8, 16], strides = [1, 1]} : vector<128x16xf32> to vector<8x16xf32>
    %44 = arith.maximumf %42, %43 : vector<8x16xf32>
    %45 = vector.extract_strided_slice %31 {offsets = [56, 0], sizes = [8, 16], strides = [1, 1]} : vector<128x16xf32> to vector<8x16xf32>
    %46 = arith.maximumf %44, %45 : vector<8x16xf32>
    %47 = vector.extract_strided_slice %31 {offsets = [64, 0], sizes = [8, 16], strides = [1, 1]} : vector<128x16xf32> to vector<8x16xf32>
    %48 = arith.maximumf %46, %47 : vector<8x16xf32>
    %49 = vector.extract_strided_slice %31 {offsets = [72, 0], sizes = [8, 16], strides = [1, 1]} : vector<128x16xf32> to vector<8x16xf32>
    %50 = arith.maximumf %48, %49 : vector<8x16xf32>
    %51 = vector.extract_strided_slice %31 {offsets = [80, 0], sizes = [8, 16], strides = [1, 1]} : vector<128x16xf32> to vector<8x16xf32>
    %52 = arith.maximumf %50, %51 : vector<8x16xf32>
    %53 = vector.extract_strided_slice %31 {offsets = [88, 0], sizes = [8, 16], strides = [1, 1]} : vector<128x16xf32> to vector<8x16xf32>
    %54 = arith.maximumf %52, %53 : vector<8x16xf32>
    %55 = vector.extract_strided_slice %31 {offsets = [96, 0], sizes = [8, 16], strides = [1, 1]} : vector<128x16xf32> to vector<8x16xf32>
    %56 = arith.maximumf %54, %55 : vector<8x16xf32>
    %57 = vector.extract_strided_slice %31 {offsets = [104, 0], sizes = [8, 16], strides = [1, 1]} : vector<128x16xf32> to vector<8x16xf32>
    %58 = arith.maximumf %56, %57 : vector<8x16xf32>
    %59 = vector.extract_strided_slice %31 {offsets = [112, 0], sizes = [8, 16], strides = [1, 1]} : vector<128x16xf32> to vector<8x16xf32>
    %60 = arith.maximumf %58, %59 : vector<8x16xf32>
    %61 = vector.extract_strided_slice %31 {offsets = [120, 0], sizes = [8, 16], strides = [1, 1]} : vector<128x16xf32> to vector<8x16xf32>
    %62 = arith.maximumf %60, %61 : vector<8x16xf32>
    %c0_27 = arith.constant 0 : index
    %c0_28 = arith.constant 0 : index
    %63 = vector.load %arg14[%c0_27, %c0_28] : memref<8x16xf32, #tpu.memory_space<vmem>>, vector<8x16xf32>
    tpu.vector_store %arg14[%c0_27, %c0_28], %62 {strides = array<i32>} : memref<8x16xf32, #tpu.memory_space<vmem>>, vector<8x16xf32>,
    %c0_29 = arith.constant 0 : index
    %c0_30 = arith.constant 0 : index
    %64 = vector.load %arg4[%c0_29, %c0_30] : memref<128x16xf32, #tpu.memory_space<vmem>>, vector<128x16xf32>
    %65 = vector.extract_strided_slice %64 {offsets = [0, 0], sizes = [64, 16], strides = [1, 1]} : vector<128x16xf32> to vector<64x16xf32>
    %cst_31 = arith.constant dense<0xFF800000> : vector<16xf32>
    %66 = vector.multi_reduction <maximumf>, %65, %cst_31 [0] : vector<64x16xf32> to vector<16xf32>
    %67 = vector.shape_cast %66 : vector<16xf32> to vector<1x16xf32>
    %c0_32 = arith.constant 0 : index
    %c0_33 = arith.constant 0 : index
    %68 = vector.load %arg15[%c0_32, %c0_33] : memref<2x16xf32, #tpu.memory_space<vmem>>, vector<1x16xf32>
    tpu.vector_store %arg15[%c0_32, %c0_33], %67 {strides = array<i32>} : memref<2x16xf32, #tpu.memory_space<vmem>>, vector<1x16xf32>,
    %69 = vector.extract_strided_slice %64 {offsets = [64, 0], sizes = [64, 16], strides = [1, 1]} : vector<128x16xf32> to vector<64x16xf32>
    %cst_34 = arith.constant dense<0xFF800000> : vector<16xf32>
    %70 = vector.multi_reduction <maximumf>, %69, %cst_34 [0] : vector<64x16xf32> to vector<16xf32>
    %71 = vector.shape_cast %70 : vector<16xf32> to vector<1x16xf32>
    %c1 = arith.constant 1 : index
    %c0_35 = arith.constant 0 : index
    %72 = vector.load %arg15[%c1, %c0_35] : memref<2x16xf32, #tpu.memory_space<vmem>>, vector<1x16xf32>
    tpu.vector_store %arg15[%c1, %c0_35], %71 {strides = array<i32>} : memref<2x16xf32, #tpu.memory_space<vmem>>, vector<1x16xf32>,
    return
  }
}

</mosaic_0001>

<llo_original>
// kernel: _lambda_.3
$region0: #{_lambda_.3}
  #allocation0 [shape = 'u32[]', space=smem, size = 0x4, offset = 0x4, fixed_abs, tag = 'smem constant byte address 0x4 - core index']
  #allocation1 [shape = 'u32[72,128]{1,0:T(1,128)}', space=vmem, size = 0x9000, scoped, tag = 'internal scratch']
  %s0 = inlined_call_operand.vmem [shape: f32[128,144], index: 0, kind: input, shape index: {}]
  %s1 = inlined_call_operand.vmem [shape: f32[128,144], index: 1, kind: input, shape index: {}]
  %s2 = inlined_call_operand.vmem [shape: f32[128,144], index: 2, kind: input, shape index: {}]
  %s3 = inlined_call_operand.vmem [shape: f32[128,16], index: 3, kind: input, shape index: {}]
  %s4 = inlined_call_operand.vmem [shape: f32[128,16], index: 4, kind: input, shape index: {}]
  %s5 = inlined_call_operand.vmem [shape: bf16[144,16], index: 5, kind: input, shape index: {}]
  %s6 = inlined_call_operand.vmem [shape: f32[1,16], index: 6, kind: input, shape index: {}]
  %s7 = inlined_call_operand.vmem [shape: bf16[144,16], index: 7, kind: input, shape index: {}]
  %s8 = inlined_call_operand.vmem [shape: f32[1,16], index: 8, kind: input, shape index: {}]
  %s9 = inlined_call_operand.vmem [shape: bf16[144,16], index: 9, kind: input, shape index: {}]
  %s10 = inlined_call_operand.vmem [shape: f32[1,16], index: 10, kind: input, shape index: {}]
  %s11 = inlined_call_operand.vmem [shape: f32[128,16], index: 11, kind: output, shape index: {0}]
  %s12 = inlined_call_operand.hbm [shape: f32[128,16], index: 12, kind: output, shape index: {1}]
  %s13 = inlined_call_operand.hbm [shape: f32[32,16], index: 13, kind: output, shape index: {2}]
  %s14 = inlined_call_operand.hbm [shape: f32[8,16], index: 14, kind: output, shape index: {3}]
  %s15 = inlined_call_operand.hbm [shape: f32[2,16], index: 15, kind: output, shape index: {4}]
  %16 = xla_tuple %s11, %s12, %s13, %s14, %s15
  %s17 = sld [smem:[#allocation0]]
  $region86: #{_lambda_.3} parent=0
    _
  %s19 = ssub.s32 1, %s17
  %s20 = scalar_select 0, %s19, %s17
  $region1: #{_lambda_.3} parent=0
    #allocation2 [shape = 'u8[65536]{0}', space=vmem, size = 0x10000, scoped, tag = 'output window, operand 1, single buffered']
    #allocation3 [shape = 's32[1]{0}', space=sflag, size = 0x4, scoped, tag = 'scoped memory for _lambda_.3']
    #allocation4 [shape = 'u8[16384]{0}', space=vmem, size = 0x4000, scoped, tag = 'output window, operand 2, single buffered']
    #allocation5 [shape = 's32[1]{0}', space=sflag, size = 0x4, scoped, tag = 'scoped memory for _lambda_.3']
    #allocation6 [shape = 'u8[4096]{0}', space=vmem, size = 0x1000, scoped, tag = 'output window, operand 3, single buffered']
    #allocation7 [shape = 'u8[1024]{0}', space=vmem, size = 0x400, scoped, tag = 'output window, operand 4, single buffered']
    #allocation8 [shape = 's32[1]{0}', space=sflag, size = 0x4, scoped, tag = 'scoped memory for _lambda_.3']
    %21 = vsyncpa [#allocation3], 0
    %22 = vsyncpa [#allocation5], 0
    %23 = vsyncpa [#allocation8], 0
    // Predicated region
    $region2: #{_lambda_.3} parent=1 // pred_check
      _
    $region3: #{_lambda_.3} parent=1 // pred_check_branch
      %25 = sbr.rel (0) target = $region5
    $region4: #{_lambda_.3} parent=1 // pred_region
      _
    $region5: #{_lambda_.3} parent=1 // pred_fallthru
      _
    // Predicated region
    $region6: #{_lambda_.3} parent=1 // pred_check
      _
    $region7: #{_lambda_.3} parent=1 // pred_check_branch
      %27 = sbr.rel (0) target = $region9
    $region8: #{_lambda_.3} parent=1 // pred_region
      _
    $region9: #{_lambda_.3} parent=1 // pred_fallthru
      _
    // Predicated region
    $region10: #{_lambda_.3} parent=1 // pred_check
      _
    $region11: #{_lambda_.3} parent=1 // pred_check_branch
      %29 = sbr.rel (0) target = $region13
    $region12: #{_lambda_.3} parent=1 // pred_region
      _
    $region13: #{_lambda_.3} parent=1 // pred_fallthru
      _
    // Predicated region
    $region14: #{_lambda_.3} parent=1 // pred_check
      _
    $region15: #{_lambda_.3} parent=1 // pred_check_branch
      %31 = sbr.rel (0) target = $region17
    $region16: #{_lambda_.3} parent=1 // pred_region
      _
    $region17: #{_lambda_.3} parent=1 // pred_fallthru
      _
    // Predicated region
    $region18: #{_lambda_.3} parent=1 // pred_check
      _
    $region19: #{_lambda_.3} parent=1 // pred_check_branch
      %33 = sbr.rel (0) target = $region21
    $region20: #{_lambda_.3} parent=1 // pred_region
      _
    $region21: #{_lambda_.3} parent=1 // pred_fallthru
      _
    // Predicated region
    $region22: #{_lambda_.3} parent=1 // pred_check
      _
    $region23: #{_lambda_.3} parent=1 // pred_check_branch
      %35 = sbr.rel (0) target = $region25
    $region24: #{_lambda_.3} parent=1 // pred_region
      _
    $region25: #{_lambda_.3} parent=1 // pred_fallthru
      _
    // Predicated region
    $region26: #{_lambda_.3} parent=1 // pred_check
      _
    $region27: #{_lambda_.3} parent=1 // pred_check_branch
      %37 = sbr.rel (0) target = $region29
    $region28: #{_lambda_.3} parent=1 // pred_region
      _
    $region29: #{_lambda_.3} parent=1 // pred_fallthru
      _
    // Predicated region
    $region30: #{_lambda_.3} parent=1 // pred_check
      _
    $region31: #{_lambda_.3} parent=1 // pred_check_branch
      %39 = sbr.rel (0) target = $region33
    $region32: #{_lambda_.3} parent=1 // pred_region
      _
    $region33: #{_lambda_.3} parent=1 // pred_fallthru
      _
    // Predicated region
    $region34: #{_lambda_.3} parent=1 // pred_check
      _
    $region35: #{_lambda_.3} parent=1 // pred_check_branch
      %41 = sbr.rel (0) target = $region37
    $region36: #{_lambda_.3} parent=1 // pred_region
      _
    $region37: #{_lambda_.3} parent=1 // pred_fallthru
      _
    // Predicated region
    $region38: #{_lambda_.3} parent=1 // pred_check
      _
    $region39: #{_lambda_.3} parent=1 // pred_check_branch
      %43 = sbr.rel (0) target = $region41
    $region40: #{_lambda_.3} parent=1 // pred_region
      _
    $region41: #{_lambda_.3} parent=1 // pred_fallthru
      _
    // Predicated region
    $region42: #{_lambda_.3} parent=1 // pred_check
      _
    $region43: #{_lambda_.3} parent=1 // pred_check_branch
      %45 = sbr.rel (0) target = $region45
    $region44: #{_lambda_.3} parent=1 // pred_region
      _
    $region45: #{_lambda_.3} parent=1 // pred_fallthru
      _
    %v47 = vld [vmem:[%s0] sm:$0xff]
    %v48 = vld [vmem:[%s0 + $0x8] sm:$0xff]
    %v49 = vld [vmem:[%s0 + $0x10] sm:$0xff]
    %v50 = vld [vmem:[%s0 + $0x18] sm:$0xff]
    %v51 = vld [vmem:[%s0 + $0x20] sm:$0xff]
    %v52 = vld [vmem:[%s0 + $0x28] sm:$0xff]
    %v53 = vld [vmem:[%s0 + $0x30] sm:$0xff]
    %v54 = vld [vmem:[%s0 + $0x38] sm:$0xff]
    %v55 = vld [vmem:[%s0 + $0x40] sm:$0xff]
    %v56 = vld [vmem:[%s0 + $0x48] sm:$0xff]
    %v57 = vld [vmem:[%s0 + $0x50] sm:$0xff]
    %v58 = vld [vmem:[%s0 + $0x58] sm:$0xff]
    %v59 = vld [vmem:[%s0 + $0x60] sm:$0xff]
    %v60 = vld [vmem:[%s0 + $0x68] sm:$0xff]
    %v61 = vld [vmem:[%s0 + $0x70] sm:$0xff]
    %v62 = vld [vmem:[%s0 + $0x78] sm:$0xff]
    %v63 = vld [vmem:[%s0 + $0x80] sm:$0xff]
    %v64 = vld [vmem:[%s0 + $0x88] sm:$0xff]
    %v65 = vld [vmem:[%s0 + $0x90] sm:$0xff]
    %v66 = vld [vmem:[%s0 + $0x98] sm:$0xff]
    %v67 = vld [vmem:[%s0 + $0xa0] sm:$0xff]
    %v68 = vld [vmem:[%s0 + $0xa8] sm:$0xff]
    %v69 = vld [vmem:[%s0 + $0xb0] sm:$0xff]
    %v70 = vld [vmem:[%s0 + $0xb8] sm:$0xff]
    %v71 = vld [vmem:[%s0 + $0xc0] sm:$0xff]
    %v72 = vld [vmem:[%s0 + $0xc8] sm:$0xff]
    %v73 = vld [vmem:[%s0 + $0xd0] sm:$0xff]
    %v74 = vld [vmem:[%s0 + $0xd8] sm:$0xff]
    %v75 = vld [vmem:[%s0 + $0xe0] sm:$0xff]
    %v76 = vld [vmem:[%s0 + $0xe8] sm:$0xff]
    %v77 = vld [vmem:[%s0 + $0xf0] sm:$0xff]
    %v78 = vld [vmem:[%s0 + $0xf8] sm:$0xff]
    %v79 = vpack.c.bf16 %v49, %v47
    %v80 = vpack.c.bf16 %v50, %v48
    %v81 = vpack.c.bf16 %v53, %v51
    %v82 = vpack.c.bf16 %v54, %v52
    %v83 = vpack.c.bf16 %v57, %v55
    %v84 = vpack.c.bf16 %v58, %v56
    %v85 = vpack.c.bf16 %v61, %v59
    %v86 = vpack.c.bf16 %v62, %v60
    %v87 = vpack.c.bf16 %v65, %v63
    %v88 = vpack.c.bf16 %v66, %v64
    %v89 = vpack.c.bf16 %v69, %v67
    %v90 = vpack.c.bf16 %v70, %v68
    %v91 = vpack.c.bf16 %v73, %v71
    %v92 = vpack.c.bf16 %v74, %v72
    %v93 = vpack.c.bf16 %v77, %v75
    %v94 = vpack.c.bf16 %v78, %v76
    %v95 = vld [vmem:[%s5] sm:$0xf]
    %v96 = vld [vmem:[%s5 + $0x4] sm:$0xf]
    %v97 = vld [vmem:[%s5 + $0x8] sm:$0xf]
    %v98 = vld [vmem:[%s5 + $0xc] sm:$0xf]
    %v99 = vld [vmem:[%s5 + $0x10] sm:$0xf]
    %v100 = vld [vmem:[%s5 + $0x14] sm:$0xf]
    %v101 = vld [vmem:[%s5 + $0x18] sm:$0xf]
    %v102 = vld [vmem:[%s5 + $0x1c] sm:$0xf]
    %v103 = vld [vmem:[%s5 + $0x20] sm:$0xf]
    %v104 = vld [vmem:[%s5 + $0x24] sm:$0xf]
    %v105 = vld [vmem:[%s5 + $0x28] sm:$0xf]
    %v106 = vld [vmem:[%s5 + $0x2c] sm:$0xf]
    %v107 = vld [vmem:[%s5 + $0x30] sm:$0xf]
    %v108 = vld [vmem:[%s5 + $0x34] sm:$0xf]
    %v109 = vld [vmem:[%s5 + $0x38] sm:$0xf]
    %v110 = vld [vmem:[%s5 + $0x3c] sm:$0xf]
    %v111 = vld [vmem:[%s5 + $0x40] sm:$0xf]
    %v112 = vld [vmem:[%s5 + $0x44] sm:$0xf]
    %v113 = vld [vmem:[%s6] sm:$0x1]
    %v115 = vperm.slane %v113, 0
    %v135 = vunpack.c.l.b16 %v95
    %v136 = vunpack.c.l.b16 %v96
    %v137 = vunpack.c.l.b16 %v97
    %v138 = vunpack.c.l.b16 %v98
    %v139 = vunpack.c.l.b16 %v99
    %v140 = vunpack.c.l.b16 %v100
    %v141 = vunpack.c.l.b16 %v101
    %v142 = vunpack.c.l.b16 %v102
    %v143 = vunpack.c.l.b16 %v103
    %v144 = vunpack.c.l.b16 %v104
    %v145 = vunpack.c.l.b16 %v105
    %v146 = vunpack.c.l.b16 %v106
    %v147 = vunpack.c.l.b16 %v107
    %v148 = vunpack.c.l.b16 %v108
    %v149 = vunpack.c.l.b16 %v109
    %v150 = vunpack.c.l.b16 %v110
    %v151 = vunpack.c.l.b16 %v111
    %v152 = vunpack.c.l.b16 %v112
    %v153 = vpack.c.b16 %v136, %v135
    %v154 = vpack.c.b16 %v138, %v137
    %v155 = vpack.c.b16 %v140, %v139
    %v156 = vpack.c.b16 %v142, %v141
    %v157 = vpack.c.b16 %v144, %v143
    %v158 = vpack.c.b16 %v146, %v145
    %v159 = vpack.c.b16 %v148, %v147
    %v160 = vpack.c.b16 %v150, %v149
    %v161 = vpack.c.b16 %v152, %v151
    %vm171 = vcmask 130048
    %v173 = vsel %vm171, %v80, 0
    %v176 = vsel %vm171, %v82, 0
    %v179 = vsel %vm171, %v84, 0
    %v182 = vsel %vm171, %v86, 0
    %v185 = vsel %vm171, %v88, 0
    %v188 = vsel %vm171, %v90, 0
    %v191 = vsel %vm171, %v92, 0
    %v194 = vsel %vm171, %v94, 0
    %196 = vmatpush.bf16.msra.mxu0 %v160
    %197 = vmatpush.bf16.msra.mxu0 %v159
    %198 = vmatpush.bf16.msra.mxu0 %v158
    %199 = vmatpush.bf16.msra.mxu0 %v157
    %200 = vmatpush.bf16.msra.mxu0 %v156
    %201 = vmatpush.bf16.msra.mxu0 %v155
    %202 = vmatpush.bf16.msra.mxu0 %v154
    %203 = vmatpush.bf16.msra.mxu0 %v153
    %204 = vmatmul.bf16.gmra.mxu0 %v79
    %v205 = vpop.f32.mrf.mxu0
    %v206 = vadd.f32 %v115, %v205
    %v207 = vpop.f32.mrf.mxu0
    %v208 = vadd.f32 %v115, %v207
    %209 = vmatmul.bf16.gmra.mxu0 %v81
    %v210 = vpop.f32.mrf.mxu0
    %v211 = vadd.f32 %v115, %v210
    %v212 = vpop.f32.mrf.mxu0
    %v213 = vadd.f32 %v115, %v212
    %214 = vmatmul.bf16.gmra.mxu0 %v83
    %v215 = vpop.f32.mrf.mxu0
    %v216 = vadd.f32 %v115, %v215
    %v217 = vpop.f32.mrf.mxu0
    %v218 = vadd.f32 %v115, %v217
    %219 = vmatmul.bf16.gmra.mxu0 %v85
    %v220 = vpop.f32.mrf.mxu0
    %v221 = vadd.f32 %v115, %v220
    %v222 = vpop.f32.mrf.mxu0
    %v223 = vadd.f32 %v115, %v222
    %224 = vmatmul.bf16.gmra.mxu0 %v87
    %v225 = vpop.f32.mrf.mxu0
    %v226 = vadd.f32 %v115, %v225
    %v227 = vpop.f32.mrf.mxu0
    %v228 = vadd.f32 %v115, %v227
    %229 = vmatmul.bf16.gmra.mxu0 %v89
    %v230 = vpop.f32.mrf.mxu0
    %v231 = vadd.f32 %v115, %v230
    %v232 = vpop.f32.mrf.mxu0
    %v233 = vadd.f32 %v115, %v232
    %234 = vmatmul.bf16.gmra.mxu0 %v91
    %v235 = vpop.f32.mrf.mxu0
    %v236 = vadd.f32 %v115, %v235
    %v237 = vpop.f32.mrf.mxu0
    %v238 = vadd.f32 %v115, %v237
    %239 = vmatmul.bf16.gmra.mxu0 %v93
    %v240 = vpop.f32.mrf.mxu0
    %v241 = vadd.f32 %v115, %v240
    %v242 = vpop.f32.mrf.mxu0
    %v243 = vadd.f32 %v115, %v242
    %244 = vdwg.mxu0
    %245 = vmatpush.bf16.msra.mxu0 0
    %246 = vmatpush.bf16.msra.mxu0 0
    %247 = vmatpush.bf16.msra.mxu0 0
    %248 = vmatpush.bf16.msra.mxu0 0
    %249 = vmatpush.bf16.msra.mxu0 0
    %250 = vmatpush.bf16.msra.mxu0 0
    %251 = vmatpush.bf16.msra.mxu0 0
    %252 = vmatpush.bf16.msra.mxu0 %v161
    %253 = vmatmul.bf16.gmra.mxu0 %v173
    %v254 = vpop.f32.mrf.mxu0
    %v255 = vadd.f32 %v206, %v254
    %v256 = vpop.f32.mrf.mxu0
    %v257 = vadd.f32 %v208, %v256
    %258 = vmatmul.bf16.gmra.mxu0 %v176
    %v259 = vpop.f32.mrf.mxu0
    %v260 = vadd.f32 %v211, %v259
    %v261 = vpop.f32.mrf.mxu0
    %v262 = vadd.f32 %v213, %v261
    %263 = vmatmul.bf16.gmra.mxu0 %v179
    %v264 = vpop.f32.mrf.mxu0
    %v265 = vadd.f32 %v216, %v264
    %v266 = vpop.f32.mrf.mxu0
    %v267 = vadd.f32 %v218, %v266
    %268 = vmatmul.bf16.gmra.mxu0 %v182
    %v269 = vpop.f32.mrf.mxu0
    %v270 = vadd.f32 %v221, %v269
    %v271 = vpop.f32.mrf.mxu0
    %v272 = vadd.f32 %v223, %v271
    %273 = vmatmul.bf16.gmra.mxu0 %v185
    %v274 = vpop.f32.mrf.mxu0
    %v275 = vadd.f32 %v226, %v274
    %v276 = vpop.f32.mrf.mxu0
    %v277 = vadd.f32 %v228, %v276
    %278 = vmatmul.bf16.gmra.mxu0 %v188
    %v279 = vpop.f32.mrf.mxu0
    %v280 = vadd.f32 %v231, %v279
    %v281 = vpop.f32.mrf.mxu0
    %v282 = vadd.f32 %v233, %v281
    %283 = vmatmul.bf16.gmra.mxu0 %v191
    %v284 = vpop.f32.mrf.mxu0
    %v285 = vadd.f32 %v236, %v284
    %v286 = vpop.f32.mrf.mxu0
    %v287 = vadd.f32 %v238, %v286
    %288 = vmatmul.bf16.gmra.mxu0 %v194
    %v289 = vpop.f32.mrf.mxu0
    %v290 = vadd.f32 %v241, %v289
    %v291 = vpop.f32.mrf.mxu0
    %v292 = vadd.f32 %v243, %v291
    %293 = vdwg.mxu0
    %294 = vst.msk [vmem:[%s11] sm:$0xff] %vm171, %v255
    %295 = vst.msk [vmem:[%s11 + $0x8] sm:$0xff] %vm171, %v257
    %296 = vst.msk [vmem:[%s11 + $0x10] sm:$0xff] %vm171, %v260
    %297 = vst.msk [vmem:[%s11 + $0x18] sm:$0xff] %vm171, %v262
    %298 = vst.msk [vmem:[%s11 + $0x20] sm:$0xff] %vm171, %v265
    %299 = vst.msk [vmem:[%s11 + $0x28] sm:$0xff] %vm171, %v267
    %300 = vst.msk [vmem:[%s11 + $0x30] sm:$0xff] %vm171, %v270
    %301 = vst.msk [vmem:[%s11 + $0x38] sm:$0xff] %vm171, %v272
    %302 = vst.msk [vmem:[%s11 + $0x40] sm:$0xff] %vm171, %v275
    %303 = vst.msk [vmem:[%s11 + $0x48] sm:$0xff] %vm171, %v277
    %304 = vst.msk [vmem:[%s11 + $0x50] sm:$0xff] %vm171, %v280
    %305 = vst.msk [vmem:[%s11 + $0x58] sm:$0xff] %vm171, %v282
    %306 = vst.msk [vmem:[%s11 + $0x60] sm:$0xff] %vm171, %v285
    %307 = vst.msk [vmem:[%s11 + $0x68] sm:$0xff] %vm171, %v287
    %308 = vst.msk [vmem:[%s11 + $0x70] sm:$0xff] %vm171, %v290
    %309 = vst.msk [vmem:[%s11 + $0x78] sm:$0xff] %vm171, %v292
    %v310 = vld [vmem:[%s1] sm:$0xff]
    %v311 = vld [vmem:[%s1 + $0x8] sm:$0xff]
    %v312 = vld [vmem:[%s1 + $0x10] sm:$0xff]
    %v313 = vld [vmem:[%s1 + $0x18] sm:$0xff]
    %v314 = vld [vmem:[%s1 + $0x20] sm:$0xff]
    %v315 = vld [vmem:[%s1 + $0x28] sm:$0xff]
    %v316 = vld [vmem:[%s1 + $0x30] sm:$0xff]
    %v317 = vld [vmem:[%s1 + $0x38] sm:$0xff]
    %v318 = vld [vmem:[%s1 + $0x40] sm:$0xff]
    %v319 = vld [vmem:[%s1 + $0x48] sm:$0xff]
    %v320 = vld [vmem:[%s1 + $0x50] sm:$0xff]
    %v321 = vld [vmem:[%s1 + $0x58] sm:$0xff]
    %v322 = vld [vmem:[%s1 + $0x60] sm:$0xff]
    %v323 = vld [vmem:[%s1 + $0x68] sm:$0xff]
    %v324 = vld [vmem:[%s1 + $0x70] sm:$0xff]
    %v325 = vld [vmem:[%s1 + $0x78] sm:$0xff]
    %v326 = vld [vmem:[%s1 + $0x80] sm:$0xff]
    %v327 = vld [vmem:[%s1 + $0x88] sm:$0xff]
    %v328 = vld [vmem:[%s1 + $0x90] sm:$0xff]
    %v329 = vld [vmem:[%s1 + $0x98] sm:$0xff]
    %v330 = vld [vmem:[%s1 + $0xa0] sm:$0xff]
    %v331 = vld [vmem:[%s1 + $0xa8] sm:$0xff]
    %v332 = vld [vmem:[%s1 + $0xb0] sm:$0xff]
    %v333 = vld [vmem:[%s1 + $0xb8] sm:$0xff]
    %v334 = vld [vmem:[%s1 + $0xc0] sm:$0xff]
    %v335 = vld [vmem:[%s1 + $0xc8] sm:$0xff]
    %v336 = vld [vmem:[%s1 + $0xd0] sm:$0xff]
    %v337 = vld [vmem:[%s1 + $0xd8] sm:$0xff]
    %v338 = vld [vmem:[%s1 + $0xe0] sm:$0xff]
    %v339 = vld [vmem:[%s1 + $0xe8] sm:$0xff]
    %v340 = vld [vmem:[%s1 + $0xf0] sm:$0xff]
    %v341 = vld [vmem:[%s1 + $0xf8] sm:$0xff]
    %v342 = vpack.c.bf16 %v312, %v310
    %v343 = vpack.c.bf16 %v313, %v311
    %v344 = vpack.c.bf16 %v316, %v314
    %v345 = vpack.c.bf16 %v317, %v315
    %v346 = vpack.c.bf16 %v320, %v318
    %v347 = vpack.c.bf16 %v321, %v319
    %v348 = vpack.c.bf16 %v324, %v322
    %v349 = vpack.c.bf16 %v325, %v323
    %v350 = vpack.c.bf16 %v328, %v326
    %v351 = vpack.c.bf16 %v329, %v327
    %v352 = vpack.c.bf16 %v332, %v330
    %v353 = vpack.c.bf16 %v333, %v331
    %v354 = vpack.c.bf16 %v336, %v334
    %v355 = vpack.c.bf16 %v337, %v335
    %v356 = vpack.c.bf16 %v340, %v338
    %v357 = vpack.c.bf16 %v341, %v339
    %v358 = vld [vmem:[%s7] sm:$0xf]
    %v359 = vld [vmem:[%s7 + $0x4] sm:$0xf]
    %v360 = vld [vmem:[%s7 + $0x8] sm:$0xf]
    %v361 = vld [vmem:[%s7 + $0xc] sm:$0xf]
    %v362 = vld [vmem:[%s7 + $0x10] sm:$0xf]
    %v363 = vld [vmem:[%s7 + $0x14] sm:$0xf]
    %v364 = vld [vmem:[%s7 + $0x18] sm:$0xf]
    %v365 = vld [vmem:[%s7 + $0x1c] sm:$0xf]
    %v366 = vld [vmem:[%s7 + $0x20] sm:$0xf]
    %v367 = vld [vmem:[%s7 + $0x24] sm:$0xf]
    %v368 = vld [vmem:[%s7 + $0x28] sm:$0xf]
    %v369 = vld [vmem:[%s7 + $0x2c] sm:$0xf]
    %v370 = vld [vmem:[%s7 + $0x30] sm:$0xf]
    %v371 = vld [vmem:[%s7 + $0x34] sm:$0xf]
    %v372 = vld [vmem:[%s7 + $0x38] sm:$0xf]
    %v373 = vld [vmem:[%s7 + $0x3c] sm:$0xf]
    %v374 = vld [vmem:[%s7 + $0x40] sm:$0xf]
    %v375 = vld [vmem:[%s7 + $0x44] sm:$0xf]
    %v376 = vld [vmem:[%s8] sm:$0x1]
    %v378 = vperm.slane %v376, 0
    %v398 = vunpack.c.l.b16 %v358
    %v399 = vunpack.c.l.b16 %v359
    %v400 = vunpack.c.l.b16 %v360
    %v401 = vunpack.c.l.b16 %v361
    %v402 = vunpack.c.l.b16 %v362
    %v403 = vunpack.c.l.b16 %v363
    %v404 = vunpack.c.l.b16 %v364
    %v405 = vunpack.c.l.b16 %v365
    %v406 = vunpack.c.l.b16 %v366
    %v407 = vunpack.c.l.b16 %v367
    %v408 = vunpack.c.l.b16 %v368
    %v409 = vunpack.c.l.b16 %v369
    %v410 = vunpack.c.l.b16 %v370
    %v411 = vunpack.c.l.b16 %v371
    %v412 = vunpack.c.l.b16 %v372
    %v413 = vunpack.c.l.b16 %v373
    %v414 = vunpack.c.l.b16 %v374
    %v415 = vunpack.c.l.b16 %v375
    %v416 = vpack.c.b16 %v399, %v398
    %v417 = vpack.c.b16 %v401, %v400
    %v418 = vpack.c.b16 %v403, %v402
    %v419 = vpack.c.b16 %v405, %v404
    %v420 = vpack.c.b16 %v407, %v406
    %v421 = vpack.c.b16 %v409, %v408
    %v422 = vpack.c.b16 %v411, %v410
    %v423 = vpack.c.b16 %v413, %v412
    %v424 = vpack.c.b16 %v415, %v414
    %v435 = vsel %vm171, %v343, 0
    %v438 = vsel %vm171, %v345, 0
    %v441 = vsel %vm171, %v347, 0
    %v444 = vsel %vm171, %v349, 0
    %v447 = vsel %vm171, %v351, 0
    %v450 = vsel %vm171, %v353, 0
    %v453 = vsel %vm171, %v355, 0
    %v456 = vsel %vm171, %v357, 0
    %458 = vmatpush.bf16.msra.mxu0 %v423
    %459 = vmatpush.bf16.msra.mxu0 %v422
    %460 = vmatpush.bf16.msra.mxu0 %v421
    %461 = vmatpush.bf16.msra.mxu0 %v420
    %462 = vmatpush.bf16.msra.mxu0 %v419
    %463 = vmatpush.bf16.msra.mxu0 %v418
    %464 = vmatpush.bf16.msra.mxu0 %v417
    %465 = vmatpush.bf16.msra.mxu0 %v416
    %466 = vmatmul.bf16.gmra.mxu0 %v342
    %v467 = vpop.f32.mrf.mxu0
    %v468 = vadd.f32 %v378, %v467
    %v469 = vpop.f32.mrf.mxu0
    %v470 = vadd.f32 %v378, %v469
    %471 = vmatmul.bf16.gmra.mxu0 %v344
    %v472 = vpop.f32.mrf.mxu0
    %v473 = vadd.f32 %v378, %v472
    %v474 = vpop.f32.mrf.mxu0
    %v475 = vadd.f32 %v378, %v474
    %476 = vmatmul.bf16.gmra.mxu0 %v346
    %v477 = vpop.f32.mrf.mxu0
    %v478 = vadd.f32 %v378, %v477
    %v479 = vpop.f32.mrf.mxu0
    %v480 = vadd.f32 %v378, %v479
    %481 = vmatmul.bf16.gmra.mxu0 %v348
    %v482 = vpop.f32.mrf.mxu0
    %v483 = vadd.f32 %v378, %v482
    %v484 = vpop.f32.mrf.mxu0
    %v485 = vadd.f32 %v378, %v484
    %486 = vmatmul.bf16.gmra.mxu0 %v350
    %v487 = vpop.f32.mrf.mxu0
    %v488 = vadd.f32 %v378, %v487
    %v489 = vpop.f32.mrf.mxu0
    %v490 = vadd.f32 %v378, %v489
    %491 = vmatmul.bf16.gmra.mxu0 %v352
    %v492 = vpop.f32.mrf.mxu0
    %v493 = vadd.f32 %v378, %v492
    %v494 = vpop.f32.mrf.mxu0
    %v495 = vadd.f32 %v378, %v494
    %496 = vmatmul.bf16.gmra.mxu0 %v354
    %v497 = vpop.f32.mrf.mxu0
    %v498 = vadd.f32 %v378, %v497
    %v499 = vpop.f32.mrf.mxu0
    %v500 = vadd.f32 %v378, %v499
    %501 = vmatmul.bf16.gmra.mxu0 %v356
    %v502 = vpop.f32.mrf.mxu0
    %v503 = vadd.f32 %v378, %v502
    %v504 = vpop.f32.mrf.mxu0
    %v505 = vadd.f32 %v378, %v504
    %506 = vdwg.mxu0
    %507 = vmatpush.bf16.msra.mxu0 0
    %508 = vmatpush.bf16.msra.mxu0 0
    %509 = vmatpush.bf16.msra.mxu0 0
    %510 = vmatpush.bf16.msra.mxu0 0
    %511 = vmatpush.bf16.msra.mxu0 0
    %512 = vmatpush.bf16.msra.mxu0 0
    %513 = vmatpush.bf16.msra.mxu0 0
    %514 = vmatpush.bf16.msra.mxu0 %v424
    %515 = vmatmul.bf16.gmra.mxu0 %v435
    %v516 = vpop.f32.mrf.mxu0
    %v517 = vadd.f32 %v468, %v516
    %v518 = vpop.f32.mrf.mxu0
    %v519 = vadd.f32 %v470, %v518
    %520 = vmatmul.bf16.gmra.mxu0 %v438
    %v521 = vpop.f32.mrf.mxu0
    %v522 = vadd.f32 %v473, %v521
    %v523 = vpop.f32.mrf.mxu0
    %v524 = vadd.f32 %v475, %v523
    %525 = vmatmul.bf16.gmra.mxu0 %v441
    %v526 = vpop.f32.mrf.mxu0
    %v527 = vadd.f32 %v478, %v526
    %v528 = vpop.f32.mrf.mxu0
    %v529 = vadd.f32 %v480, %v528
    %530 = vmatmul.bf16.gmra.mxu0 %v444
    %v531 = vpop.f32.mrf.mxu0
    %v532 = vadd.f32 %v483, %v531
    %v533 = vpop.f32.mrf.mxu0
    %v534 = vadd.f32 %v485, %v533
    %535 = vmatmul.bf16.gmra.mxu0 %v447
    %v536 = vpop.f32.mrf.mxu0
    %v537 = vadd.f32 %v488, %v536
    %v538 = vpop.f32.mrf.mxu0
    %v539 = vadd.f32 %v490, %v538
    %540 = vmatmul.bf16.gmra.mxu0 %v450
    %v541 = vpop.f32.mrf.mxu0
    %v542 = vadd.f32 %v493, %v541
    %v543 = vpop.f32.mrf.mxu0
    %v544 = vadd.f32 %v495, %v543
    %545 = vmatmul.bf16.gmra.mxu0 %v453
    %v546 = vpop.f32.mrf.mxu0
    %v547 = vadd.f32 %v498, %v546
    %v548 = vpop.f32.mrf.mxu0
    %v549 = vadd.f32 %v500, %v548
    %550 = vmatmul.bf16.gmra.mxu0 %v456
    %v551 = vpop.f32.mrf.mxu0
    %v552 = vadd.f32 %v503, %v551
    %v553 = vpop.f32.mrf.mxu0
    %v554 = vadd.f32 %v505, %v553
    %555 = vdwg.mxu0
    %556 = vst.msk [vmem:[#allocation2] sm:$0xff] %vm171, %v517
    %557 = vst.msk [vmem:[#allocation2 + $0x8] sm:$0xff] %vm171, %v519
    %558 = vst.msk [vmem:[#allocation2 + $0x10] sm:$0xff] %vm171, %v522
    %559 = vst.msk [vmem:[#allocation2 + $0x18] sm:$0xff] %vm171, %v524
    %560 = vst.msk [vmem:[#allocation2 + $0x20] sm:$0xff] %vm171, %v527
    %561 = vst.msk [vmem:[#allocation2 + $0x28] sm:$0xff] %vm171, %v529
    %562 = vst.msk [vmem:[#allocation2 + $0x30] sm:$0xff] %vm171, %v532
    %563 = vst.msk [vmem:[#allocation2 + $0x38] sm:$0xff] %vm171, %v534
    %564 = vst.msk [vmem:[#allocation2 + $0x40] sm:$0xff] %vm171, %v537
    %565 = vst.msk [vmem:[#allocation2 + $0x48] sm:$0xff] %vm171, %v539
    %566 = vst.msk [vmem:[#allocation2 + $0x50] sm:$0xff] %vm171, %v542
    %567 = vst.msk [vmem:[#allocation2 + $0x58] sm:$0xff] %vm171, %v544
    %568 = vst.msk [vmem:[#allocation2 + $0x60] sm:$0xff] %vm171, %v547
    %569 = vst.msk [vmem:[#allocation2 + $0x68] sm:$0xff] %vm171, %v549
    %570 = vst.msk [vmem:[#allocation2 + $0x70] sm:$0xff] %vm171, %v552
    %571 = vst.msk [vmem:[#allocation2 + $0x78] sm:$0xff] %vm171, %v554
    %v572 = vld [vmem:[%s2] sm:$0xff]
    %v573 = vld [vmem:[%s2 + $0x8] sm:$0xff]
    %v574 = vld [vmem:[%s2 + $0x10] sm:$0xff]
    %v575 = vld [vmem:[%s2 + $0x18] sm:$0xff]
    %v576 = vld [vmem:[%s2 + $0x20] sm:$0xff]
    %v577 = vld [vmem:[%s2 + $0x28] sm:$0xff]
    %v578 = vld [vmem:[%s2 + $0x30] sm:$0xff]
    %v579 = vld [vmem:[%s2 + $0x38] sm:$0xff]
    %v580 = vld [vmem:[%s2 + $0x40] sm:$0xff]
    %v581 = vld [vmem:[%s2 + $0x48] sm:$0xff]
    %v582 = vld [vmem:[%s2 + $0x50] sm:$0xff]
    %v583 = vld [vmem:[%s2 + $0x58] sm:$0xff]
    %v584 = vld [vmem:[%s2 + $0x60] sm:$0xff]
    %v585 = vld [vmem:[%s2 + $0x68] sm:$0xff]
    %v586 = vld [vmem:[%s2 + $0x70] sm:$0xff]
    %v587 = vld [vmem:[%s2 + $0x78] sm:$0xff]
    %v588 = vld [vmem:[%s2 + $0x80] sm:$0xff]
    %v589 = vld [vmem:[%s2 + $0x88] sm:$0xff]
    %v590 = vld [vmem:[%s2 + $0x90] sm:$0xff]
    %v591 = vld [vmem:[%s2 + $0x98] sm:$0xff]
    %v592 = vld [vmem:[%s2 + $0xa0] sm:$0xff]
    %v593 = vld [vmem:[%s2 + $0xa8] sm:$0xff]
    %v594 = vld [vmem:[%s2 + $0xb0] sm:$0xff]
    %v595 = vld [vmem:[%s2 + $0xb8] sm:$0xff]
    %v596 = vld [vmem:[%s2 + $0xc0] sm:$0xff]
    %v597 = vld [vmem:[%s2 + $0xc8] sm:$0xff]
    %v598 = vld [vmem:[%s2 + $0xd0] sm:$0xff]
    %v599 = vld [vmem:[%s2 + $0xd8] sm:$0xff]
    %v600 = vld [vmem:[%s2 + $0xe0] sm:$0xff]
    %v601 = vld [vmem:[%s2 + $0xe8] sm:$0xff]
    %v602 = vld [vmem:[%s2 + $0xf0] sm:$0xff]
    %v603 = vld [vmem:[%s2 + $0xf8] sm:$0xff]
    %v604 = vpack.c.bf16 %v574, %v572
    %v605 = vpack.c.bf16 %v575, %v573
    %v606 = vpack.c.bf16 %v578, %v576
    %v607 = vpack.c.bf16 %v579, %v577
    %v608 = vpack.c.bf16 %v582, %v580
    %v609 = vpack.c.bf16 %v583, %v581
    %v610 = vpack.c.bf16 %v586, %v584
    %v611 = vpack.c.bf16 %v587, %v585
    %v612 = vpack.c.bf16 %v590, %v588
    %v613 = vpack.c.bf16 %v591, %v589
    %v614 = vpack.c.bf16 %v594, %v592
    %v615 = vpack.c.bf16 %v595, %v593
    %v616 = vpack.c.bf16 %v598, %v596
    %v617 = vpack.c.bf16 %v599, %v597
    %v618 = vpack.c.bf16 %v602, %v600
    %v619 = vpack.c.bf16 %v603, %v601
    %v620 = vld [vmem:[%s9] sm:$0xf]
    %v621 = vld [vmem:[%s9 + $0x4] sm:$0xf]
    %v622 = vld [vmem:[%s9 + $0x8] sm:$0xf]
    %v623 = vld [vmem:[%s9 + $0xc] sm:$0xf]
    %v624 = vld [vmem:[%s9 + $0x10] sm:$0xf]
    %v625 = vld [vmem:[%s9 + $0x14] sm:$0xf]
    %v626 = vld [vmem:[%s9 + $0x18] sm:$0xf]
    %v627 = vld [vmem:[%s9 + $0x1c] sm:$0xf]
    %v628 = vld [vmem:[%s9 + $0x20] sm:$0xf]
    %v629 = vld [vmem:[%s9 + $0x24] sm:$0xf]
    %v630 = vld [vmem:[%s9 + $0x28] sm:$0xf]
    %v631 = vld [vmem:[%s9 + $0x2c] sm:$0xf]
    %v632 = vld [vmem:[%s9 + $0x30] sm:$0xf]
    %v633 = vld [vmem:[%s9 + $0x34] sm:$0xf]
    %v634 = vld [vmem:[%s9 + $0x38] sm:$0xf]
    %v635 = vld [vmem:[%s9 + $0x3c] sm:$0xf]
    %v636 = vld [vmem:[%s9 + $0x40] sm:$0xf]
    %v637 = vld [vmem:[%s9 + $0x44] sm:$0xf]
    %v638 = vld [vmem:[%s10] sm:$0x1]
    %v640 = vperm.slane %v638, 0
    %v660 = vunpack.c.l.b16 %v620
    %v661 = vunpack.c.l.b16 %v621
    %v662 = vunpack.c.l.b16 %v622
    %v663 = vunpack.c.l.b16 %v623
    %v664 = vunpack.c.l.b16 %v624
    %v665 = vunpack.c.l.b16 %v625
    %v666 = vunpack.c.l.b16 %v626
    %v667 = vunpack.c.l.b16 %v627
    %v668 = vunpack.c.l.b16 %v628
    %v669 = vunpack.c.l.b16 %v629
    %v670 = vunpack.c.l.b16 %v630
    %v671 = vunpack.c.l.b16 %v631
    %v672 = vunpack.c.l.b16 %v632
    %v673 = vunpack.c.l.b16 %v633
    %v674 = vunpack.c.l.b16 %v634
    %v675 = vunpack.c.l.b16 %v635
    %v676 = vunpack.c.l.b16 %v636
    %v677 = vunpack.c.l.b16 %v637
    %v678 = vpack.c.b16 %v661, %v660
    %v679 = vpack.c.b16 %v663, %v662
    %v680 = vpack.c.b16 %v665, %v664
    %v681 = vpack.c.b16 %v667, %v666
    %v682 = vpack.c.b16 %v669, %v668
    %v683 = vpack.c.b16 %v671, %v670
    %v684 = vpack.c.b16 %v673, %v672
    %v685 = vpack.c.b16 %v675, %v674
    %v686 = vpack.c.b16 %v677, %v676
    %v697 = vsel %vm171, %v605, 0
    %v700 = vsel %vm171, %v607, 0
    %v703 = vsel %vm171, %v609, 0
    %v706 = vsel %vm171, %v611, 0
    %v709 = vsel %vm171, %v613, 0
    %v712 = vsel %vm171, %v615, 0
    %v715 = vsel %vm171, %v617, 0
    %v718 = vsel %vm171, %v619, 0
    %720 = vmatpush.bf16.msra.mxu0 %v685
    %721 = vmatpush.bf16.msra.mxu0 %v684
    %722 = vmatpush.bf16.msra.mxu0 %v683
    %723 = vmatpush.bf16.msra.mxu0 %v682
    %724 = vmatpush.bf16.msra.mxu0 %v681
    %725 = vmatpush.bf16.msra.mxu0 %v680
    %726 = vmatpush.bf16.msra.mxu0 %v679
    %727 = vmatpush.bf16.msra.mxu0 %v678
    %728 = vmatmul.bf16.gmra.mxu0 %v604
    %v729 = vpop.f32.mrf.mxu0
    %v730 = vadd.f32 %v640, %v729
    %v731 = vpop.f32.mrf.mxu0
    %v732 = vadd.f32 %v640, %v731
    %733 = vmatmul.bf16.gmra.mxu0 %v606
    %v734 = vpop.f32.mrf.mxu0
    %v735 = vadd.f32 %v640, %v734
    %v736 = vpop.f32.mrf.mxu0
    %v737 = vadd.f32 %v640, %v736
    %738 = vmatmul.bf16.gmra.mxu0 %v608
    %v739 = vpop.f32.mrf.mxu0
    %v740 = vadd.f32 %v640, %v739
    %v741 = vpop.f32.mrf.mxu0
    %v742 = vadd.f32 %v640, %v741
    %743 = vmatmul.bf16.gmra.mxu0 %v610
    %v744 = vpop.f32.mrf.mxu0
    %v745 = vadd.f32 %v640, %v744
    %v746 = vpop.f32.mrf.mxu0
    %v747 = vadd.f32 %v640, %v746
    %748 = vmatmul.bf16.gmra.mxu0 %v612
    %v749 = vpop.f32.mrf.mxu0
    %v750 = vadd.f32 %v640, %v749
    %v751 = vpop.f32.mrf.mxu0
    %v752 = vadd.f32 %v640, %v751
    %753 = vmatmul.bf16.gmra.mxu0 %v614
    %v754 = vpop.f32.mrf.mxu0
    %v755 = vadd.f32 %v640, %v754
    %v756 = vpop.f32.mrf.mxu0
    %v757 = vadd.f32 %v640, %v756
    %758 = vmatmul.bf16.gmra.mxu0 %v616
    %v759 = vpop.f32.mrf.mxu0
    %v760 = vadd.f32 %v640, %v759
    %v761 = vpop.f32.mrf.mxu0
    %v762 = vadd.f32 %v640, %v761
    %763 = vmatmul.bf16.gmra.mxu0 %v618
    %v764 = vpop.f32.mrf.mxu0
    %v765 = vadd.f32 %v640, %v764
    %v766 = vpop.f32.mrf.mxu0
    %v767 = vadd.f32 %v640, %v766
    %768 = vdwg.mxu0
    %769 = vmatpush.bf16.msra.mxu0 0
    %770 = vmatpush.bf16.msra.mxu0 0
    %771 = vmatpush.bf16.msra.mxu0 0
    %772 = vmatpush.bf16.msra.mxu0 0
    %773 = vmatpush.bf16.msra.mxu0 0
    %774 = vmatpush.bf16.msra.mxu0 0
    %775 = vmatpush.bf16.msra.mxu0 0
    %776 = vmatpush.bf16.msra.mxu0 %v686
    %777 = vmatmul.bf16.gmra.mxu0 %v697
    %v778 = vpop.f32.mrf.mxu0
    %v779 = vadd.f32 %v730, %v778
    %v780 = vpop.f32.mrf.mxu0
    %v781 = vadd.f32 %v732, %v780
    %782 = vmatmul.bf16.gmra.mxu0 %v700
    %v783 = vpop.f32.mrf.mxu0
    %v784 = vadd.f32 %v735, %v783
    %v785 = vpop.f32.mrf.mxu0
    %v786 = vadd.f32 %v737, %v785
    %787 = vmatmul.bf16.gmra.mxu0 %v703
    %v788 = vpop.f32.mrf.mxu0
    %v789 = vadd.f32 %v740, %v788
    %v790 = vpop.f32.mrf.mxu0
    %v791 = vadd.f32 %v742, %v790
    %792 = vmatmul.bf16.gmra.mxu0 %v706
    %v793 = vpop.f32.mrf.mxu0
    %v794 = vadd.f32 %v745, %v793
    %v795 = vpop.f32.mrf.mxu0
    %v796 = vadd.f32 %v747, %v795
    %797 = vmatmul.bf16.gmra.mxu0 %v709
    %v798 = vpop.f32.mrf.mxu0
    %v799 = vadd.f32 %v750, %v798
    %v800 = vpop.f32.mrf.mxu0
    %v801 = vadd.f32 %v752, %v800
    %802 = vmatmul.bf16.gmra.mxu0 %v712
    %v803 = vpop.f32.mrf.mxu0
    %v804 = vadd.f32 %v755, %v803
    %v805 = vpop.f32.mrf.mxu0
    %v806 = vadd.f32 %v757, %v805
    %807 = vmatmul.bf16.gmra.mxu0 %v715
    %v808 = vpop.f32.mrf.mxu0
    %v809 = vadd.f32 %v760, %v808
    %v810 = vpop.f32.mrf.mxu0
    %v811 = vadd.f32 %v762, %v810
    %812 = vmatmul.bf16.gmra.mxu0 %v718
    %v813 = vpop.f32.mrf.mxu0
    %v814 = vadd.f32 %v765, %v813
    %v815 = vpop.f32.mrf.mxu0
    %v816 = vadd.f32 %v767, %v815
    %817 = vdwg.mxu0
    %v818 = vmax.f32 %v779, %v789
    %v819 = vmax.f32 %v781, %v791
    %v820 = vmax.f32 %v784, %v794
    %v821 = vmax.f32 %v786, %v796
    %v822 = vmax.f32 %v818, %v799
    %v823 = vmax.f32 %v819, %v801
    %v824 = vmax.f32 %v820, %v804
    %v825 = vmax.f32 %v821, %v806
    %v826 = vmax.f32 %v822, %v809
    %v827 = vmax.f32 %v823, %v811
    %v828 = vmax.f32 %v824, %v814
    %v829 = vmax.f32 %v825, %v816
    %830 = vst.msk [vmem:[#allocation4] sm:$0xff] %vm171, %v826
    %831 = vst.msk [vmem:[#allocation4 + $0x8] sm:$0xff] %vm171, %v827
    %832 = vst.msk [vmem:[#allocation4 + $0x10] sm:$0xff] %vm171, %v828
    %833 = vst.msk [vmem:[#allocation4 + $0x18] sm:$0xff] %vm171, %v829
    %v834 = vld [vmem:[%s3] sm:$0xff]
    %v835 = vld [vmem:[%s3 + $0x8] sm:$0xff]
    %v836 = vld [vmem:[%s3 + $0x10] sm:$0xff]
    %v837 = vld [vmem:[%s3 + $0x18] sm:$0xff]
    %v838 = vld [vmem:[%s3 + $0x20] sm:$0xff]
    %v839 = vld [vmem:[%s3 + $0x28] sm:$0xff]
    %v840 = vld [vmem:[%s3 + $0x30] sm:$0xff]
    %v841 = vld [vmem:[%s3 + $0x38] sm:$0xff]
    %v842 = vld [vmem:[%s3 + $0x40] sm:$0xff]
    %v843 = vld [vmem:[%s3 + $0x48] sm:$0xff]
    %v844 = vld [vmem:[%s3 + $0x50] sm:$0xff]
    %v845 = vld [vmem:[%s3 + $0x58] sm:$0xff]
    %v846 = vld [vmem:[%s3 + $0x60] sm:$0xff]
    %v847 = vld [vmem:[%s3 + $0x68] sm:$0xff]
    %v848 = vld [vmem:[%s3 + $0x70] sm:$0xff]
    %v849 = vld [vmem:[%s3 + $0x78] sm:$0xff]
    %v850 = vmax.f32 %v834, %v835
    %v851 = vmax.f32 %v850, %v836
    %v852 = vmax.f32 %v851, %v837
    %v853 = vmax.f32 %v852, %v838
    %v854 = vmax.f32 %v853, %v839
    %v855 = vmax.f32 %v854, %v840
    %v856 = vmax.f32 %v855, %v841
    %v857 = vmax.f32 %v856, %v842
    %v858 = vmax.f32 %v857, %v843
    %v859 = vmax.f32 %v858, %v844
    %v860 = vmax.f32 %v859, %v845
    %v861 = vmax.f32 %v860, %v846
    %v862 = vmax.f32 %v861, %v847
    %v863 = vmax.f32 %v862, %v848
    %v864 = vmax.f32 %v863, %v849
    %865 = vst.msk [vmem:[#allocation6] sm:$0xff] %vm171, %v864
    %v866 = vld [vmem:[%s4] sm:$0xff]
    %v867 = vld [vmem:[%s4 + $0x8] sm:$0xff]
    %v868 = vld [vmem:[%s4 + $0x10] sm:$0xff]
    %v869 = vld [vmem:[%s4 + $0x18] sm:$0xff]
    %v870 = vld [vmem:[%s4 + $0x20] sm:$0xff]
    %v871 = vld [vmem:[%s4 + $0x28] sm:$0xff]
    %v872 = vld [vmem:[%s4 + $0x30] sm:$0xff]
    %v873 = vld [vmem:[%s4 + $0x38] sm:$0xff]
    %v874 = vld [vmem:[%s4 + $0x40] sm:$0xff]
    %v875 = vld [vmem:[%s4 + $0x48] sm:$0xff]
    %v876 = vld [vmem:[%s4 + $0x50] sm:$0xff]
    %v877 = vld [vmem:[%s4 + $0x58] sm:$0xff]
    %v878 = vld [vmem:[%s4 + $0x60] sm:$0xff]
    %v879 = vld [vmem:[%s4 + $0x68] sm:$0xff]
    %v880 = vld [vmem:[%s4 + $0x70] sm:$0xff]
    %v881 = vld [vmem:[%s4 + $0x78] sm:$0xff]
    %v882 = vsel %vm171, %v866, -inf
    %v883 = vsel %vm171, %v867, -inf
    %v884 = vsel %vm171, %v868, -inf
    %v885 = vsel %vm171, %v869, -inf
    %v886 = vsel %vm171, %v870, -inf
    %v887 = vmax.f32 %v882, %v886
    %v888 = vsel %vm171, %v871, -inf
    %v889 = vmax.f32 %v883, %v888
    %v890 = vsel %vm171, %v872, -inf
    %v891 = vmax.f32 %v884, %v890
    %v892 = vsel %vm171, %v873, -inf
    %v893 = vmax.f32 %v885, %v892
    %v894 = vmax.f32 %v887, %v889
    %v895 = vmax.f32 %v891, %v893
    %v896 = vmax.f32 %v894, %v895
    %v897 = vrot.slane %v896, 4
    %v898 = vmax.f32 %v896, %v897
    %v899 = vrot.slane %v898, 2
    %v900 = vmax.f32 %v898, %v899
    %v901 = vrot.slane %v900, 1
    %v902 = vmax.f32 %v900, %v901
    %vm903 = vcmask 122880
    %904 = vst.msk [vmem:[#allocation7] sm:$0x1] %vm903, %v902
    %v905 = vsel %vm171, %v874, -inf
    %v906 = vsel %vm171, %v875, -inf
    %v907 = vsel %vm171, %v876, -inf
    %v908 = vsel %vm171, %v877, -inf
    %v909 = vsel %vm171, %v878, -inf
    %v910 = vmax.f32 %v905, %v909
    %v911 = vsel %vm171, %v879, -inf
    %v912 = vmax.f32 %v906, %v911
    %v913 = vsel %vm171, %v880, -inf
    %v914 = vmax.f32 %v907, %v913
    %v915 = vsel %vm171, %v881, -inf
    %v916 = vmax.f32 %v908, %v915
    %v917 = vmax.f32 %v910, %v912
    %v918 = vmax.f32 %v914, %v916
    %v919 = vmax.f32 %v917, %v918
    %v920 = vrot.slane %v919, 4
    %v921 = vmax.f32 %v919, %v920
    %v922 = vrot.slane %v921, 2
    %v923 = vmax.f32 %v921, %v922
    %v924 = vrot.slane %v923, 1
    %v925 = vmax.f32 %v923, %v924
    %926 = vst.msk [vmem:[#allocation7 + $0x1] sm:$0x1] %vm903, %v925
    // Predicated region
    $region46: #{_lambda_.3} parent=1 // pred_check
      _
    $region47: #{_lambda_.3} parent=1 // pred_check_branch
      %928 = sbr.rel (0) target = $region49
    $region48: #{_lambda_.3} parent=1 // pred_region
      _
    $region49: #{_lambda_.3} parent=1 // pred_fallthru
      _
    // Predicated region
    $region50: #{_lambda_.3} parent=1 // pred_check
      _
    $region51: #{_lambda_.3} parent=1 // pred_check_branch
      %930 = sbr.rel (0) target = $region53
    $region52: #{_lambda_.3} parent=1 // pred_region
      %932 = vsyncadd [#allocation3], 0
      %s933 = sshll.u32 [#allocation2], 4
      %s934 = int_to_ptr.vmem [resolvable:$true] %s933
      %s935 = sshll.u32 %s12, 4
      %s936 = int_to_ptr.hbm [resolvable:$true] %s935
      %941 = dma.vmem_to_hbm [thread:$0]  %s934, 2048, %s936, [#allocation3], 128, 128, 8
    $region53: #{_lambda_.3} parent=1 // pred_fallthru
      _
    // Predicated region
    $region54: #{_lambda_.3} parent=1 // pred_check
      _
    $region55: #{_lambda_.3} parent=1 // pred_check_branch
      %943 = sbr.rel (0) target = $region57
    $region56: #{_lambda_.3} parent=1 // pred_region
      %945 = vsyncadd [#allocation5], 0
      %s946 = sshll.u32 [#allocation4], 4
      %s947 = int_to_ptr.vmem [resolvable:$true] %s946
      %s948 = sshll.u32 %s13, 4
      %s949 = int_to_ptr.hbm [resolvable:$true] %s948
      %954 = dma.vmem_to_hbm [thread:$0]  %s947, 512, %s949, [#allocation5], 128, 128, 8
    $region57: #{_lambda_.3} parent=1 // pred_fallthru
      _
    // Predicated region
    $region58: #{_lambda_.3} parent=1 // pred_check
      _
    $region59: #{_lambda_.3} parent=1 // pred_check_branch
      %956 = sbr.rel (0) target = $region61
    $region60: #{_lambda_.3} parent=1 // pred_region
      %958 = vsyncadd [#allocation5], 0
      %s960 = sshll.u32 [#allocation6], 4
      %s961 = int_to_ptr.vmem [resolvable:$true] %s960
      %s962 = sshll.u32 %s14, 4
      %s963 = int_to_ptr.hbm [resolvable:$true] %s962
      %965 = dma.vmem_to_hbm [thread:$0]  %s961, 128, %s963, [#allocation5]
    $region61: #{_lambda_.3} parent=1 // pred_fallthru
      _
    // Predicated region
    $region62: #{_lambda_.3} parent=1 // pred_check
      _
    $region63: #{_lambda_.3} parent=1 // pred_check_branch
      %967 = sbr.rel (0) target = $region65
    $region64: #{_lambda_.3} parent=1 // pred_region
      %969 = vsyncadd [#allocation8], 0
      %s971 = sshll.u32 [#allocation7], 4
      %s972 = int_to_ptr.vmem [resolvable:$true] %s971
      %s973 = sshll.u32 %s15, 4
      %s974 = int_to_ptr.hbm [resolvable:$true] %s973
      %976 = dma.vmem_to_hbm [thread:$0]  %s972, 32, %s974, [#allocation8]
    $region65: #{_lambda_.3} parent=1 // pred_fallthru
      _
    // Predicated region
    $region66: #{_lambda_.3} parent=1 // pred_check
      _
    $region67: #{_lambda_.3} parent=1 // pred_check_branch
      %978 = sbr.rel (0) target = $region69
    $region68: #{_lambda_.3} parent=1 // pred_region
      _
    $region69: #{_lambda_.3} parent=1 // pred_fallthru
      _
    // Predicated region
    $region70: #{_lambda_.3} parent=1 // pred_check
      _
    $region71: #{_lambda_.3} parent=1 // pred_check_branch
      %980 = sbr.rel (0) target = $region73
    $region72: #{_lambda_.3} parent=1 // pred_region
      %982 = dma.done [#allocation3], 2048
    $region73: #{_lambda_.3} parent=1 // pred_fallthru
      _
    // Predicated region
    $region74: #{_lambda_.3} parent=1 // pred_check
      _
    $region75: #{_lambda_.3} parent=1 // pred_check_branch
      %984 = sbr.rel (0) target = $region77
    $region76: #{_lambda_.3} parent=1 // pred_region
      %986 = dma.done [#allocation5], 512
    $region77: #{_lambda_.3} parent=1 // pred_fallthru
      _
    // Predicated region
    $region78: #{_lambda_.3} parent=1 // pred_check
      _
    $region79: #{_lambda_.3} parent=1 // pred_check_branch
      %988 = sbr.rel (0) target = $region81
    $region80: #{_lambda_.3} parent=1 // pred_region
      %990 = dma.done [#allocation5], 128
    $region81: #{_lambda_.3} parent=1 // pred_fallthru
      _
    // Predicated region
    $region82: #{_lambda_.3} parent=1 // pred_check
      _
    $region83: #{_lambda_.3} parent=1 // pred_check_branch
      %992 = sbr.rel (0) target = $region85
    $region84: #{_lambda_.3} parent=1 // pred_region
      %994 = dma.done [#allocation8], 32
    $region85: #{_lambda_.3} parent=1 // pred_fallthru
      _
    %995 = vsyncpa [#allocation3], 1
    %996 = vsyncpa [#allocation5], 1
    %997 = vsyncpa [#allocation8], 1

// kernel: _lambda_.2
$region0: #{_lambda_.2}
  #allocation0 [shape = 'u32[]', space=smem, size = 0x4, offset = 0x4, fixed_abs, tag = 'smem constant byte address 0x4 - core index']
  #allocation1 [shape = 'u32[72,128]{1,0:T(1,128)}', space=vmem, size = 0x9000, scoped, tag = 'internal scratch']
  #allocation2 [shape = 'f32[64,32]{1,0:T(8,128)}', space=vmem, size = 0x8000, scoped, tag = 'scratch operand']
  %s0 = inlined_call_operand.vmem [shape: f32[2,64,48], index: 0, kind: input, shape index: {}]
  %s1 = inlined_call_operand.vmem [shape: bf16[48,32], index: 1, kind: input, shape index: {}]
  %s2 = inlined_call_operand.vmem [shape: f32[1,32], index: 2, kind: input, shape index: {}]
  %s3 = inlined_call_operand.vmem [shape: f32[12,1,32], index: 3, kind: input, shape index: {}]
  %s4 = inlined_call_operand.vmem [shape: f32[12,1,32], index: 4, kind: input, shape index: {}]
  %s5 = inlined_call_operand.vmem [shape: bf16[12,32,96], index: 5, kind: input, shape index: {}]
  %s6 = inlined_call_operand.vmem [shape: f32[12,1,96], index: 6, kind: input, shape index: {}]
  %s7 = inlined_call_operand.vmem [shape: bf16[48,8,32], index: 7, kind: input, shape index: {}]
  %s8 = inlined_call_operand.vmem [shape: f32[12,1,32], index: 8, kind: input, shape index: {}]
  %s9 = inlined_call_operand.vmem [shape: f32[12,1,32], index: 9, kind: input, shape index: {}]
  %s10 = inlined_call_operand.vmem [shape: f32[12,1,32], index: 10, kind: input, shape index: {}]
  %s11 = inlined_call_operand.vmem [shape: bf16[12,32,64], index: 11, kind: input, shape index: {}]
  %s12 = inlined_call_operand.vmem [shape: f32[12,1,64], index: 12, kind: input, shape index: {}]
  %s13 = inlined_call_operand.vmem [shape: bf16[12,64,32], index: 13, kind: input, shape index: {}]
  %s14 = inlined_call_operand.vmem [shape: f32[12,1,32], index: 14, kind: input, shape index: {}]
  %s15 = inlined_call_operand.vmem [shape: f32[1,32], index: 15, kind: input, shape index: {}]
  %s16 = inlined_call_operand.vmem [shape: f32[1,32], index: 16, kind: input, shape index: {}]
  %s17 = inlined_call_operand.vmem [shape: bf16[5,32,16], index: 17, kind: input, shape index: {}]
  %s18 = inlined_call_operand.vmem [shape: f32[5,1,16], index: 18, kind: input, shape index: {}]
  %s19 = inlined_call_operand.vmem [shape: f32[5,2,64,16], index: 19, kind: output, shape index: {}]
  %s20 = sld [smem:[#allocation0]]
  $region121: #{_lambda_.2} parent=0
    _
  %s22 = ssub.s32 1, %s20
  %s23 = scalar_select 0, %s22, %s20
  loop: start=0, step=1, limit=26
  $region2: #{_lambda_.2} parent=0 // loop_pre_header
    _
  $region3: #{_lambda_.2} parent=0 // loop_header
    %s25 = sphi 0, %s29
    %p26 = scmp.ge.s32.totalorder %s25, 26
    %s32 = sphi 0, %s44
    %s33 = sphi 0, %s40
    %s34 = sphi 0, %s32
    %s35 = sphi 0, %s33
    %s36 = sphi 0, %s34
    %s37 = sphi 0, %s35
    %s47 = sphi 0, %s49
    %s50 = sphi 0, %s47
    %s51 = sphi 0, %s50
    %s67 = sphi 0, %s51
    %s71 = sphi 0, %s71
    %s73 = sphi 0, %s71
    %s74 = sphi 0, %s73
    %s88 = sphi 0, %s74
    %s92 = sphi 0, %s92
    %s94 = sphi 0, %s92
    %s95 = sphi 0, %s94
    %s109 = sphi 0, %s95
    %s113 = sphi 0, %s113
    %s115 = sphi 0, %s113
    %s116 = sphi 0, %s115
    %s130 = sphi 0, %s116
    %s134 = sphi 0, %s134
    %s136 = sphi 0, %s134
    %s137 = sphi 0, %s136
    %s151 = sphi 0, %s137
    %s155 = sphi 0, %s155
    %s157 = sphi 0, %s155
    %s158 = sphi 0, %s157
    %s172 = sphi 0, %s158
    %s176 = sphi 0, %s176
    %s178 = sphi 0, %s176
    %s179 = sphi 0, %s178
    %s193 = sphi 0, %s179
    %s197 = sphi 0, %s197
    %s199 = sphi 0, %s197
    %s200 = sphi 0, %s199
    %s214 = sphi 0, %s200
    %s218 = sphi 0, %s218
    %s220 = sphi 0, %s218
    %s221 = sphi 0, %s220
    %s235 = sphi 0, %s221
    %s239 = sphi 0, %s239
    %s241 = sphi 0, %s239
    %s242 = sphi 0, %s241
    %s256 = sphi 0, %s242
    %s260 = sphi 0, %s260
    %s262 = sphi 0, %s260
    %s263 = sphi 0, %s262
    %s277 = sphi 0, %s263
    %s281 = sphi 0, %s281
    %s283 = sphi 0, %s281
    %s284 = sphi 0, %s283
    %s298 = sphi 0, %s284
    %s302 = sphi 0, %s302
    %s304 = sphi 0, %s302
    %s305 = sphi 0, %s304
    %s319 = sphi 0, %s305
    %s323 = sphi 0, %s323
    %s325 = sphi 0, %s323
    %s326 = sphi 0, %s325
    %s340 = sphi 0, %s326
    %s344 = sphi 0, %s344
    %s346 = sphi 0, %s344
    %s347 = sphi 0, %s346
    %s361 = sphi 0, %s347
    %s365 = sphi 0, %s365
    %s367 = sphi 0, %s365
    %s368 = sphi 0, %s367
    %s382 = sphi 0, %s368
    %s386 = sphi 0, %s386
    %s388 = sphi 0, %s386
    %s389 = sphi 0, %s388
    %s403 = sphi 0, %s389
    %s407 = sphi 0, %s407
    %s409 = sphi 0, %s407
    %s410 = sphi 0, %s409
    %s424 = sphi 0, %s410
    %s428 = sphi 0, %s428
    %s430 = sphi 0, %s428
    %s431 = sphi 0, %s430
    %s445 = sphi 0, %s431
    %s459 = sphi 0, %s461
    %s462 = sphi 0, %s459
    %s463 = sphi 0, %s462
    %s479 = sphi 0, %s463
  $region4: #{_lambda_.2} parent=0 // loop_header_branch
    %28 = sbr.rel (%p26) target = $region8
  $region5: #{_lambda_.2} parent=0 // loop_body
    %s30 = ssub.s32 %s25, 1
    %s31 = ssub.s32 %s25, 2
    %s38 = sadd.s32 1, %s33
    %p39 = scmp.ge.s32.totalorder %s38, 12
    %s40 = scalar_select %p39, 0, %s38
    %s41 = sadd.s32 1, %s32
    %s42 = scalar_select %p39, %s41, %s32
    %p43 = scmp.ge.s32.totalorder %s42, 2
    %s44 = scalar_select %p43, 0, %s42
    %s45 = ssub.s32 %s32, %s44
    %p46 = scmp.eq.s32.totalorder %s45, 0
    %s48 = sadd.s32 %s47, 1
    %s49 = scalar_select %p46, %s47, %s48
    %p52 = pneg %p46
    %p53 = scmp.eq.s32.totalorder %s25, 23
    %p54 = por %p52, %p53
    %p55 = scmp.ne.s32.totalorder %s47, %s50
    %p56 = scmp.eq.s32.totalorder %s25, 0
    %p57 = por %p55, %p56
    %p58 = scmp.ne.s32.totalorder %s47, %s50
    %p59 = scmp.eq.s32.totalorder %s30, 23
    %p60 = por %p58, %p59
    %p61 = scmp.ne.s32.totalorder %s50, %s51
    %p62 = scmp.eq.s32.totalorder %s30, 0
    %p63 = por %p61, %p62
    %p64 = scmp.ne.s32.totalorder %s50, %s51
    %p65 = scmp.eq.s32.totalorder %s31, 23
    %p66 = por %p64, %p65
    %p68 = scmp.ne.s32.totalorder %s51, %s67
    %p69 = scmp.eq.s32.totalorder %s31, 0
    %p70 = por %p68, %p69
    %s72 = sadd.s32 %s71, 1
    %p75 = scmp.eq.s32.totalorder %s25, 23
    %p76 = scmp.ne.s32.totalorder %s71, %s73
    %p77 = scmp.eq.s32.totalorder %s25, 0
    %p78 = por %p76, %p77
    %p79 = scmp.ne.s32.totalorder %s71, %s73
    %p80 = scmp.eq.s32.totalorder %s30, 23
    %p81 = por %p79, %p80
    %p82 = scmp.ne.s32.totalorder %s73, %s74
    %p83 = scmp.eq.s32.totalorder %s30, 0
    %p84 = por %p82, %p83
    %p85 = scmp.ne.s32.totalorder %s73, %s74
    %p86 = scmp.eq.s32.totalorder %s31, 23
    %p87 = por %p85, %p86
    %p89 = scmp.ne.s32.totalorder %s74, %s88
    %p90 = scmp.eq.s32.totalorder %s31, 0
    %p91 = por %p89, %p90
    %s93 = sadd.s32 %s92, 1
    %p96 = scmp.eq.s32.totalorder %s25, 23
    %p97 = scmp.ne.s32.totalorder %s92, %s94
    %p98 = scmp.eq.s32.totalorder %s25, 0
    %p99 = por %p97, %p98
    %p100 = scmp.ne.s32.totalorder %s92, %s94
    %p101 = scmp.eq.s32.totalorder %s30, 23
    %p102 = por %p100, %p101
    %p103 = scmp.ne.s32.totalorder %s94, %s95
    %p104 = scmp.eq.s32.totalorder %s30, 0
    %p105 = por %p103, %p104
    %p106 = scmp.ne.s32.totalorder %s94, %s95
    %p107 = scmp.eq.s32.totalorder %s31, 23
    %p108 = por %p106, %p107
    %p110 = scmp.ne.s32.totalorder %s95, %s109
    %p111 = scmp.eq.s32.totalorder %s31, 0
    %p112 = por %p110, %p111
    %s114 = sadd.s32 %s113, 1
    %p117 = scmp.eq.s32.totalorder %s25, 23
    %p118 = scmp.ne.s32.totalorder %s113, %s115
    %p119 = scmp.eq.s32.totalorder %s25, 0
    %p120 = por %p118, %p119
    %p121 = scmp.ne.s32.totalorder %s113, %s115
    %p122 = scmp.eq.s32.totalorder %s30, 23
    %p123 = por %p121, %p122
    %p124 = scmp.ne.s32.totalorder %s115, %s116
    %p125 = scmp.eq.s32.totalorder %s30, 0
    %p126 = por %p124, %p125
    %p127 = scmp.ne.s32.totalorder %s115, %s116
    %p128 = scmp.eq.s32.totalorder %s31, 23
    %p129 = por %p127, %p128
    %p131 = scmp.ne.s32.totalorder %s116, %s130
    %p132 = scmp.eq.s32.totalorder %s31, 0
    %p133 = por %p131, %p132
    %s135 = sadd.s32 %s134, 1
    %p138 = scmp.eq.s32.totalorder %s25, 23
    %p139 = scmp.ne.s32.totalorder %s134, %s136
    %p140 = scmp.eq.s32.totalorder %s25, 0
    %p141 = por %p139, %p140
    %p142 = scmp.ne.s32.totalorder %s134, %s136
    %p143 = scmp.eq.s32.totalorder %s30, 23
    %p144 = por %p142, %p143
    %p145 = scmp.ne.s32.totalorder %s136, %s137
    %p146 = scmp.eq.s32.totalorder %s30, 0
    %p147 = por %p145, %p146
    %p148 = scmp.ne.s32.totalorder %s136, %s137
    %p149 = scmp.eq.s32.totalorder %s31, 23
    %p150 = por %p148, %p149
    %p152 = scmp.ne.s32.totalorder %s137, %s151
    %p153 = scmp.eq.s32.totalorder %s31, 0
    %p154 = por %p152, %p153
    %s156 = sadd.s32 %s155, 1
    %p159 = scmp.eq.s32.totalorder %s25, 23
    %p160 = scmp.ne.s32.totalorder %s155, %s157
    %p161 = scmp.eq.s32.totalorder %s25, 0
    %p162 = por %p160, %p161
    %p163 = scmp.ne.s32.totalorder %s155, %s157
    %p164 = scmp.eq.s32.totalorder %s30, 23
    %p165 = por %p163, %p164
    %p166 = scmp.ne.s32.totalorder %s157, %s158
    %p167 = scmp.eq.s32.totalorder %s30, 0
    %p168 = por %p166, %p167
    %p169 = scmp.ne.s32.totalorder %s157, %s158
    %p170 = scmp.eq.s32.totalorder %s31, 23
    %p171 = por %p169, %p170
    %p173 = scmp.ne.s32.totalorder %s158, %s172
    %p174 = scmp.eq.s32.totalorder %s31, 0
    %p175 = por %p173, %p174
    %s177 = sadd.s32 %s176, 1
    %p180 = scmp.eq.s32.totalorder %s25, 23
    %p181 = scmp.ne.s32.totalorder %s176, %s178
    %p182 = scmp.eq.s32.totalorder %s25, 0
    %p183 = por %p181, %p182
    %p184 = scmp.ne.s32.totalorder %s176, %s178
    %p185 = scmp.eq.s32.totalorder %s30, 23
    %p186 = por %p184, %p185
    %p187 = scmp.ne.s32.totalorder %s178, %s179
    %p188 = scmp.eq.s32.totalorder %s30, 0
    %p189 = por %p187, %p188
    %p190 = scmp.ne.s32.totalorder %s178, %s179
    %p191 = scmp.eq.s32.totalorder %s31, 23
    %p192 = por %p190, %p191
    %p194 = scmp.ne.s32.totalorder %s179, %s193
    %p195 = scmp.eq.s32.totalorder %s31, 0
    %p196 = por %p194, %p195
    %s198 = sadd.s32 %s197, 1
    %p201 = scmp.eq.s32.totalorder %s25, 23
    %p202 = scmp.ne.s32.totalorder %s197, %s199
    %p203 = scmp.eq.s32.totalorder %s25, 0
    %p204 = por %p202, %p203
    %p205 = scmp.ne.s32.totalorder %s197, %s199
    %p206 = scmp.eq.s32.totalorder %s30, 23
    %p207 = por %p205, %p206
    %p208 = scmp.ne.s32.totalorder %s199, %s200
    %p209 = scmp.eq.s32.totalorder %s30, 0
    %p210 = por %p208, %p209
    %p211 = scmp.ne.s32.totalorder %s199, %s200
    %p212 = scmp.eq.s32.totalorder %s31, 23
    %p213 = por %p211, %p212
    %p215 = scmp.ne.s32.totalorder %s200, %s214
    %p216 = scmp.eq.s32.totalorder %s31, 0
    %p217 = por %p215, %p216
    %s219 = sadd.s32 %s218, 1
    %p222 = scmp.eq.s32.totalorder %s25, 23
    %p223 = scmp.ne.s32.totalorder %s218, %s220
    %p224 = scmp.eq.s32.totalorder %s25, 0
    %p225 = por %p223, %p224
    %p226 = scmp.ne.s32.totalorder %s218, %s220
    %p227 = scmp.eq.s32.totalorder %s30, 23
    %p228 = por %p226, %p227
    %p229 = scmp.ne.s32.totalorder %s220, %s221
    %p230 = scmp.eq.s32.totalorder %s30, 0
    %p231 = por %p229, %p230
    %p232 = scmp.ne.s32.totalorder %s220, %s221
    %p233 = scmp.eq.s32.totalorder %s31, 23
    %p234 = por %p232, %p233
    %p236 = scmp.ne.s32.totalorder %s221, %s235
    %p237 = scmp.eq.s32.totalorder %s31, 0
    %p238 = por %p236, %p237
    %s240 = sadd.s32 %s239, 1
    %p243 = scmp.eq.s32.totalorder %s25, 23
    %p244 = scmp.ne.s32.totalorder %s239, %s241
    %p245 = scmp.eq.s32.totalorder %s25, 0
    %p246 = por %p244, %p245
    %p247 = scmp.ne.s32.totalorder %s239, %s241
    %p248 = scmp.eq.s32.totalorder %s30, 23
    %p249 = por %p247, %p248
    %p250 = scmp.ne.s32.totalorder %s241, %s242
    %p251 = scmp.eq.s32.totalorder %s30, 0
    %p252 = por %p250, %p251
    %p253 = scmp.ne.s32.totalorder %s241, %s242
    %p254 = scmp.eq.s32.totalorder %s31, 23
    %p255 = por %p253, %p254
    %p257 = scmp.ne.s32.totalorder %s242, %s256
    %p258 = scmp.eq.s32.totalorder %s31, 0
    %p259 = por %p257, %p258
    %s261 = sadd.s32 %s260, 1
    %p264 = scmp.eq.s32.totalorder %s25, 23
    %p265 = scmp.ne.s32.totalorder %s260, %s262
    %p266 = scmp.eq.s32.totalorder %s25, 0
    %p267 = por %p265, %p266
    %p268 = scmp.ne.s32.totalorder %s260, %s262
    %p269 = scmp.eq.s32.totalorder %s30, 23
    %p270 = por %p268, %p269
    %p271 = scmp.ne.s32.totalorder %s262, %s263
    %p272 = scmp.eq.s32.totalorder %s30, 0
    %p273 = por %p271, %p272
    %p274 = scmp.ne.s32.totalorder %s262, %s263
    %p275 = scmp.eq.s32.totalorder %s31, 23
    %p276 = por %p274, %p275
    %p278 = scmp.ne.s32.totalorder %s263, %s277
    %p279 = scmp.eq.s32.totalorder %s31, 0
    %p280 = por %p278, %p279
    %s282 = sadd.s32 %s281, 1
    %p285 = scmp.eq.s32.totalorder %s25, 23
    %p286 = scmp.ne.s32.totalorder %s281, %s283
    %p287 = scmp.eq.s32.totalorder %s25, 0
    %p288 = por %p286, %p287
    %p289 = scmp.ne.s32.totalorder %s281, %s283
    %p290 = scmp.eq.s32.totalorder %s30, 23
    %p291 = por %p289, %p290
    %p292 = scmp.ne.s32.totalorder %s283, %s284
    %p293 = scmp.eq.s32.totalorder %s30, 0
    %p294 = por %p292, %p293
    %p295 = scmp.ne.s32.totalorder %s283, %s284
    %p296 = scmp.eq.s32.totalorder %s31, 23
    %p297 = por %p295, %p296
    %p299 = scmp.ne.s32.totalorder %s284, %s298
    %p300 = scmp.eq.s32.totalorder %s31, 0
    %p301 = por %p299, %p300
    %s303 = sadd.s32 %s302, 1
    %p306 = scmp.eq.s32.totalorder %s25, 23
    %p307 = scmp.ne.s32.totalorder %s302, %s304
    %p308 = scmp.eq.s32.totalorder %s25, 0
    %p309 = por %p307, %p308
    %p310 = scmp.ne.s32.totalorder %s302, %s304
    %p311 = scmp.eq.s32.totalorder %s30, 23
    %p312 = por %p310, %p311
    %p313 = scmp.ne.s32.totalorder %s304, %s305
    %p314 = scmp.eq.s32.totalorder %s30, 0
    %p315 = por %p313, %p314
    %p316 = scmp.ne.s32.totalorder %s304, %s305
    %p317 = scmp.eq.s32.totalorder %s31, 23
    %p318 = por %p316, %p317
    %p320 = scmp.ne.s32.totalorder %s305, %s319
    %p321 = scmp.eq.s32.totalorder %s31, 0
    %p322 = por %p320, %p321
    %s324 = sadd.s32 %s323, 1
    %p327 = scmp.eq.s32.totalorder %s25, 23
    %p328 = scmp.ne.s32.totalorder %s323, %s325
    %p329 = scmp.eq.s32.totalorder %s25, 0
    %p330 = por %p328, %p329
    %p331 = scmp.ne.s32.totalorder %s323, %s325
    %p332 = scmp.eq.s32.totalorder %s30, 23
    %p333 = por %p331, %p332
    %p334 = scmp.ne.s32.totalorder %s325, %s326
    %p335 = scmp.eq.s32.totalorder %s30, 0
    %p336 = por %p334, %p335
    %p337 = scmp.ne.s32.totalorder %s325, %s326
    %p338 = scmp.eq.s32.totalorder %s31, 23
    %p339 = por %p337, %p338
    %p341 = scmp.ne.s32.totalorder %s326, %s340
    %p342 = scmp.eq.s32.totalorder %s31, 0
    %p343 = por %p341, %p342
    %s345 = sadd.s32 %s344, 1
    %p348 = scmp.eq.s32.totalorder %s25, 23
    %p349 = scmp.ne.s32.totalorder %s344, %s346
    %p350 = scmp.eq.s32.totalorder %s25, 0
    %p351 = por %p349, %p350
    %p352 = scmp.ne.s32.totalorder %s344, %s346
    %p353 = scmp.eq.s32.totalorder %s30, 23
    %p354 = por %p352, %p353
    %p355 = scmp.ne.s32.totalorder %s346, %s347
    %p356 = scmp.eq.s32.totalorder %s30, 0
    %p357 = por %p355, %p356
    %p358 = scmp.ne.s32.totalorder %s346, %s347
    %p359 = scmp.eq.s32.totalorder %s31, 23
    %p360 = por %p358, %p359
    %p362 = scmp.ne.s32.totalorder %s347, %s361
    %p363 = scmp.eq.s32.totalorder %s31, 0
    %p364 = por %p362, %p363
    %s366 = sadd.s32 %s365, 1
    %p369 = scmp.eq.s32.totalorder %s25, 23
    %p370 = scmp.ne.s32.totalorder %s365, %s367
    %p371 = scmp.eq.s32.totalorder %s25, 0
    %p372 = por %p370, %p371
    %p373 = scmp.ne.s32.totalorder %s365, %s367
    %p374 = scmp.eq.s32.totalorder %s30, 23
    %p375 = por %p373, %p374
    %p376 = scmp.ne.s32.totalorder %s367, %s368
    %p377 = scmp.eq.s32.totalorder %s30, 0
    %p378 = por %p376, %p377
    %p379 = scmp.ne.s32.totalorder %s367, %s368
    %p380 = scmp.eq.s32.totalorder %s31, 23
    %p381 = por %p379, %p380
    %p383 = scmp.ne.s32.totalorder %s368, %s382
    %p384 = scmp.eq.s32.totalorder %s31, 0
    %p385 = por %p383, %p384
    %s387 = sadd.s32 %s386, 1
    %p390 = scmp.eq.s32.totalorder %s25, 23
    %p391 = scmp.ne.s32.totalorder %s386, %s388
    %p392 = scmp.eq.s32.totalorder %s25, 0
    %p393 = por %p391, %p392
    %p394 = scmp.ne.s32.totalorder %s386, %s388
    %p395 = scmp.eq.s32.totalorder %s30, 23
    %p396 = por %p394, %p395
    %p397 = scmp.ne.s32.totalorder %s388, %s389
    %p398 = scmp.eq.s32.totalorder %s30, 0
    %p399 = por %p397, %p398
    %p400 = scmp.ne.s32.totalorder %s388, %s389
    %p401 = scmp.eq.s32.totalorder %s31, 23
    %p402 = por %p400, %p401
    %p404 = scmp.ne.s32.totalorder %s389, %s403
    %p405 = scmp.eq.s32.totalorder %s31, 0
    %p406 = por %p404, %p405
    %s408 = sadd.s32 %s407, 1
    %p411 = scmp.eq.s32.totalorder %s25, 23
    %p412 = scmp.ne.s32.totalorder %s407, %s409
    %p413 = scmp.eq.s32.totalorder %s25, 0
    %p414 = por %p412, %p413
    %p415 = scmp.ne.s32.totalorder %s407, %s409
    %p416 = scmp.eq.s32.totalorder %s30, 23
    %p417 = por %p415, %p416
    %p418 = scmp.ne.s32.totalorder %s409, %s410
    %p419 = scmp.eq.s32.totalorder %s30, 0
    %p420 = por %p418, %p419
    %p421 = scmp.ne.s32.totalorder %s409, %s410
    %p422 = scmp.eq.s32.totalorder %s31, 23
    %p423 = por %p421, %p422
    %p425 = scmp.ne.s32.totalorder %s410, %s424
    %p426 = scmp.eq.s32.totalorder %s31, 0
    %p427 = por %p425, %p426
    %s429 = sadd.s32 %s428, 1
    %p432 = scmp.eq.s32.totalorder %s25, 23
    %p433 = scmp.ne.s32.totalorder %s428, %s430
    %p434 = scmp.eq.s32.totalorder %s25, 0
    %p435 = por %p433, %p434
    %p436 = scmp.ne.s32.totalorder %s428, %s430
    %p437 = scmp.eq.s32.totalorder %s30, 23
    %p438 = por %p436, %p437
    %p439 = scmp.ne.s32.totalorder %s430, %s431
    %p440 = scmp.eq.s32.totalorder %s30, 0
    %p441 = por %p439, %p440
    %p442 = scmp.ne.s32.totalorder %s430, %s431
    %p443 = scmp.eq.s32.totalorder %s31, 23
    %p444 = por %p442, %p443
    %p446 = scmp.ne.s32.totalorder %s431, %s445
    %p447 = scmp.eq.s32.totalorder %s31, 0
    %p448 = por %p446, %p447
    %s449 = ssub.s32 %s33, 7
    %p450 = scmp.gt.s32.totalorder %s449, 0
    %s451 = scalar_select %p450, %s449, 0
    %s452 = ssub.s32 %s40, 7
    %p453 = scmp.gt.s32.totalorder %s452, 0
    %s454 = scalar_select %p453, %s452, 0
    %s455 = ssub.s32 %s451, %s454
    %s456 = ssub.s32 %s32, %s44
    %s457 = sor.u32 %s455, %s456
    %p458 = scmp.eq.s32.totalorder %s457, 0
    %s460 = sadd.s32 %s459, 1
    %s461 = scalar_select %p458, %s459, %s460
    %p464 = pneg %p458
    %p465 = scmp.eq.s32.totalorder %s25, 23
    %p466 = por %p464, %p465
    %p467 = scmp.ne.s32.totalorder %s459, %s462
    %p468 = scmp.eq.s32.totalorder %s25, 0
    %p469 = por %p467, %p468
    %p470 = scmp.ne.s32.totalorder %s459, %s462
    %p471 = scmp.eq.s32.totalorder %s30, 23
    %p472 = por %p470, %p471
    %p473 = scmp.ne.s32.totalorder %s462, %s463
    %p474 = scmp.eq.s32.totalorder %s30, 0
    %p475 = por %p473, %p474
    %p476 = scmp.ne.s32.totalorder %s462, %s463
    %p477 = scmp.eq.s32.totalorder %s31, 23
    %p478 = por %p476, %p477
    %p480 = scmp.ne.s32.totalorder %s463, %s479
    %p481 = scmp.eq.s32.totalorder %s31, 0
    %p482 = por %p480, %p481
    %p483 = scmp.le.s32.totalorder 1, %s25
    %p484 = scmp.lt.s32.totalorder %s25, 25
    %p485 = pnand %p483, %p484
    %p486 = pneg %p485
    // Predicated region
    $region9: #{_lambda_.2} parent=5 // pred_check
      _
    $region10: #{_lambda_.2} parent=5 // pred_check_branch
      %488 = sbr.rel (%p485) target = $region12
    $region11: #{_lambda_.2} parent=5 // pred_region
      %s489 = ssub.s32 %s25, 1
      // Predicated region
      $region13: #{_lambda_.2} parent=11 // pred_check
        %p490 = pneg %p84
      $region14: #{_lambda_.2} parent=11 // pred_check_branch
        %492 = sbr.rel (%p490) target = $region16
      $region15: #{_lambda_.2} parent=11 // pred_region
        _
      $region16: #{_lambda_.2} parent=11 // pred_fallthru
        _
      // Predicated region
      $region17: #{_lambda_.2} parent=11 // pred_check
        %p493 = pneg %p105
      $region18: #{_lambda_.2} parent=11 // pred_check_branch
        %495 = sbr.rel (%p493) target = $region20
      $region19: #{_lambda_.2} parent=11 // pred_region
        _
      $region20: #{_lambda_.2} parent=11 // pred_fallthru
        _
      // Predicated region
      $region21: #{_lambda_.2} parent=11 // pred_check
        %p496 = pneg %p126
      $region22: #{_lambda_.2} parent=11 // pred_check_branch
        %498 = sbr.rel (%p496) target = $region24
      $region23: #{_lambda_.2} parent=11 // pred_region
        _
      $region24: #{_lambda_.2} parent=11 // pred_fallthru
        _
      // Predicated region
      $region25: #{_lambda_.2} parent=11 // pred_check
        %p499 = pneg %p147
      $region26: #{_lambda_.2} parent=11 // pred_check_branch
        %501 = sbr.rel (%p499) target = $region28
      $region27: #{_lambda_.2} parent=11 // pred_region
        _
      $region28: #{_lambda_.2} parent=11 // pred_fallthru
        _
      // Predicated region
      $region29: #{_lambda_.2} parent=11 // pred_check
        %p502 = pneg %p168
      $region30: #{_lambda_.2} parent=11 // pred_check_branch
        %504 = sbr.rel (%p502) target = $region32
      $region31: #{_lambda_.2} parent=11 // pred_region
        _
      $region32: #{_lambda_.2} parent=11 // pred_fallthru
        _
      // Predicated region
      $region33: #{_lambda_.2} parent=11 // pred_check
        %p505 = pneg %p189
      $region34: #{_lambda_.2} parent=11 // pred_check_branch
        %507 = sbr.rel (%p505) target = $region36
      $region35: #{_lambda_.2} parent=11 // pred_region
        _
      $region36: #{_lambda_.2} parent=11 // pred_fallthru
        _
      // Predicated region
      $region37: #{_lambda_.2} parent=11 // pred_check
        %p508 = pneg %p210
      $region38: #{_lambda_.2} parent=11 // pred_check_branch
        %510 = sbr.rel (%p508) target = $region40
      $region39: #{_lambda_.2} parent=11 // pred_region
        _
      $region40: #{_lambda_.2} parent=11 // pred_fallthru
        _
      // Predicated region
      $region41: #{_lambda_.2} parent=11 // pred_check
        %p511 = pneg %p231
      $region42: #{_lambda_.2} parent=11 // pred_check_branch
        %513 = sbr.rel (%p511) target = $region44
      $region43: #{_lambda_.2} parent=11 // pred_region
        _
      $region44: #{_lambda_.2} parent=11 // pred_fallthru
        _
      // Predicated region
      $region45: #{_lambda_.2} parent=11 // pred_check
        %p514 = pneg %p252
      $region46: #{_lambda_.2} parent=11 // pred_check_branch
        %516 = sbr.rel (%p514) target = $region48
      $region47: #{_lambda_.2} parent=11 // pred_region
        _
      $region48: #{_lambda_.2} parent=11 // pred_fallthru
        _
      // Predicated region
      $region49: #{_lambda_.2} parent=11 // pred_check
        %p517 = pneg %p273
      $region50: #{_lambda_.2} parent=11 // pred_check_branch
        %519 = sbr.rel (%p517) target = $region52
      $region51: #{_lambda_.2} parent=11 // pred_region
        _
      $region52: #{_lambda_.2} parent=11 // pred_fallthru
        _
      // Predicated region
      $region53: #{_lambda_.2} parent=11 // pred_check
        %p520 = pneg %p294
      $region54: #{_lambda_.2} parent=11 // pred_check_branch
        %522 = sbr.rel (%p520) target = $region56
      $region55: #{_lambda_.2} parent=11 // pred_region
        _
      $region56: #{_lambda_.2} parent=11 // pred_fallthru
        _
      // Predicated region
      $region57: #{_lambda_.2} parent=11 // pred_check
        %p523 = pneg %p315
      $region58: #{_lambda_.2} parent=11 // pred_check_branch
        %525 = sbr.rel (%p523) target = $region60
      $region59: #{_lambda_.2} parent=11 // pred_region
        _
      $region60: #{_lambda_.2} parent=11 // pred_fallthru
        _
      // Predicated region
      $region61: #{_lambda_.2} parent=11 // pred_check
        %p526 = pneg %p336
      $region62: #{_lambda_.2} parent=11 // pred_check_branch
        %528 = sbr.rel (%p526) target = $region64
      $region63: #{_lambda_.2} parent=11 // pred_region
        _
      $region64: #{_lambda_.2} parent=11 // pred_fallthru
        _
      // Predicated region
      $region65: #{_lambda_.2} parent=11 // pred_check
        %p529 = pneg %p357
      $region66: #{_lambda_.2} parent=11 // pred_check_branch
        %531 = sbr.rel (%p529) target = $region68
      $region67: #{_lambda_.2} parent=11 // pred_region
        _
      $region68: #{_lambda_.2} parent=11 // pred_fallthru
        _
      // Predicated region
      $region69: #{_lambda_.2} parent=11 // pred_check
        %p532 = pneg %p378
      $region70: #{_lambda_.2} parent=11 // pred_check_branch
        %534 = sbr.rel (%p532) target = $region72
      $region71: #{_lambda_.2} parent=11 // pred_region
        _
      $region72: #{_lambda_.2} parent=11 // pred_fallthru
        _
      // Predicated region
      $region73: #{_lambda_.2} parent=11 // pred_check
        %p535 = pneg %p399
      $region74: #{_lambda_.2} parent=11 // pred_check_branch
        %537 = sbr.rel (%p535) target = $region76
      $region75: #{_lambda_.2} parent=11 // pred_region
        _
      $region76: #{_lambda_.2} parent=11 // pred_fallthru
        _
      // Predicated region
      $region77: #{_lambda_.2} parent=11 // pred_check
        %p538 = pneg %p420
      $region78: #{_lambda_.2} parent=11 // pred_check_branch
        %540 = sbr.rel (%p538) target = $region80
      $region79: #{_lambda_.2} parent=11 // pred_region
        _
      $region80: #{_lambda_.2} parent=11 // pred_fallthru
        _
      // Predicated region
      $region81: #{_lambda_.2} parent=11 // pred_check
        %p541 = pneg %p441
      $region82: #{_lambda_.2} parent=11 // pred_check_branch
        %543 = sbr.rel (%p541) target = $region84
      $region83: #{_lambda_.2} parent=11 // pred_region
        _
      $region84: #{_lambda_.2} parent=11 // pred_fallthru
        _
    $region12: #{_lambda_.2} parent=5 // pred_fallthru
      _
    %p544 = scmp.lt.s32.totalorder %s25, 24
    // Predicated region
    $region85: #{_lambda_.2} parent=5 // pred_check
      %p545 = pneg %p544
    $region86: #{_lambda_.2} parent=5 // pred_check_branch
      %547 = sbr.rel (%p545) target = $region88
    $region87: #{_lambda_.2} parent=5 // pred_region
      // Predicated region
      $region89: #{_lambda_.2} parent=87 // pred_check
        %p548 = pneg %p57
      $region90: #{_lambda_.2} parent=87 // pred_check_branch
        %550 = sbr.rel (%p548) target = $region92
      $region91: #{_lambda_.2} parent=87 // pred_region
        %p551 = scmp.lt.s32.totalorder %s32, 1
        %s552 = scalar_select %p551, %s32, 1
        %s553 = smul.addr %s552, 8
        %s554 = smul.addr %s553, 8
        %s555 = scalar_lea.vmem %s0, %s554
      $region92: #{_lambda_.2} parent=87 // pred_fallthru
        _
    $region88: #{_lambda_.2} parent=5 // pred_fallthru
      _
    %p556 = scmp.le.s32.totalorder 1, %s25
    %p557 = scmp.lt.s32.totalorder %s25, 25
    %p558 = pnand %p556, %p557
    %p559 = pneg %p558
    // Predicated region
    $region93: #{_lambda_.2} parent=5 // pred_check
      _
    $region94: #{_lambda_.2} parent=5 // pred_check_branch
      %561 = sbr.rel (%p558) target = $region96
    $region95: #{_lambda_.2} parent=5 // pred_region
      %s562 = ssub.s32 %s25, 1
      %p563 = scmp.lt.s32.totalorder %s34, 1
      %s564 = scalar_select %p563, %s34, 1
      %s565 = smul.addr %s564, 8
      %s566 = smul.addr %s565, 8
      %s567 = scalar_lea.vmem %s0, %s566
      %p568 = pneg %p63
      %p569 = pneg %p60
      %p570 = pneg %p84
      %p571 = pneg %p81
      %p572 = pneg %p105
      %p573 = pneg %p102
      %p574 = pneg %p126
      %p575 = pneg %p123
      %p576 = pneg %p147
      %p577 = pneg %p144
      %p578 = pneg %p168
      %p579 = pneg %p165
      %p580 = pneg %p189
      %p581 = pneg %p186
      %p582 = pneg %p210
      %p583 = pneg %p207
      %p584 = pneg %p231
      %p585 = pneg %p228
      %p586 = pneg %p252
      %p587 = pneg %p249
      %p588 = pneg %p273
      %p589 = pneg %p270
      %p590 = pneg %p294
      %p591 = pneg %p291
      %p592 = pneg %p315
      %p593 = pneg %p312
      %p594 = pneg %p336
      %p595 = pneg %p333
      %p596 = pneg %p357
      %p597 = pneg %p354
      %p598 = pneg %p378
      %p599 = pneg %p375
      %p600 = pneg %p399
      %p601 = pneg %p396
      %p602 = pneg %p420
      %p603 = pneg %p417
      %p604 = pneg %p441
      %p605 = pneg %p438
      %p606 = pneg %p475
      %p607 = pneg %p472
      %s608 = ssub.s32 %s35, 7
      %p609 = scmp.gt.s32.totalorder %s608, 0
      %s610 = scalar_select %p609, %s608, 0
      %p611 = scmp.lt.s32.totalorder %s610, 4
      %s612 = scalar_select %p611, %s610, 4
      %p613 = scmp.lt.s32.totalorder %s34, 1
      %s614 = scalar_select %p613, %s34, 1
      %s615 = smul.addr %s614, 8
      %s616 = smul.addr %s612, 16
      %s617 = sadd.s32 %s615, %s616
      %s618 = smul.addr %s617, 8
      %s619 = scalar_lea.vmem %s19, %s618
      %p620 = scmp.lt.s32.totalorder %s34, 1
      %s621 = scalar_select %p620, %s34, 1
      %s622 = smul.addr %s621, 8
      %s623 = smul.addr %s622, 8
      %s624 = scalar_lea.vmem %s0, %s623
      %s625 = ssub.s32 %s35, 7
      %p626 = scmp.gt.s32.totalorder %s625, 0
      %s627 = scalar_select %p626, %s625, 0
      %p628 = scmp.lt.s32.totalorder %s627, 4
      %s629 = scalar_select %p628, %s627, 4
      %p630 = scmp.lt.s32.totalorder %s34, 1
      %s631 = scalar_select %p630, %s34, 1
      %s632 = smul.addr %s631, 8
      %s633 = smul.addr %s629, 16
      %s634 = sadd.s32 %s632, %s633
      %s635 = smul.addr %s634, 8
      %s636 = scalar_lea.vmem %s19, %s635
      %s637 = ssub.s32 %s35, 7
      %p638 = scmp.gt.s32.totalorder %s637, 0
      %s639 = scalar_select %p638, %s637, 0
      %p641 = scmp.eq.s32.totalorder %s35, 0
      // Predicated region
      $region97: #{_lambda_.2} parent=95 // pred_check
        %p642 = pneg %p641
      $region98: #{_lambda_.2} parent=95 // pred_check_branch
        %644 = sbr.rel (%p642) target = $region100
      $region99: #{_lambda_.2} parent=95 // pred_region
        %v645 = vld [vmem:[%s624] sm:$0xff]
        %v646 = vld [vmem:[%s624 + $0x8] sm:$0xff]
        %v647 = vld [vmem:[%s624 + $0x10] sm:$0xff]
        %v648 = vld [vmem:[%s624 + $0x18] sm:$0xff]
        %v649 = vld [vmem:[%s624 + $0x20] sm:$0xff]
        %v650 = vld [vmem:[%s624 + $0x28] sm:$0xff]
        %v651 = vld [vmem:[%s624 + $0x30] sm:$0xff]
        %v652 = vld [vmem:[%s624 + $0x38] sm:$0xff]
        %v653 = vpack.c.bf16 %v646, %v645
        %v654 = vpack.c.bf16 %v648, %v647
        %v655 = vpack.c.bf16 %v650, %v649
        %v656 = vpack.c.bf16 %v652, %v651
        %v657 = vld [vmem:[%s1] sm:$0xf]
        %v658 = vld [vmem:[%s1 + $0x4] sm:$0xf]
        %v659 = vld [vmem:[%s1 + $0x8] sm:$0xf]
        %v660 = vld [vmem:[%s1 + $0xc] sm:$0xf]
        %v661 = vld [vmem:[%s1 + $0x10] sm:$0xf]
        %v662 = vld [vmem:[%s1 + $0x14] sm:$0xf]
        %v663 = vld [vmem:[%s2] sm:$0x1]
        %v665 = vperm.slane %v663, 0
        %v673 = vunpack.c.l.b16 %v657
        %v674 = vunpack.c.l.b16 %v658
        %v675 = vunpack.c.l.b16 %v659
        %v676 = vunpack.c.l.b16 %v660
        %v677 = vunpack.c.l.b16 %v661
        %v678 = vunpack.c.l.b16 %v662
        %v679 = vpack.c.b16 %v674, %v673
        %v680 = vpack.c.b16 %v676, %v675
        %v681 = vpack.c.b16 %v678, %v677
        %vm685 = vcmask 392192
        %v687 = vsel %vm685, %v653, 0
        %v690 = vsel %vm685, %v654, 0
        %v693 = vsel %vm685, %v655, 0
        %v696 = vsel %vm685, %v656, 0
        %698 = vmatpush.bf16.msra.mxu0 0
        %699 = vmatpush.bf16.msra.mxu0 0
        %700 = vmatpush.bf16.msra.mxu0 0
        %701 = vmatpush.bf16.msra.mxu0 0
        %702 = vmatpush.bf16.msra.mxu0 0
        %703 = vmatpush.bf16.msra.mxu0 %v681
        %704 = vmatpush.bf16.msra.mxu0 %v680
        %705 = vmatpush.bf16.msra.mxu0 %v679
        %706 = vmatmul.bf16.gmra.mxu0 %v687
        %v707 = vpop.f32.mrf.mxu0
        %v708 = vadd.f32 %v665, %v707
        %v709 = vpop.f32.mrf.mxu0
        %v710 = vadd.f32 %v665, %v709
        %711 = vmatmul.bf16.gmra.mxu0 %v690
        %v712 = vpop.f32.mrf.mxu0
        %v713 = vadd.f32 %v665, %v712
        %v714 = vpop.f32.mrf.mxu0
        %v715 = vadd.f32 %v665, %v714
        %716 = vmatmul.bf16.gmra.mxu0 %v693
        %v717 = vpop.f32.mrf.mxu0
        %v718 = vadd.f32 %v665, %v717
        %v719 = vpop.f32.mrf.mxu0
        %v720 = vadd.f32 %v665, %v719
        %721 = vmatmul.bf16.gmra.mxu0 %v696
        %v722 = vpop.f32.mrf.mxu0
        %v723 = vadd.f32 %v665, %v722
        %v724 = vpop.f32.mrf.mxu0
        %v725 = vadd.f32 %v665, %v724
        %726 = vdwg.mxu0
        %vm727 = vcmask 261120
        %728 = vst.msk [vmem:[#allocation2] sm:$0xff] %vm727, %v708
        %729 = vst.msk [vmem:[#allocation2 + $0x8] sm:$0xff] %vm727, %v710
        %730 = vst.msk [vmem:[#allocation2 + $0x10] sm:$0xff] %vm727, %v713
        %731 = vst.msk [vmem:[#allocation2 + $0x18] sm:$0xff] %vm727, %v715
        %732 = vst.msk [vmem:[#allocation2 + $0x20] sm:$0xff] %vm727, %v718
        %733 = vst.msk [vmem:[#allocation2 + $0x28] sm:$0xff] %vm727, %v720
        %734 = vst.msk [vmem:[#allocation2 + $0x30] sm:$0xff] %vm727, %v723
        %735 = vst.msk [vmem:[#allocation2 + $0x38] sm:$0xff] %vm727, %v725
      $region100: #{_lambda_.2} parent=95 // pred_fallthru
        _
      %v736 = vld [vmem:[#allocation2] sm:$0xff]
      %v737 = vld [vmem:[#allocation2 + $0x8] sm:$0xff]
      %v738 = vld [vmem:[#allocation2 + $0x10] sm:$0xff]
      %v739 = vld [vmem:[#allocation2 + $0x18] sm:$0xff]
      %v740 = vld [vmem:[#allocation2 + $0x20] sm:$0xff]
      %v741 = vld [vmem:[#allocation2 + $0x28] sm:$0xff]
      %v742 = vld [vmem:[#allocation2 + $0x30] sm:$0xff]
      %v743 = vld [vmem:[#allocation2 + $0x38] sm:$0xff]
      %s744 = scalar_lea.vmem %s3, %s35
      %v745 = vld [vmem:[%s744] sm:$0x1]
      %s746 = scalar_lea.vmem %s4, %s35
      %v747 = vld [vmem:[%s746] sm:$0x1]
      %vm748 = vcmask 261120
      %v749 = vsel %vm748, %v736, 0.0
      %750 = vadd.xlane.f32.xlu0 %v749
      %v751 = vpop.xlane.xlu0 %750
      %v752 = vsel %vm748, %v737, 0.0
      %753 = vadd.xlane.f32.xlu0 %v752
      %v754 = vpop.xlane.xlu0 %753
      %v755 = vsel %vm748, %v738, 0.0
      %756 = vadd.xlane.f32.xlu0 %v755
      %v757 = vpop.xlane.xlu0 %756
      %v758 = vsel %vm748, %v739, 0.0
      %759 = vadd.xlane.f32.xlu0 %v758
      %v760 = vpop.xlane.xlu0 %759
      %v761 = vsel %vm748, %v740, 0.0
      %762 = vadd.xlane.f32.xlu0 %v761
      %v763 = vpop.xlane.xlu0 %762
      %v764 = vsel %vm748, %v741, 0.0
      %765 = vadd.xlane.f32.xlu0 %v764
      %v766 = vpop.xlane.xlu0 %765
      %v767 = vsel %vm748, %v742, 0.0
      %768 = vadd.xlane.f32.xlu0 %v767
      %v769 = vpop.xlane.xlu0 %768
      %v770 = vsel %vm748, %v743, 0.0
      %771 = vadd.xlane.f32.xlu0 %v770
      %v772 = vpop.xlane.xlu0 %771
      %v773 = vrcp.pop 32.0
      %v774 = vmul.f32 32.0, %v773
      %v775 = vsub.f32 1.0, %v774
      %v776 = vmul.f32 %v773, %v775
      %v777 = vadd.f32 %v773, %v776
      %vm778 = vweird.f32 %v773
      %v779 = vsel %vm778, %v773, %v777
      %v780 = vmul.f32 %v751, %v779
      %v781 = vmul.f32 %v754, %v779
      %v782 = vmul.f32 %v757, %v779
      %v783 = vmul.f32 %v760, %v779
      %v784 = vmul.f32 %v763, %v779
      %v785 = vmul.f32 %v766, %v779
      %v786 = vmul.f32 %v769, %v779
      %v787 = vmul.f32 %v772, %v779
      %v788 = vsub.f32 %v736, %v780
      %v789 = vsub.f32 %v737, %v781
      %v790 = vsub.f32 %v738, %v782
      %v791 = vsub.f32 %v739, %v783
      %v792 = vsub.f32 %v740, %v784
      %v793 = vsub.f32 %v741, %v785
      %v794 = vsub.f32 %v742, %v786
      %v795 = vsub.f32 %v743, %v787
      %v796 = vmul.f32 %v788, %v788
      %v797 = vmul.f32 %v789, %v789
      %v798 = vmul.f32 %v790, %v790
      %v799 = vmul.f32 %v791, %v791
      %v800 = vmul.f32 %v792, %v792
      %v801 = vmul.f32 %v793, %v793
      %v802 = vmul.f32 %v794, %v794
      %v803 = vmul.f32 %v795, %v795
      %v804 = vsel %vm748, %v796, 0.0
      %805 = vadd.xlane.f32.xlu0 %v804
      %v806 = vpop.xlane.xlu0 %805
      %v807 = vsel %vm748, %v797, 0.0
      %808 = vadd.xlane.f32.xlu0 %v807
      %v809 = vpop.xlane.xlu0 %808
      %v810 = vsel %vm748, %v798, 0.0
      %811 = vadd.xlane.f32.xlu0 %v810
      %v812 = vpop.xlane.xlu0 %811
      %v813 = vsel %vm748, %v799, 0.0
      %814 = vadd.xlane.f32.xlu0 %v813
      %v815 = vpop.xlane.xlu0 %814
      %v816 = vsel %vm748, %v800, 0.0
      %817 = vadd.xlane.f32.xlu0 %v816
      %v818 = vpop.xlane.xlu0 %817
      %v819 = vsel %vm748, %v801, 0.0
      %820 = vadd.xlane.f32.xlu0 %v819
      %v821 = vpop.xlane.xlu0 %820
      %v822 = vsel %vm748, %v802, 0.0
      %823 = vadd.xlane.f32.xlu0 %v822
      %v824 = vpop.xlane.xlu0 %823
      %v825 = vsel %vm748, %v803, 0.0
      %826 = vadd.xlane.f32.xlu0 %v825
      %v827 = vpop.xlane.xlu0 %826
      %v828 = vmul.f32 %v806, %v779
      %v829 = vmul.f32 %v809, %v779
      %v830 = vmul.f32 %v812, %v779
      %v831 = vmul.f32 %v815, %v779
      %v832 = vmul.f32 %v818, %v779
      %v833 = vmul.f32 %v821, %v779
      %v834 = vmul.f32 %v824, %v779
      %v835 = vmul.f32 %v827, %v779
      %v836 = vadd.f32 %v828, 1e-06
      %v837 = vadd.f32 %v829, 1e-06
      %v838 = vadd.f32 %v830, 1e-06
      %v839 = vadd.f32 %v831, 1e-06
      %v840 = vadd.f32 %v832, 1e-06
      %v841 = vadd.f32 %v833, 1e-06
      %v842 = vadd.f32 %v834, 1e-06
      %v843 = vadd.f32 %v835, 1e-06
      %v844 = vrsqrt.pop %v836
      %v845 = vmul.f32 %v844, %v836
      %v846 = vmul.f32 %v845, %v844
      %v847 = vmul.f32 0.5, %v846
      %v848 = vsub.f32 1.5, %v847
      %v849 = vmul.f32 %v844, %v848
      %vm850 = vweird.f32 %v836
      %vm851 = vweird.f32 %v844
      %vm852 = vmor %vm850, %vm851
      %v853 = vsel %vm852, %v844, %v849
      %v854 = vrsqrt.pop %v837
      %v855 = vmul.f32 %v854, %v837
      %v856 = vmul.f32 %v855, %v854
      %v857 = vmul.f32 0.5, %v856
      %v858 = vsub.f32 1.5, %v857
      %v859 = vmul.f32 %v854, %v858
      %vm860 = vweird.f32 %v837
      %vm861 = vweird.f32 %v854
      %vm862 = vmor %vm860, %vm861
      %v863 = vsel %vm862, %v854, %v859
      %v864 = vrsqrt.pop %v838
      %v865 = vmul.f32 %v864, %v838
      %v866 = vmul.f32 %v865, %v864
      %v867 = vmul.f32 0.5, %v866
      %v868 = vsub.f32 1.5, %v867
      %v869 = vmul.f32 %v864, %v868
      %vm870 = vweird.f32 %v838
      %vm871 = vweird.f32 %v864
      %vm872 = vmor %vm870, %vm871
      %v873 = vsel %vm872, %v864, %v869
      %v874 = vrsqrt.pop %v839
      %v875 = vmul.f32 %v874, %v839
      %v876 = vmul.f32 %v875, %v874
      %v877 = vmul.f32 0.5, %v876
      %v878 = vsub.f32 1.5, %v877
      %v879 = vmul.f32 %v874, %v878
      %vm880 = vweird.f32 %v839
      %vm881 = vweird.f32 %v874
      %vm882 = vmor %vm880, %vm881
      %v883 = vsel %vm882, %v874, %v879
      %v884 = vrsqrt.pop %v840
      %v885 = vmul.f32 %v884, %v840
      %v886 = vmul.f32 %v885, %v884
      %v887 = vmul.f32 0.5, %v886
      %v888 = vsub.f32 1.5, %v887
      %v889 = vmul.f32 %v884, %v888
      %vm890 = vweird.f32 %v840
      %vm891 = vweird.f32 %v884
      %vm892 = vmor %vm890, %vm891
      %v893 = vsel %vm892, %v884, %v889
      %v894 = vrsqrt.pop %v841
      %v895 = vmul.f32 %v894, %v841
      %v896 = vmul.f32 %v895, %v894
      %v897 = vmul.f32 0.5, %v896
      %v898 = vsub.f32 1.5, %v897
      %v899 = vmul.f32 %v894, %v898
      %vm900 = vweird.f32 %v841
      %vm901 = vweird.f32 %v894
      %vm902 = vmor %vm900, %vm901
      %v903 = vsel %vm902, %v894, %v899
      %v904 = vrsqrt.pop %v842
      %v905 = vmul.f32 %v904, %v842
      %v906 = vmul.f32 %v905, %v904
      %v907 = vmul.f32 0.5, %v906
      %v908 = vsub.f32 1.5, %v907
      %v909 = vmul.f32 %v904, %v908
      %vm910 = vweird.f32 %v842
      %vm911 = vweird.f32 %v904
      %vm912 = vmor %vm910, %vm911
      %v913 = vsel %vm912, %v904, %v909
      %v914 = vrsqrt.pop %v843
      %v915 = vmul.f32 %v914, %v843
      %v916 = vmul.f32 %v915, %v914
      %v917 = vmul.f32 0.5, %v916
      %v918 = vsub.f32 1.5, %v917
      %v919 = vmul.f32 %v914, %v918
      %vm920 = vweird.f32 %v843
      %vm921 = vweird.f32 %v914
      %vm922 = vmor %vm920, %vm921
      %v923 = vsel %vm922, %v914, %v919
      %v924 = vmul.f32 %v788, %v853
      %v925 = vmul.f32 %v789, %v863
      %v926 = vmul.f32 %v790, %v873
      %v927 = vmul.f32 %v791, %v883
      %v928 = vmul.f32 %v792, %v893
      %v929 = vmul.f32 %v793, %v903
      %v930 = vmul.f32 %v794, %v913
      %v931 = vmul.f32 %v795, %v923
      %v933 = vperm.slane %v745, 0
      %v935 = vmul.f32 %v924, %v933
      %v936 = vmul.f32 %v925, %v933
      %v937 = vmul.f32 %v926, %v933
      %v938 = vmul.f32 %v927, %v933
      %v939 = vmul.f32 %v928, %v933
      %v940 = vmul.f32 %v929, %v933
      %v941 = vmul.f32 %v930, %v933
      %v942 = vmul.f32 %v931, %v933
      %v944 = vperm.slane %v747, 0
      %v946 = vadd.f32 %v935, %v944
      %v947 = vadd.f32 %v936, %v944
      %v948 = vadd.f32 %v937, %v944
      %v949 = vadd.f32 %v938, %v944
      %v950 = vadd.f32 %v939, %v944
      %v951 = vadd.f32 %v940, %v944
      %v952 = vadd.f32 %v941, %v944
      %v953 = vadd.f32 %v942, %v944
      %v954 = vpack.c.bf16 %v947, %v946
      %v955 = vpack.c.bf16 %v949, %v948
      %v956 = vpack.c.bf16 %v951, %v950
      %v957 = vpack.c.bf16 %v953, %v952
      %s958 = smul.u32 %s35, 4
      %s959 = smul.addr %s958, 4
      %s960 = scalar_lea.vmem %s5, %s959
      %v961 = vld [vmem:[%s960] sm:$0xf]
      %v962 = vld [vmem:[%s960 + $0x4] sm:$0xf]
      %v963 = vld [vmem:[%s960 + $0x8] sm:$0xf]
      %v964 = vld [vmem:[%s960 + $0xc] sm:$0xf]
      %s965 = scalar_lea.vmem %s6, %s35
      %v966 = vld [vmem:[%s965] sm:$0x1]
      %v968 = vperm.slane %v966, 0
      %v974 = vunpack.c.l.b16 %v961
      %v975 = vunpack.c.l.b16 %v962
      %v976 = vunpack.c.l.b16 %v963
      %v977 = vunpack.c.l.b16 %v964
      %v978 = vpack.c.b16 %v975, %v974
      %v979 = vpack.c.b16 %v977, %v976
      %v983 = vsel %vm748, %v954, 0
      %v986 = vsel %vm748, %v955, 0
      %v989 = vsel %vm748, %v956, 0
      %v992 = vsel %vm748, %v957, 0
      %994 = vmatpush.bf16.msra.mxu0 0
      %995 = vmatpush.bf16.msra.mxu0 0
      %996 = vmatpush.bf16.msra.mxu0 0
      %997 = vmatpush.bf16.msra.mxu0 0
      %998 = vmatpush.bf16.msra.mxu0 0
      %999 = vmatpush.bf16.msra.mxu0 0
      %1000 = vmatpush.bf16.msra.mxu0 %v979
      %1001 = vmatpush.bf16.msra.mxu0 %v978
      %1002 = vmatmul.bf16.gmra.mxu0 %v983
      %v1003 = vpop.f32.mrf.mxu0
      %v1004 = vadd.f32 %v968, %v1003
      %v1005 = vpop.f32.mrf.mxu0
      %v1006 = vadd.f32 %v968, %v1005
      %1007 = vmatmul.bf16.gmra.mxu0 %v986
      %v1008 = vpop.f32.mrf.mxu0
      %v1009 = vadd.f32 %v968, %v1008
      %v1010 = vpop.f32.mrf.mxu0
      %v1011 = vadd.f32 %v968, %v1010
      %1012 = vmatmul.bf16.gmra.mxu0 %v989
      %v1013 = vpop.f32.mrf.mxu0
      %v1014 = vadd.f32 %v968, %v1013
      %v1015 = vpop.f32.mrf.mxu0
      %v1016 = vadd.f32 %v968, %v1015
      %1017 = vmatmul.bf16.gmra.mxu0 %v992
      %v1018 = vpop.f32.mrf.mxu0
      %v1019 = vadd.f32 %v968, %v1018
      %v1020 = vpop.f32.mrf.mxu0
      %v1021 = vadd.f32 %v968, %v1020
      %1022 = vdwg.mxu0
      %s1023 = scalar_lea.vmem %s8, %s35
      %v1024 = vld [vmem:[%s1023] sm:$0x1]
      %v1026 = vperm.slane %v1024, 0
      %v1028 = vadd.f32 %v736, %v1026
      %v1029 = vadd.f32 %v737, %v1026
      %v1030 = vadd.f32 %v738, %v1026
      %v1031 = vadd.f32 %v739, %v1026
      %v1032 = vadd.f32 %v740, %v1026
      %v1033 = vadd.f32 %v741, %v1026
      %v1034 = vadd.f32 %v742, %v1026
      %v1035 = vadd.f32 %v743, %v1026
      %v1036 = vpack.c.bf16 %v1006, %v1004
      %v1037 = vpack.c.bf16 %v1011, %v1009
      %v1038 = vpack.c.bf16 %v1016, %v1014
      %v1039 = vpack.c.bf16 %v1021, %v1019
      %1044 = vrot.lane.b32.xlu0 %v1036, 96
      %v1045 = vpop.permute.xlu0 %1044
      %1046 = vrot.lane.b32.xlu0 %v1037, 96
      %v1047 = vpop.permute.xlu0 %1046
      %1048 = vrot.lane.b32.xlu0 %v1038, 96
      %v1049 = vpop.permute.xlu0 %1048
      %1050 = vrot.lane.b32.xlu0 %v1039, 96
      %v1051 = vpop.permute.xlu0 %1050
      %vm1052 = vcmask 64512
      %v1054 = vsel %vm1052, %v1036, 0
      %v1057 = vsel %vm1052, %v1037, 0
      %v1060 = vsel %vm1052, %v1038, 0
      %v1063 = vsel %vm1052, %v1039, 0
      %v1066 = vsel %vm1052, %v1045, 0
      %v1069 = vsel %vm1052, %v1047, 0
      %v1072 = vsel %vm1052, %v1049, 0
      %v1075 = vsel %vm1052, %v1051, 0
      %1077 = vmatpush.bf16.xpose.msra.mxu0 0
      %1078 = vmatpush.bf16.xpose.msra.mxu0 0
      %1079 = vmatpush.bf16.xpose.msra.mxu0 0
      %1080 = vmatpush.bf16.xpose.msra.mxu0 0
      %1081 = vmatpush.bf16.xpose.msra.mxu0 %v1075
      %1082 = vmatpush.bf16.xpose.msra.mxu0 %v1072
      %1083 = vmatpush.bf16.xpose.msra.mxu0 %v1069
      %1084 = vmatpush.bf16.xpose.msra.mxu0 %v1066
      %1085 = vmatmul.bf16.gmra.mxu0 %v1054
      %v1086 = vpop.f32.mrf.mxu0
      %v1087 = vadd.f32 0.0, %v1086
      %v1088 = vpop.f32.mrf.mxu0
      %v1089 = vadd.f32 0.0, %v1088
      %1090 = vmatmul.bf16.gmra.mxu0 %v1057
      %v1091 = vpop.f32.mrf.mxu0
      %v1092 = vadd.f32 0.0, %v1091
      %v1093 = vpop.f32.mrf.mxu0
      %v1094 = vadd.f32 0.0, %v1093
      %1095 = vmatmul.bf16.gmra.mxu0 %v1060
      %v1096 = vpop.f32.mrf.mxu0
      %v1097 = vadd.f32 0.0, %v1096
      %v1098 = vpop.f32.mrf.mxu0
      %v1099 = vadd.f32 0.0, %v1098
      %1100 = vmatmul.bf16.gmra.mxu0 %v1063
      %v1101 = vpop.f32.mrf.mxu0
      %v1102 = vadd.f32 0.0, %v1101
      %v1103 = vpop.f32.mrf.mxu0
      %v1104 = vadd.f32 0.0, %v1103
      %1105 = vdwg.mxu0
      %vm1106 = vcmask 523264
      %v1107 = vsel %vm1106, %v1087, -inf
      %1108 = vmax.xlane.f32.xlu0 %v1107
      %v1109 = vpop.xlane.xlu0 %1108
      %v1110 = vsel %vm1106, %v1089, -inf
      %1111 = vmax.xlane.f32.xlu0 %v1110
      %v1112 = vpop.xlane.xlu0 %1111
      %v1113 = vsel %vm1106, %v1092, -inf
      %1114 = vmax.xlane.f32.xlu0 %v1113
      %v1115 = vpop.xlane.xlu0 %1114
      %v1116 = vsel %vm1106, %v1094, -inf
      %1117 = vmax.xlane.f32.xlu0 %v1116
      %v1118 = vpop.xlane.xlu0 %1117
      %v1119 = vsel %vm1106, %v1097, -inf
      %1120 = vmax.xlane.f32.xlu0 %v1119
      %v1121 = vpop.xlane.xlu0 %1120
      %v1122 = vsel %vm1106, %v1099, -inf
      %1123 = vmax.xlane.f32.xlu0 %v1122
      %v1124 = vpop.xlane.xlu0 %1123
      %v1125 = vsel %vm1106, %v1102, -inf
      %1126 = vmax.xlane.f32.xlu0 %v1125
      %v1127 = vpop.xlane.xlu0 %1126
      %v1128 = vsel %vm1106, %v1104, -inf
      %1129 = vmax.xlane.f32.xlu0 %v1128
      %v1130 = vpop.xlane.xlu0 %1129
      %v1131 = vsub.f32 %v1087, %v1109
      %v1132 = vsub.f32 %v1089, %v1112
      %v1133 = vsub.f32 %v1092, %v1115
      %v1134 = vsub.f32 %v1094, %v1118
      %v1135 = vsub.f32 %v1097, %v1121
      %v1136 = vsub.f32 %v1099, %v1124
      %v1137 = vsub.f32 %v1102, %v1127
      %v1138 = vsub.f32 %v1104, %v1130
      %v1139 = vmul.f32 %v1131, 1.442695
      %v1140 = vpow.pop %v1139
      %v1141 = vmul.f32 %v1132, 1.442695
      %v1142 = vpow.pop %v1141
      %v1143 = vmul.f32 %v1133, 1.442695
      %v1144 = vpow.pop %v1143
      %v1145 = vmul.f32 %v1134, 1.442695
      %v1146 = vpow.pop %v1145
      %v1147 = vmul.f32 %v1135, 1.442695
      %v1148 = vpow.pop %v1147
      %v1149 = vmul.f32 %v1136, 1.442695
      %v1150 = vpow.pop %v1149
      %v1151 = vmul.f32 %v1137, 1.442695
      %v1152 = vpow.pop %v1151
      %v1153 = vmul.f32 %v1138, 1.442695
      %v1154 = vpow.pop %v1153
      %v1155 = vsel %vm1106, %v1140, 0.0
      %1156 = vadd.xlane.f32.xlu0 %v1155
      %v1157 = vpop.xlane.xlu0 %1156
      %v1158 = vsel %vm1106, %v1142, 0.0
      %1159 = vadd.xlane.f32.xlu0 %v1158
      %v1160 = vpop.xlane.xlu0 %1159
      %v1161 = vsel %vm1106, %v1144, 0.0
      %1162 = vadd.xlane.f32.xlu0 %v1161
      %v1163 = vpop.xlane.xlu0 %1162
      %v1164 = vsel %vm1106, %v1146, 0.0
      %1165 = vadd.xlane.f32.xlu0 %v1164
      %v1166 = vpop.xlane.xlu0 %1165
      %v1167 = vsel %vm1106, %v1148, 0.0
      %1168 = vadd.xlane.f32.xlu0 %v1167
      %v1169 = vpop.xlane.xlu0 %1168
      %v1170 = vsel %vm1106, %v1150, 0.0
      %1171 = vadd.xlane.f32.xlu0 %v1170
      %v1172 = vpop.xlane.xlu0 %1171
      %v1173 = vsel %vm1106, %v1152, 0.0
      %1174 = vadd.xlane.f32.xlu0 %v1173
      %v1175 = vpop.xlane.xlu0 %1174
      %v1176 = vsel %vm1106, %v1154, 0.0
      %1177 = vadd.xlane.f32.xlu0 %v1176
      %v1178 = vpop.xlane.xlu0 %1177
      %v1179 = vrcp.pop %v1157
      %v1180 = vrcp.pop %v1160
      %v1181 = vrcp.pop %v1163
      %v1182 = vrcp.pop %v1166
      %v1183 = vrcp.pop %v1169
      %v1184 = vrcp.pop %v1172
      %v1185 = vrcp.pop %v1175
      %v1186 = vrcp.pop %v1178
      %v1187 = vmul.f32 %v1140, %v1179
      %v1188 = vmul.f32 %v1142, %v1180
      %v1189 = vmul.f32 %v1144, %v1181
      %v1190 = vmul.f32 %v1146, %v1182
      %v1191 = vmul.f32 %v1148, %v1183
      %v1192 = vmul.f32 %v1150, %v1184
      %v1193 = vmul.f32 %v1152, %v1185
      %v1194 = vmul.f32 %v1154, %v1186
      %v1195 = vpack.c.bf16 %v1188, %v1187
      %v1196 = vpack.c.bf16 %v1190, %v1189
      %v1197 = vpack.c.bf16 %v1192, %v1191
      %v1198 = vpack.c.bf16 %v1194, %v1193
      %1199 = vrot.lane.b32.xlu0 %v1036, 64
      %v1200 = vpop.permute.xlu0 %1199
      %1201 = vrot.lane.b32.xlu0 %v1037, 64
      %v1202 = vpop.permute.xlu0 %1201
      %1203 = vrot.lane.b32.xlu0 %v1038, 64
      %v1204 = vpop.permute.xlu0 %1203
      %1205 = vrot.lane.b32.xlu0 %v1039, 64
      %v1206 = vpop.permute.xlu0 %1205
      %v1212 = vsel %vm1106, %v1195, 0
      %v1215 = vsel %vm1106, %v1196, 0
      %v1218 = vsel %vm1106, %v1197, 0
      %v1221 = vsel %vm1106, %v1198, 0
      %1223 = vmatpush.bf16.msra.mxu0 0
      %1224 = vmatpush.bf16.msra.mxu0 0
      %1225 = vmatpush.bf16.msra.mxu0 0
      %1226 = vmatpush.bf16.msra.mxu0 0
      %1227 = vmatpush.bf16.msra.mxu0 %v1206
      %1228 = vmatpush.bf16.msra.mxu0 %v1204
      %1229 = vmatpush.bf16.msra.mxu0 %v1202
      %1230 = vmatpush.bf16.msra.mxu0 %v1200
      %1231 = vmatmul.bf16.gmra.mxu0 %v1212
      %v1232 = vpop.f32.mrf.mxu0
      %v1233 = vadd.f32 0.0, %v1232
      %v1234 = vpop.f32.mrf.mxu0
      %v1235 = vadd.f32 0.0, %v1234
      %1236 = vmatmul.bf16.gmra.mxu0 %v1215
      %v1237 = vpop.f32.mrf.mxu0
      %v1238 = vadd.f32 0.0, %v1237
      %v1239 = vpop.f32.mrf.mxu0
      %v1240 = vadd.f32 0.0, %v1239
      %1241 = vmatmul.bf16.gmra.mxu0 %v1218
      %v1242 = vpop.f32.mrf.mxu0
      %v1243 = vadd.f32 0.0, %v1242
      %v1244 = vpop.f32.mrf.mxu0
      %v1245 = vadd.f32 0.0, %v1244
      %1246 = vmatmul.bf16.gmra.mxu0 %v1221
      %v1247 = vpop.f32.mrf.mxu0
      %v1248 = vadd.f32 0.0, %v1247
      %v1249 = vpop.f32.mrf.mxu0
      %v1250 = vadd.f32 0.0, %v1249
      %1251 = vdwg.mxu0
      %v1252 = vpack.c.bf16 %v1235, %v1233
      %v1253 = vpack.c.bf16 %v1240, %v1238
      %v1254 = vpack.c.bf16 %v1245, %v1243
      %v1255 = vpack.c.bf16 %v1250, %v1248
      %s1256 = smul.addr %s958, 4
      %s1257 = scalar_lea.vmem %s7, %s1256
      %v1258 = vld [vmem:[%s1257] sm:$0xf]
      %v1260 = vsel %vm1052, %v1252, 0
      %v1263 = vsel %vm1052, %v1253, 0
      %v1266 = vsel %vm1052, %v1254, 0
      %v1269 = vsel %vm1052, %v1255, 0
      %vm1271 = vcmask 1043456
      %v1273 = vsel %vm1271, %v1258, 0
      %1275 = vmatpush.bf16.msra.mxu0 0
      %1276 = vmatpush.bf16.msra.mxu0 0
      %1277 = vmatpush.bf16.msra.mxu0 0
      %1278 = vmatpush.bf16.msra.mxu0 0
      %1279 = vmatpush.bf16.msra.mxu0 0
      %1280 = vmatpush.bf16.msra.mxu0 0
      %1281 = vmatpush.bf16.msra.mxu0 0
      %1282 = vmatpush.bf16.msra.mxu0 %v1273
      %1283 = vmatmul.bf16.gmra.mxu0 %v1260
      %v1284 = vpop.f32.mrf.mxu0
      %v1285 = vadd.f32 0.0, %v1284
      %v1286 = vpop.f32.mrf.mxu0
      %v1287 = vadd.f32 0.0, %v1286
      %1288 = vmatmul.bf16.gmra.mxu0 %v1263
      %v1289 = vpop.f32.mrf.mxu0
      %v1290 = vadd.f32 0.0, %v1289
      %v1291 = vpop.f32.mrf.mxu0
      %v1292 = vadd.f32 0.0, %v1291
      %1293 = vmatmul.bf16.gmra.mxu0 %v1266
      %v1294 = vpop.f32.mrf.mxu0
      %v1295 = vadd.f32 0.0, %v1294
      %v1296 = vpop.f32.mrf.mxu0
      %v1297 = vadd.f32 0.0, %v1296
      %1298 = vmatmul.bf16.gmra.mxu0 %v1269
      %v1299 = vpop.f32.mrf.mxu0
      %v1300 = vadd.f32 0.0, %v1299
      %v1301 = vpop.f32.mrf.mxu0
      %v1302 = vadd.f32 0.0, %v1301
      %1303 = vdwg.mxu0
      %v1304 = vadd.f32 %v1028, %v1285
      %v1305 = vadd.f32 %v1029, %v1287
      %v1306 = vadd.f32 %v1030, %v1290
      %v1307 = vadd.f32 %v1031, %v1292
      %v1308 = vadd.f32 %v1032, %v1295
      %v1309 = vadd.f32 %v1033, %v1297
      %v1310 = vadd.f32 %v1034, %v1300
      %v1311 = vadd.f32 %v1035, %v1302
      %1312 = vrot.lane.b32.xlu0 %v1036, 120
      %v1313 = vpop.permute.xlu0 %1312
      %1314 = vrot.lane.b32.xlu0 %v1037, 120
      %v1315 = vpop.permute.xlu0 %1314
      %1316 = vrot.lane.b32.xlu0 %v1038, 120
      %v1317 = vpop.permute.xlu0 %1316
      %1318 = vrot.lane.b32.xlu0 %v1039, 120
      %v1319 = vpop.permute.xlu0 %1318
      %1320 = vrot.lane.b32.xlu0 %v1036, 88
      %v1321 = vpop.permute.xlu0 %1320
      %1322 = vrot.lane.b32.xlu0 %v1037, 88
      %v1323 = vpop.permute.xlu0 %1322
      %1324 = vrot.lane.b32.xlu0 %v1038, 88
      %v1325 = vpop.permute.xlu0 %1324
      %1326 = vrot.lane.b32.xlu0 %v1039, 88
      %v1327 = vpop.permute.xlu0 %1326
      %v1329 = vsel %vm1052, %v1313, 0
      %v1332 = vsel %vm1052, %v1315, 0
      %v1335 = vsel %vm1052, %v1317, 0
      %v1338 = vsel %vm1052, %v1319, 0
      %v1341 = vsel %vm1052, %v1321, 0
      %v1344 = vsel %vm1052, %v1323, 0
      %v1347 = vsel %vm1052, %v1325, 0
      %v1350 = vsel %vm1052, %v1327, 0
      %1352 = vmatpush.bf16.xpose.msra.mxu0 0
      %1353 = vmatpush.bf16.xpose.msra.mxu0 0
      %1354 = vmatpush.bf16.xpose.msra.mxu0 0
      %1355 = vmatpush.bf16.xpose.msra.mxu0 0
      %1356 = vmatpush.bf16.xpose.msra.mxu0 %v1350
      %1357 = vmatpush.bf16.xpose.msra.mxu0 %v1347
      %1358 = vmatpush.bf16.xpose.msra.mxu0 %v1344
      %1359 = vmatpush.bf16.xpose.msra.mxu0 %v1341
      %1360 = vmatmul.bf16.gmra.mxu0 %v1329
      %v1361 = vpop.f32.mrf.mxu0
      %v1362 = vadd.f32 0.0, %v1361
      %v1363 = vpop.f32.mrf.mxu0
      %v1364 = vadd.f32 0.0, %v1363
      %1365 = vmatmul.bf16.gmra.mxu0 %v1332
      %v1366 = vpop.f32.mrf.mxu0
      %v1367 = vadd.f32 0.0, %v1366
      %v1368 = vpop.f32.mrf.mxu0
      %v1369 = vadd.f32 0.0, %v1368
      %1370 = vmatmul.bf16.gmra.mxu0 %v1335
      %v1371 = vpop.f32.mrf.mxu0
      %v1372 = vadd.f32 0.0, %v1371
      %v1373 = vpop.f32.mrf.mxu0
      %v1374 = vadd.f32 0.0, %v1373
      %1375 = vmatmul.bf16.gmra.mxu0 %v1338
      %v1376 = vpop.f32.mrf.mxu0
      %v1377 = vadd.f32 0.0, %v1376
      %v1378 = vpop.f32.mrf.mxu0
      %v1379 = vadd.f32 0.0, %v1378
      %1380 = vdwg.mxu0
      %v1381 = vsel %vm1106, %v1362, -inf
      %1382 = vmax.xlane.f32.xlu0 %v1381
      %v1383 = vpop.xlane.xlu0 %1382
      %v1384 = vsel %vm1106, %v1364, -inf
      %1385 = vmax.xlane.f32.xlu0 %v1384
      %v1386 = vpop.xlane.xlu0 %1385
      %v1387 = vsel %vm1106, %v1367, -inf
      %1388 = vmax.xlane.f32.xlu0 %v1387
      %v1389 = vpop.xlane.xlu0 %1388
      %v1390 = vsel %vm1106, %v1369, -inf
      %1391 = vmax.xlane.f32.xlu0 %v1390
      %v1392 = vpop.xlane.xlu0 %1391
      %v1393 = vsel %vm1106, %v1372, -inf
      %1394 = vmax.xlane.f32.xlu0 %v1393
      %v1395 = vpop.xlane.xlu0 %1394
      %v1396 = vsel %vm1106, %v1374, -inf
      %1397 = vmax.xlane.f32.xlu0 %v1396
      %v1398 = vpop.xlane.xlu0 %1397
      %v1399 = vsel %vm1106, %v1377, -inf
      %1400 = vmax.xlane.f32.xlu0 %v1399
      %v1401 = vpop.xlane.xlu0 %1400
      %v1402 = vsel %vm1106, %v1379, -inf
      %1403 = vmax.xlane.f32.xlu0 %v1402
      %v1404 = vpop.xlane.xlu0 %1403
      %v1405 = vsub.f32 %v1362, %v1383
      %v1406 = vsub.f32 %v1364, %v1386
      %v1407 = vsub.f32 %v1367, %v1389
      %v1408 = vsub.f32 %v1369, %v1392
      %v1409 = vsub.f32 %v1372, %v1395
      %v1410 = vsub.f32 %v1374, %v1398
      %v1411 = vsub.f32 %v1377, %v1401
      %v1412 = vsub.f32 %v1379, %v1404
      %v1413 = vmul.f32 %v1405, 1.442695
      %v1414 = vpow.pop %v1413
      %v1415 = vmul.f32 %v1406, 1.442695
      %v1416 = vpow.pop %v1415
      %v1417 = vmul.f32 %v1407, 1.442695
      %v1418 = vpow.pop %v1417
      %v1419 = vmul.f32 %v1408, 1.442695
      %v1420 = vpow.pop %v1419
      %v1421 = vmul.f32 %v1409, 1.442695
      %v1422 = vpow.pop %v1421
      %v1423 = vmul.f32 %v1410, 1.442695
      %v1424 = vpow.pop %v1423
      %v1425 = vmul.f32 %v1411, 1.442695
      %v1426 = vpow.pop %v1425
      %v1427 = vmul.f32 %v1412, 1.442695
      %v1428 = vpow.pop %v1427
      %v1429 = vsel %vm1106, %v1414, 0.0
      %1430 = vadd.xlane.f32.xlu0 %v1429
      %v1431 = vpop.xlane.xlu0 %1430
      %v1432 = vsel %vm1106, %v1416, 0.0
      %1433 = vadd.xlane.f32.xlu0 %v1432
      %v1434 = vpop.xlane.xlu0 %1433
      %v1435 = vsel %vm1106, %v1418, 0.0
      %1436 = vadd.xlane.f32.xlu0 %v1435
      %v1437 = vpop.xlane.xlu0 %1436
      %v1438 = vsel %vm1106, %v1420, 0.0
      %1439 = vadd.xlane.f32.xlu0 %v1438
      %v1440 = vpop.xlane.xlu0 %1439
      %v1441 = vsel %vm1106, %v1422, 0.0
      %1442 = vadd.xlane.f32.xlu0 %v1441
      %v1443 = vpop.xlane.xlu0 %1442
      %v1444 = vsel %vm1106, %v1424, 0.0
      %1445 = vadd.xlane.f32.xlu0 %v1444
      %v1446 = vpop.xlane.xlu0 %1445
      %v1447 = vsel %vm1106, %v1426, 0.0
      %1448 = vadd.xlane.f32.xlu0 %v1447
      %v1449 = vpop.xlane.xlu0 %1448
      %v1450 = vsel %vm1106, %v1428, 0.0
      %1451 = vadd.xlane.f32.xlu0 %v1450
      %v1452 = vpop.xlane.xlu0 %1451
      %v1453 = vrcp.pop %v1431
      %v1454 = vrcp.pop %v1434
      %v1455 = vrcp.pop %v1437
      %v1456 = vrcp.pop %v1440
      %v1457 = vrcp.pop %v1443
      %v1458 = vrcp.pop %v1446
      %v1459 = vrcp.pop %v1449
      %v1460 = vrcp.pop %v1452
      %v1461 = vmul.f32 %v1414, %v1453
      %v1462 = vmul.f32 %v1416, %v1454
      %v1463 = vmul.f32 %v1418, %v1455
      %v1464 = vmul.f32 %v1420, %v1456
      %v1465 = vmul.f32 %v1422, %v1457
      %v1466 = vmul.f32 %v1424, %v1458
      %v1467 = vmul.f32 %v1426, %v1459
      %v1468 = vmul.f32 %v1428, %v1460
      %v1469 = vpack.c.bf16 %v1462, %v1461
      %v1470 = vpack.c.bf16 %v1464, %v1463
      %v1471 = vpack.c.bf16 %v1466, %v1465
      %v1472 = vpack.c.bf16 %v1468, %v1467
      %1473 = vrot.lane.b32.xlu0 %v1036, 56
      %v1474 = vpop.permute.xlu0 %1473
      %1475 = vrot.lane.b32.xlu0 %v1037, 56
      %v1476 = vpop.permute.xlu0 %1475
      %1477 = vrot.lane.b32.xlu0 %v1038, 56
      %v1478 = vpop.permute.xlu0 %1477
      %1479 = vrot.lane.b32.xlu0 %v1039, 56
      %v1480 = vpop.permute.xlu0 %1479
      %v1486 = vsel %vm1106, %v1469, 0
      %v1489 = vsel %vm1106, %v1470, 0
      %v1492 = vsel %vm1106, %v1471, 0
      %v1495 = vsel %vm1106, %v1472, 0
      %1497 = vmatpush.bf16.msra.mxu0 0
      %1498 = vmatpush.bf16.msra.mxu0 0
      %1499 = vmatpush.bf16.msra.mxu0 0
      %1500 = vmatpush.bf16.msra.mxu0 0
      %1501 = vmatpush.bf16.msra.mxu0 %v1480
      %1502 = vmatpush.bf16.msra.mxu0 %v1478
      %1503 = vmatpush.bf16.msra.mxu0 %v1476
      %1504 = vmatpush.bf16.msra.mxu0 %v1474
      %1505 = vmatmul.bf16.gmra.mxu0 %v1486
      %v1506 = vpop.f32.mrf.mxu0
      %v1507 = vadd.f32 0.0, %v1506
      %v1508 = vpop.f32.mrf.mxu0
      %v1509 = vadd.f32 0.0, %v1508
      %1510 = vmatmul.bf16.gmra.mxu0 %v1489
      %v1511 = vpop.f32.mrf.mxu0
      %v1512 = vadd.f32 0.0, %v1511
      %v1513 = vpop.f32.mrf.mxu0
      %v1514 = vadd.f32 0.0, %v1513
      %1515 = vmatmul.bf16.gmra.mxu0 %v1492
      %v1516 = vpop.f32.mrf.mxu0
      %v1517 = vadd.f32 0.0, %v1516
      %v1518 = vpop.f32.mrf.mxu0
      %v1519 = vadd.f32 0.0, %v1518
      %1520 = vmatmul.bf16.gmra.mxu0 %v1495
      %v1521 = vpop.f32.mrf.mxu0
      %v1522 = vadd.f32 0.0, %v1521
      %v1523 = vpop.f32.mrf.mxu0
      %v1524 = vadd.f32 0.0, %v1523
      %1525 = vdwg.mxu0
      %v1526 = vpack.c.bf16 %v1509, %v1507
      %v1527 = vpack.c.bf16 %v1514, %v1512
      %v1528 = vpack.c.bf16 %v1519, %v1517
      %v1529 = vpack.c.bf16 %v1524, %v1522
      %s1530 = sadd.s32 %s958, 1
      %s1531 = smul.addr %s1530, 4
      %s1532 = scalar_lea.vmem %s7, %s1531
      %v1533 = vld [vmem:[%s1532] sm:$0xf]
      %v1535 = vsel %vm1052, %v1526, 0
      %v1538 = vsel %vm1052, %v1527, 0
      %v1541 = vsel %vm1052, %v1528, 0
      %v1544 = vsel %vm1052, %v1529, 0
      %v1547 = vsel %vm1271, %v1533, 0
      %1549 = vmatpush.bf16.msra.mxu0 0
      %1550 = vmatpush.bf16.msra.mxu0 0
      %1551 = vmatpush.bf16.msra.mxu0 0
      %1552 = vmatpush.bf16.msra.mxu0 0
      %1553 = vmatpush.bf16.msra.mxu0 0
      %1554 = vmatpush.bf16.msra.mxu0 0
      %1555 = vmatpush.bf16.msra.mxu0 0
      %1556 = vmatpush.bf16.msra.mxu0 %v1547
      %1557 = vmatmul.bf16.gmra.mxu0 %v1535
      %v1558 = vpop.f32.mrf.mxu0
      %v1559 = vadd.f32 0.0, %v1558
      %v1560 = vpop.f32.mrf.mxu0
      %v1561 = vadd.f32 0.0, %v1560
      %1562 = vmatmul.bf16.gmra.mxu0 %v1538
      %v1563 = vpop.f32.mrf.mxu0
      %v1564 = vadd.f32 0.0, %v1563
      %v1565 = vpop.f32.mrf.mxu0
      %v1566 = vadd.f32 0.0, %v1565
      %1567 = vmatmul.bf16.gmra.mxu0 %v1541
      %v1568 = vpop.f32.mrf.mxu0
      %v1569 = vadd.f32 0.0, %v1568
      %v1570 = vpop.f32.mrf.mxu0
      %v1571 = vadd.f32 0.0, %v1570
      %1572 = vmatmul.bf16.gmra.mxu0 %v1544
      %v1573 = vpop.f32.mrf.mxu0
      %v1574 = vadd.f32 0.0, %v1573
      %v1575 = vpop.f32.mrf.mxu0
      %v1576 = vadd.f32 0.0, %v1575
      %1577 = vdwg.mxu0
      %v1578 = vadd.f32 %v1304, %v1559
      %v1579 = vadd.f32 %v1305, %v1561
      %v1580 = vadd.f32 %v1306, %v1564
      %v1581 = vadd.f32 %v1307, %v1566
      %v1582 = vadd.f32 %v1308, %v1569
      %v1583 = vadd.f32 %v1309, %v1571
      %v1584 = vadd.f32 %v1310, %v1574
      %v1585 = vadd.f32 %v1311, %v1576
      %1586 = vrot.lane.b32.xlu0 %v1036, 112
      %v1587 = vpop.permute.xlu0 %1586
      %1588 = vrot.lane.b32.xlu0 %v1037, 112
      %v1589 = vpop.permute.xlu0 %1588
      %1590 = vrot.lane.b32.xlu0 %v1038, 112
      %v1591 = vpop.permute.xlu0 %1590
      %1592 = vrot.lane.b32.xlu0 %v1039, 112
      %v1593 = vpop.permute.xlu0 %1592
      %1594 = vrot.lane.b32.xlu0 %v1036, 80
      %v1595 = vpop.permute.xlu0 %1594
      %1596 = vrot.lane.b32.xlu0 %v1037, 80
      %v1597 = vpop.permute.xlu0 %1596
      %1598 = vrot.lane.b32.xlu0 %v1038, 80
      %v1599 = vpop.permute.xlu0 %1598
      %1600 = vrot.lane.b32.xlu0 %v1039, 80
      %v1601 = vpop.permute.xlu0 %1600
      %v1603 = vsel %vm1052, %v1587, 0
      %v1606 = vsel %vm1052, %v1589, 0
      %v1609 = vsel %vm1052, %v1591, 0
      %v1612 = vsel %vm1052, %v1593, 0
      %v1615 = vsel %vm1052, %v1595, 0
      %v1618 = vsel %vm1052, %v1597, 0
      %v1621 = vsel %vm1052, %v1599, 0
      %v1624 = vsel %vm1052, %v1601, 0
      %1626 = vmatpush.bf16.xpose.msra.mxu0 0
      %1627 = vmatpush.bf16.xpose.msra.mxu0 0
      %1628 = vmatpush.bf16.xpose.msra.mxu0 0
      %1629 = vmatpush.bf16.xpose.msra.mxu0 0
      %1630 = vmatpush.bf16.xpose.msra.mxu0 %v1624
      %1631 = vmatpush.bf16.xpose.msra.mxu0 %v1621
      %1632 = vmatpush.bf16.xpose.msra.mxu0 %v1618
      %1633 = vmatpush.bf16.xpose.msra.mxu0 %v1615
      %1634 = vmatmul.bf16.gmra.mxu0 %v1603
      %v1635 = vpop.f32.mrf.mxu0
      %v1636 = vadd.f32 0.0, %v1635
      %v1637 = vpop.f32.mrf.mxu0
      %v1638 = vadd.f32 0.0, %v1637
      %1639 = vmatmul.bf16.gmra.mxu0 %v1606
      %v1640 = vpop.f32.mrf.mxu0
      %v1641 = vadd.f32 0.0, %v1640
      %v1642 = vpop.f32.mrf.mxu0
      %v1643 = vadd.f32 0.0, %v1642
      %1644 = vmatmul.bf16.gmra.mxu0 %v1609
      %v1645 = vpop.f32.mrf.mxu0
      %v1646 = vadd.f32 0.0, %v1645
      %v1647 = vpop.f32.mrf.mxu0
      %v1648 = vadd.f32 0.0, %v1647
      %1649 = vmatmul.bf16.gmra.mxu0 %v1612
      %v1650 = vpop.f32.mrf.mxu0
      %v1651 = vadd.f32 0.0, %v1650
      %v1652 = vpop.f32.mrf.mxu0
      %v1653 = vadd.f32 0.0, %v1652
      %1654 = vdwg.mxu0
      %v1655 = vsel %vm1106, %v1636, -inf
      %1656 = vmax.xlane.f32.xlu0 %v1655
      %v1657 = vpop.xlane.xlu0 %1656
      %v1658 = vsel %vm1106, %v1638, -inf
      %1659 = vmax.xlane.f32.xlu0 %v1658
      %v1660 = vpop.xlane.xlu0 %1659
      %v1661 = vsel %vm1106, %v1641, -inf
      %1662 = vmax.xlane.f32.xlu0 %v1661
      %v1663 = vpop.xlane.xlu0 %1662
      %v1664 = vsel %vm1106, %v1643, -inf
      %1665 = vmax.xlane.f32.xlu0 %v1664
      %v1666 = vpop.xlane.xlu0 %1665
      %v1667 = vsel %vm1106, %v1646, -inf
      %1668 = vmax.xlane.f32.xlu0 %v1667
      %v1669 = vpop.xlane.xlu0 %1668
      %v1670 = vsel %vm1106, %v1648, -inf
      %1671 = vmax.xlane.f32.xlu0 %v1670
      %v1672 = vpop.xlane.xlu0 %1671
      %v1673 = vsel %vm1106, %v1651, -inf
      %1674 = vmax.xlane.f32.xlu0 %v1673
      %v1675 = vpop.xlane.xlu0 %1674
      %v1676 = vsel %vm1106, %v1653, -inf
      %1677 = vmax.xlane.f32.xlu0 %v1676
      %v1678 = vpop.xlane.xlu0 %1677
      %v1679 = vsub.f32 %v1636, %v1657
      %v1680 = vsub.f32 %v1638, %v1660
      %v1681 = vsub.f32 %v1641, %v1663
      %v1682 = vsub.f32 %v1643, %v1666
      %v1683 = vsub.f32 %v1646, %v1669
      %v1684 = vsub.f32 %v1648, %v1672
      %v1685 = vsub.f32 %v1651, %v1675
      %v1686 = vsub.f32 %v1653, %v1678
      %v1687 = vmul.f32 %v1679, 1.442695
      %v1688 = vpow.pop %v1687
      %v1689 = vmul.f32 %v1680, 1.442695
      %v1690 = vpow.pop %v1689
      %v1691 = vmul.f32 %v1681, 1.442695
      %v1692 = vpow.pop %v1691
      %v1693 = vmul.f32 %v1682, 1.442695
      %v1694 = vpow.pop %v1693
      %v1695 = vmul.f32 %v1683, 1.442695
      %v1696 = vpow.pop %v1695
      %v1697 = vmul.f32 %v1684, 1.442695
      %v1698 = vpow.pop %v1697
      %v1699 = vmul.f32 %v1685, 1.442695
      %v1700 = vpow.pop %v1699
      %v1701 = vmul.f32 %v1686, 1.442695
      %v1702 = vpow.pop %v1701
      %v1703 = vsel %vm1106, %v1688, 0.0
      %1704 = vadd.xlane.f32.xlu0 %v1703
      %v1705 = vpop.xlane.xlu0 %1704
      %v1706 = vsel %vm1106, %v1690, 0.0
      %1707 = vadd.xlane.f32.xlu0 %v1706
      %v1708 = vpop.xlane.xlu0 %1707
      %v1709 = vsel %vm1106, %v1692, 0.0
      %1710 = vadd.xlane.f32.xlu0 %v1709
      %v1711 = vpop.xlane.xlu0 %1710
      %v1712 = vsel %vm1106, %v1694, 0.0
      %1713 = vadd.xlane.f32.xlu0 %v1712
      %v1714 = vpop.xlane.xlu0 %1713
      %v1715 = vsel %vm1106, %v1696, 0.0
      %1716 = vadd.xlane.f32.xlu0 %v1715
      %v1717 = vpop.xlane.xlu0 %1716
      %v1718 = vsel %vm1106, %v1698, 0.0
      %1719 = vadd.xlane.f32.xlu0 %v1718
      %v1720 = vpop.xlane.xlu0 %1719
      %v1721 = vsel %vm1106, %v1700, 0.0
      %1722 = vadd.xlane.f32.xlu0 %v1721
      %v1723 = vpop.xlane.xlu0 %1722
      %v1724 = vsel %vm1106, %v1702, 0.0
      %1725 = vadd.xlane.f32.xlu0 %v1724
      %v1726 = vpop.xlane.xlu0 %1725
      %v1727 = vrcp.pop %v1705
      %v1728 = vrcp.pop %v1708
      %v1729 = vrcp.pop %v1711
      %v1730 = vrcp.pop %v1714
      %v1731 = vrcp.pop %v1717
      %v1732 = vrcp.pop %v1720
      %v1733 = vrcp.pop %v1723
      %v1734 = vrcp.pop %v1726
      %v1735 = vmul.f32 %v1688, %v1727
      %v1736 = vmul.f32 %v1690, %v1728
      %v1737 = vmul.f32 %v1692, %v1729
      %v1738 = vmul.f32 %v1694, %v1730
      %v1739 = vmul.f32 %v1696, %v1731
      %v1740 = vmul.f32 %v1698, %v1732
      %v1741 = vmul.f32 %v1700, %v1733
      %v1742 = vmul.f32 %v1702, %v1734
      %v1743 = vpack.c.bf16 %v1736, %v1735
      %v1744 = vpack.c.bf16 %v1738, %v1737
      %v1745 = vpack.c.bf16 %v1740, %v1739
      %v1746 = vpack.c.bf16 %v1742, %v1741
      %1747 = vrot.lane.b32.xlu0 %v1036, 48
      %v1748 = vpop.permute.xlu0 %1747
      %1749 = vrot.lane.b32.xlu0 %v1037, 48
      %v1750 = vpop.permute.xlu0 %1749
      %1751 = vrot.lane.b32.xlu0 %v1038, 48
      %v1752 = vpop.permute.xlu0 %1751
      %1753 = vrot.lane.b32.xlu0 %v1039, 48
      %v1754 = vpop.permute.xlu0 %1753
      %v1760 = vsel %vm1106, %v1743, 0
      %v1763 = vsel %vm1106, %v1744, 0
      %v1766 = vsel %vm1106, %v1745, 0
      %v1769 = vsel %vm1106, %v1746, 0
      %1771 = vmatpush.bf16.msra.mxu0 0
      %1772 = vmatpush.bf16.msra.mxu0 0
      %1773 = vmatpush.bf16.msra.mxu0 0
      %1774 = vmatpush.bf16.msra.mxu0 0
      %1775 = vmatpush.bf16.msra.mxu0 %v1754
      %1776 = vmatpush.bf16.msra.mxu0 %v1752
      %1777 = vmatpush.bf16.msra.mxu0 %v1750
      %1778 = vmatpush.bf16.msra.mxu0 %v1748
      %1779 = vmatmul.bf16.gmra.mxu0 %v1760
      %v1780 = vpop.f32.mrf.mxu0
      %v1781 = vadd.f32 0.0, %v1780
      %v1782 = vpop.f32.mrf.mxu0
      %v1783 = vadd.f32 0.0, %v1782
      %1784 = vmatmul.bf16.gmra.mxu0 %v1763
      %v1785 = vpop.f32.mrf.mxu0
      %v1786 = vadd.f32 0.0, %v1785
      %v1787 = vpop.f32.mrf.mxu0
      %v1788 = vadd.f32 0.0, %v1787
      %1789 = vmatmul.bf16.gmra.mxu0 %v1766
      %v1790 = vpop.f32.mrf.mxu0
      %v1791 = vadd.f32 0.0, %v1790
      %v1792 = vpop.f32.mrf.mxu0
      %v1793 = vadd.f32 0.0, %v1792
      %1794 = vmatmul.bf16.gmra.mxu0 %v1769
      %v1795 = vpop.f32.mrf.mxu0
      %v1796 = vadd.f32 0.0, %v1795
      %v1797 = vpop.f32.mrf.mxu0
      %v1798 = vadd.f32 0.0, %v1797
      %1799 = vdwg.mxu0
      %v1800 = vpack.c.bf16 %v1783, %v1781
      %v1801 = vpack.c.bf16 %v1788, %v1786
      %v1802 = vpack.c.bf16 %v1793, %v1791
      %v1803 = vpack.c.bf16 %v1798, %v1796
      %s1804 = sadd.s32 %s958, 2
      %s1805 = smul.addr %s1804, 4
      %s1806 = scalar_lea.vmem %s7, %s1805
      %v1807 = vld [vmem:[%s1806] sm:$0xf]
      %v1809 = vsel %vm1052, %v1800, 0
      %v1812 = vsel %vm1052, %v1801, 0
      %v1815 = vsel %vm1052, %v1802, 0
      %v1818 = vsel %vm1052, %v1803, 0
      %v1821 = vsel %vm1271, %v1807, 0
      %1823 = vmatpush.bf16.msra.mxu0 0
      %1824 = vmatpush.bf16.msra.mxu0 0
      %1825 = vmatpush.bf16.msra.mxu0 0
      %1826 = vmatpush.bf16.msra.mxu0 0
      %1827 = vmatpush.bf16.msra.mxu0 0
      %1828 = vmatpush.bf16.msra.mxu0 0
      %1829 = vmatpush.bf16.msra.mxu0 0
      %1830 = vmatpush.bf16.msra.mxu0 %v1821
      %1831 = vmatmul.bf16.gmra.mxu0 %v1809
      %v1832 = vpop.f32.mrf.mxu0
      %v1833 = vadd.f32 0.0, %v1832
      %v1834 = vpop.f32.mrf.mxu0
      %v1835 = vadd.f32 0.0, %v1834
      %1836 = vmatmul.bf16.gmra.mxu0 %v1812
      %v1837 = vpop.f32.mrf.mxu0
      %v1838 = vadd.f32 0.0, %v1837
      %v1839 = vpop.f32.mrf.mxu0
      %v1840 = vadd.f32 0.0, %v1839
      %1841 = vmatmul.bf16.gmra.mxu0 %v1815
      %v1842 = vpop.f32.mrf.mxu0
      %v1843 = vadd.f32 0.0, %v1842
      %v1844 = vpop.f32.mrf.mxu0
      %v1845 = vadd.f32 0.0, %v1844
      %1846 = vmatmul.bf16.gmra.mxu0 %v1818
      %v1847 = vpop.f32.mrf.mxu0
      %v1848 = vadd.f32 0.0, %v1847
      %v1849 = vpop.f32.mrf.mxu0
      %v1850 = vadd.f32 0.0, %v1849
      %1851 = vdwg.mxu0
      %v1852 = vadd.f32 %v1578, %v1833
      %v1853 = vadd.f32 %v1579, %v1835
      %v1854 = vadd.f32 %v1580, %v1838
      %v1855 = vadd.f32 %v1581, %v1840
      %v1856 = vadd.f32 %v1582, %v1843
      %v1857 = vadd.f32 %v1583, %v1845
      %v1858 = vadd.f32 %v1584, %v1848
      %v1859 = vadd.f32 %v1585, %v1850
      %1860 = vrot.lane.b32.xlu0 %v1036, 104
      %v1861 = vpop.permute.xlu0 %1860
      %1862 = vrot.lane.b32.xlu0 %v1037, 104
      %v1863 = vpop.permute.xlu0 %1862
      %1864 = vrot.lane.b32.xlu0 %v1038, 104
      %v1865 = vpop.permute.xlu0 %1864
      %1866 = vrot.lane.b32.xlu0 %v1039, 104
      %v1867 = vpop.permute.xlu0 %1866
      %1868 = vrot.lane.b32.xlu0 %v1036, 72
      %v1869 = vpop.permute.xlu0 %1868
      %1870 = vrot.lane.b32.xlu0 %v1037, 72
      %v1871 = vpop.permute.xlu0 %1870
      %1872 = vrot.lane.b32.xlu0 %v1038, 72
      %v1873 = vpop.permute.xlu0 %1872
      %1874 = vrot.lane.b32.xlu0 %v1039, 72
      %v1875 = vpop.permute.xlu0 %1874
      %v1877 = vsel %vm1052, %v1861, 0
      %v1880 = vsel %vm1052, %v1863, 0
      %v1883 = vsel %vm1052, %v1865, 0
      %v1886 = vsel %vm1052, %v1867, 0
      %v1889 = vsel %vm1052, %v1869, 0
      %v1892 = vsel %vm1052, %v1871, 0
      %v1895 = vsel %vm1052, %v1873, 0
      %v1898 = vsel %vm1052, %v1875, 0
      %1900 = vmatpush.bf16.xpose.msra.mxu0 0
      %1901 = vmatpush.bf16.xpose.msra.mxu0 0
      %1902 = vmatpush.bf16.xpose.msra.mxu0 0
      %1903 = vmatpush.bf16.xpose.msra.mxu0 0
      %1904 = vmatpush.bf16.xpose.msra.mxu0 %v1898
      %1905 = vmatpush.bf16.xpose.msra.mxu0 %v1895
      %1906 = vmatpush.bf16.xpose.msra.mxu0 %v1892
      %1907 = vmatpush.bf16.xpose.msra.mxu0 %v1889
      %1908 = vmatmul.bf16.gmra.mxu0 %v1877
      %v1909 = vpop.f32.mrf.mxu0
      %v1910 = vadd.f32 0.0, %v1909
      %v1911 = vpop.f32.mrf.mxu0
      %v1912 = vadd.f32 0.0, %v1911
      %1913 = vmatmul.bf16.gmra.mxu0 %v1880
      %v1914 = vpop.f32.mrf.mxu0
      %v1915 = vadd.f32 0.0, %v1914
      %v1916 = vpop.f32.mrf.mxu0
      %v1917 = vadd.f32 0.0, %v1916
      %1918 = vmatmul.bf16.gmra.mxu0 %v1883
      %v1919 = vpop.f32.mrf.mxu0
      %v1920 = vadd.f32 0.0, %v1919
      %v1921 = vpop.f32.mrf.mxu0
      %v1922 = vadd.f32 0.0, %v1921
      %1923 = vmatmul.bf16.gmra.mxu0 %v1886
      %v1924 = vpop.f32.mrf.mxu0
      %v1925 = vadd.f32 0.0, %v1924
      %v1926 = vpop.f32.mrf.mxu0
      %v1927 = vadd.f32 0.0, %v1926
      %1928 = vdwg.mxu0
      %v1929 = vsel %vm1106, %v1910, -inf
      %1930 = vmax.xlane.f32.xlu0 %v1929
      %v1931 = vpop.xlane.xlu0 %1930
      %v1932 = vsel %vm1106, %v1912, -inf
      %1933 = vmax.xlane.f32.xlu0 %v1932
      %v1934 = vpop.xlane.xlu0 %1933
      %v1935 = vsel %vm1106, %v1915, -inf
      %1936 = vmax.xlane.f32.xlu0 %v1935
      %v1937 = vpop.xlane.xlu0 %1936
      %v1938 = vsel %vm1106, %v1917, -inf
      %1939 = vmax.xlane.f32.xlu0 %v1938
      %v1940 = vpop.xlane.xlu0 %1939
      %v1941 = vsel %vm1106, %v1920, -inf
      %1942 = vmax.xlane.f32.xlu0 %v1941
      %v1943 = vpop.xlane.xlu0 %1942
      %v1944 = vsel %vm1106, %v1922, -inf
      %1945 = vmax.xlane.f32.xlu0 %v1944
      %v1946 = vpop.xlane.xlu0 %1945
      %v1947 = vsel %vm1106, %v1925, -inf
      %1948 = vmax.xlane.f32.xlu0 %v1947
      %v1949 = vpop.xlane.xlu0 %1948
      %v1950 = vsel %vm1106, %v1927, -inf
      %1951 = vmax.xlane.f32.xlu0 %v1950
      %v1952 = vpop.xlane.xlu0 %1951
      %v1953 = vsub.f32 %v1910, %v1931
      %v1954 = vsub.f32 %v1912, %v1934
      %v1955 = vsub.f32 %v1915, %v1937
      %v1956 = vsub.f32 %v1917, %v1940
      %v1957 = vsub.f32 %v1920, %v1943
      %v1958 = vsub.f32 %v1922, %v1946
      %v1959 = vsub.f32 %v1925, %v1949
      %v1960 = vsub.f32 %v1927, %v1952
      %v1961 = vmul.f32 %v1953, 1.442695
      %v1962 = vpow.pop %v1961
      %v1963 = vmul.f32 %v1954, 1.442695
      %v1964 = vpow.pop %v1963
      %v1965 = vmul.f32 %v1955, 1.442695
      %v1966 = vpow.pop %v1965
      %v1967 = vmul.f32 %v1956, 1.442695
      %v1968 = vpow.pop %v1967
      %v1969 = vmul.f32 %v1957, 1.442695
      %v1970 = vpow.pop %v1969
      %v1971 = vmul.f32 %v1958, 1.442695
      %v1972 = vpow.pop %v1971
      %v1973 = vmul.f32 %v1959, 1.442695
      %v1974 = vpow.pop %v1973
      %v1975 = vmul.f32 %v1960, 1.442695
      %v1976 = vpow.pop %v1975
      %v1977 = vsel %vm1106, %v1962, 0.0
      %1978 = vadd.xlane.f32.xlu0 %v1977
      %v1979 = vpop.xlane.xlu0 %1978
      %v1980 = vsel %vm1106, %v1964, 0.0
      %1981 = vadd.xlane.f32.xlu0 %v1980
      %v1982 = vpop.xlane.xlu0 %1981
      %v1983 = vsel %vm1106, %v1966, 0.0
      %1984 = vadd.xlane.f32.xlu0 %v1983
      %v1985 = vpop.xlane.xlu0 %1984
      %v1986 = vsel %vm1106, %v1968, 0.0
      %1987 = vadd.xlane.f32.xlu0 %v1986
      %v1988 = vpop.xlane.xlu0 %1987
      %v1989 = vsel %vm1106, %v1970, 0.0
      %1990 = vadd.xlane.f32.xlu0 %v1989
      %v1991 = vpop.xlane.xlu0 %1990
      %v1992 = vsel %vm1106, %v1972, 0.0
      %1993 = vadd.xlane.f32.xlu0 %v1992
      %v1994 = vpop.xlane.xlu0 %1993
      %v1995 = vsel %vm1106, %v1974, 0.0
      %1996 = vadd.xlane.f32.xlu0 %v1995
      %v1997 = vpop.xlane.xlu0 %1996
      %v1998 = vsel %vm1106, %v1976, 0.0
      %1999 = vadd.xlane.f32.xlu0 %v1998
      %v2000 = vpop.xlane.xlu0 %1999
      %v2001 = vrcp.pop %v1979
      %v2002 = vrcp.pop %v1982
      %v2003 = vrcp.pop %v1985
      %v2004 = vrcp.pop %v1988
      %v2005 = vrcp.pop %v1991
      %v2006 = vrcp.pop %v1994
      %v2007 = vrcp.pop %v1997
      %v2008 = vrcp.pop %v2000
      %v2009 = vmul.f32 %v1962, %v2001
      %v2010 = vmul.f32 %v1964, %v2002
      %v2011 = vmul.f32 %v1966, %v2003
      %v2012 = vmul.f32 %v1968, %v2004
      %v2013 = vmul.f32 %v1970, %v2005
      %v2014 = vmul.f32 %v1972, %v2006
      %v2015 = vmul.f32 %v1974, %v2007
      %v2016 = vmul.f32 %v1976, %v2008
      %v2017 = vpack.c.bf16 %v2010, %v2009
      %v2018 = vpack.c.bf16 %v2012, %v2011
      %v2019 = vpack.c.bf16 %v2014, %v2013
      %v2020 = vpack.c.bf16 %v2016, %v2015
      %2021 = vrot.lane.b32.xlu0 %v1036, 40
      %v2022 = vpop.permute.xlu0 %2021
      %2023 = vrot.lane.b32.xlu0 %v1037, 40
      %v2024 = vpop.permute.xlu0 %2023
      %2025 = vrot.lane.b32.xlu0 %v1038, 40
      %v2026 = vpop.permute.xlu0 %2025
      %2027 = vrot.lane.b32.xlu0 %v1039, 40
      %v2028 = vpop.permute.xlu0 %2027
      %v2034 = vsel %vm1106, %v2017, 0
      %v2037 = vsel %vm1106, %v2018, 0
      %v2040 = vsel %vm1106, %v2019, 0
      %v2043 = vsel %vm1106, %v2020, 0
      %2045 = vmatpush.bf16.msra.mxu0 0
      %2046 = vmatpush.bf16.msra.mxu0 0
      %2047 = vmatpush.bf16.msra.mxu0 0
      %2048 = vmatpush.bf16.msra.mxu0 0
      %2049 = vmatpush.bf16.msra.mxu0 %v2028
      %2050 = vmatpush.bf16.msra.mxu0 %v2026
      %2051 = vmatpush.bf16.msra.mxu0 %v2024
      %2052 = vmatpush.bf16.msra.mxu0 %v2022
      %2053 = vmatmul.bf16.gmra.mxu0 %v2034
      %v2054 = vpop.f32.mrf.mxu0
      %v2055 = vadd.f32 0.0, %v2054
      %v2056 = vpop.f32.mrf.mxu0
      %v2057 = vadd.f32 0.0, %v2056
      %2058 = vmatmul.bf16.gmra.mxu0 %v2037
      %v2059 = vpop.f32.mrf.mxu0
      %v2060 = vadd.f32 0.0, %v2059
      %v2061 = vpop.f32.mrf.mxu0
      %v2062 = vadd.f32 0.0, %v2061
      %2063 = vmatmul.bf16.gmra.mxu0 %v2040
      %v2064 = vpop.f32.mrf.mxu0
      %v2065 = vadd.f32 0.0, %v2064
      %v2066 = vpop.f32.mrf.mxu0
      %v2067 = vadd.f32 0.0, %v2066
      %2068 = vmatmul.bf16.gmra.mxu0 %v2043
      %v2069 = vpop.f32.mrf.mxu0
      %v2070 = vadd.f32 0.0, %v2069
      %v2071 = vpop.f32.mrf.mxu0
      %v2072 = vadd.f32 0.0, %v2071
      %2073 = vdwg.mxu0
      %v2074 = vpack.c.bf16 %v2057, %v2055
      %v2075 = vpack.c.bf16 %v2062, %v2060
      %v2076 = vpack.c.bf16 %v2067, %v2065
      %v2077 = vpack.c.bf16 %v2072, %v2070
      %s2078 = sadd.s32 %s958, 3
      %s2079 = smul.addr %s2078, 4
      %s2080 = scalar_lea.vmem %s7, %s2079
      %v2081 = vld [vmem:[%s2080] sm:$0xf]
      %v2083 = vsel %vm1052, %v2074, 0
      %v2086 = vsel %vm1052, %v2075, 0
      %v2089 = vsel %vm1052, %v2076, 0
      %v2092 = vsel %vm1052, %v2077, 0
      %v2095 = vsel %vm1271, %v2081, 0
      %2097 = vmatpush.bf16.msra.mxu0 0
      %2098 = vmatpush.bf16.msra.mxu0 0
      %2099 = vmatpush.bf16.msra.mxu0 0
      %2100 = vmatpush.bf16.msra.mxu0 0
      %2101 = vmatpush.bf16.msra.mxu0 0
      %2102 = vmatpush.bf16.msra.mxu0 0
      %2103 = vmatpush.bf16.msra.mxu0 0
      %2104 = vmatpush.bf16.msra.mxu0 %v2095
      %2105 = vmatmul.bf16.gmra.mxu0 %v2083
      %v2106 = vpop.f32.mrf.mxu0
      %v2107 = vadd.f32 0.0, %v2106
      %v2108 = vpop.f32.mrf.mxu0
      %v2109 = vadd.f32 0.0, %v2108
      %2110 = vmatmul.bf16.gmra.mxu0 %v2086
      %v2111 = vpop.f32.mrf.mxu0
      %v2112 = vadd.f32 0.0, %v2111
      %v2113 = vpop.f32.mrf.mxu0
      %v2114 = vadd.f32 0.0, %v2113
      %2115 = vmatmul.bf16.gmra.mxu0 %v2089
      %v2116 = vpop.f32.mrf.mxu0
      %v2117 = vadd.f32 0.0, %v2116
      %v2118 = vpop.f32.mrf.mxu0
      %v2119 = vadd.f32 0.0, %v2118
      %2120 = vmatmul.bf16.gmra.mxu0 %v2092
      %v2121 = vpop.f32.mrf.mxu0
      %v2122 = vadd.f32 0.0, %v2121
      %v2123 = vpop.f32.mrf.mxu0
      %v2124 = vadd.f32 0.0, %v2123
      %2125 = vdwg.mxu0
      %v2126 = vadd.f32 %v1852, %v2107
      %v2127 = vadd.f32 %v1853, %v2109
      %v2128 = vadd.f32 %v1854, %v2112
      %v2129 = vadd.f32 %v1855, %v2114
      %v2130 = vadd.f32 %v1856, %v2117
      %v2131 = vadd.f32 %v1857, %v2119
      %v2132 = vadd.f32 %v1858, %v2122
      %v2133 = vadd.f32 %v1859, %v2124
      %s2134 = scalar_lea.vmem %s9, %s35
      %v2135 = vld [vmem:[%s2134] sm:$0x1]
      %s2136 = scalar_lea.vmem %s10, %s35
      %v2137 = vld [vmem:[%s2136] sm:$0x1]
      %v2138 = vsel %vm748, %v2126, 0.0
      %2139 = vadd.xlane.f32.xlu0 %v2138
      %v2140 = vpop.xlane.xlu0 %2139
      %v2141 = vsel %vm748, %v2127, 0.0
      %2142 = vadd.xlane.f32.xlu0 %v2141
      %v2143 = vpop.xlane.xlu0 %2142
      %v2144 = vsel %vm748, %v2128, 0.0
      %2145 = vadd.xlane.f32.xlu0 %v2144
      %v2146 = vpop.xlane.xlu0 %2145
      %v2147 = vsel %vm748, %v2129, 0.0
      %2148 = vadd.xlane.f32.xlu0 %v2147
      %v2149 = vpop.xlane.xlu0 %2148
      %v2150 = vsel %vm748, %v2130, 0.0
      %2151 = vadd.xlane.f32.xlu0 %v2150
      %v2152 = vpop.xlane.xlu0 %2151
      %v2153 = vsel %vm748, %v2131, 0.0
      %2154 = vadd.xlane.f32.xlu0 %v2153
      %v2155 = vpop.xlane.xlu0 %2154
      %v2156 = vsel %vm748, %v2132, 0.0
      %2157 = vadd.xlane.f32.xlu0 %v2156
      %v2158 = vpop.xlane.xlu0 %2157
      %v2159 = vsel %vm748, %v2133, 0.0
      %2160 = vadd.xlane.f32.xlu0 %v2159
      %v2161 = vpop.xlane.xlu0 %2160
      %v2162 = vmul.f32 %v2140, %v779
      %v2163 = vmul.f32 %v2143, %v779
      %v2164 = vmul.f32 %v2146, %v779
      %v2165 = vmul.f32 %v2149, %v779
      %v2166 = vmul.f32 %v2152, %v779
      %v2167 = vmul.f32 %v2155, %v779
      %v2168 = vmul.f32 %v2158, %v779
      %v2169 = vmul.f32 %v2161, %v779
      %v2170 = vsub.f32 %v2126, %v2162
      %v2171 = vsub.f32 %v2127, %v2163
      %v2172 = vsub.f32 %v2128, %v2164
      %v2173 = vsub.f32 %v2129, %v2165
      %v2174 = vsub.f32 %v2130, %v2166
      %v2175 = vsub.f32 %v2131, %v2167
      %v2176 = vsub.f32 %v2132, %v2168
      %v2177 = vsub.f32 %v2133, %v2169
      %v2178 = vmul.f32 %v2170, %v2170
      %v2179 = vmul.f32 %v2171, %v2171
      %v2180 = vmul.f32 %v2172, %v2172
      %v2181 = vmul.f32 %v2173, %v2173
      %v2182 = vmul.f32 %v2174, %v2174
      %v2183 = vmul.f32 %v2175, %v2175
      %v2184 = vmul.f32 %v2176, %v2176
      %v2185 = vmul.f32 %v2177, %v2177
      %v2186 = vsel %vm748, %v2178, 0.0
      %2187 = vadd.xlane.f32.xlu0 %v2186
      %v2188 = vpop.xlane.xlu0 %2187
      %v2189 = vsel %vm748, %v2179, 0.0
      %2190 = vadd.xlane.f32.xlu0 %v2189
      %v2191 = vpop.xlane.xlu0 %2190
      %v2192 = vsel %vm748, %v2180, 0.0
      %2193 = vadd.xlane.f32.xlu0 %v2192
      %v2194 = vpop.xlane.xlu0 %2193
      %v2195 = vsel %vm748, %v2181, 0.0
      %2196 = vadd.xlane.f32.xlu0 %v2195
      %v2197 = vpop.xlane.xlu0 %2196
      %v2198 = vsel %vm748, %v2182, 0.0
      %2199 = vadd.xlane.f32.xlu0 %v2198
      %v2200 = vpop.xlane.xlu0 %2199
      %v2201 = vsel %vm748, %v2183, 0.0
      %2202 = vadd.xlane.f32.xlu0 %v2201
      %v2203 = vpop.xlane.xlu0 %2202
      %v2204 = vsel %vm748, %v2184, 0.0
      %2205 = vadd.xlane.f32.xlu0 %v2204
      %v2206 = vpop.xlane.xlu0 %2205
      %v2207 = vsel %vm748, %v2185, 0.0
      %2208 = vadd.xlane.f32.xlu0 %v2207
      %v2209 = vpop.xlane.xlu0 %2208
      %v2210 = vmul.f32 %v2188, %v779
      %v2211 = vmul.f32 %v2191, %v779
      %v2212 = vmul.f32 %v2194, %v779
      %v2213 = vmul.f32 %v2197, %v779
      %v2214 = vmul.f32 %v2200, %v779
      %v2215 = vmul.f32 %v2203, %v779
      %v2216 = vmul.f32 %v2206, %v779
      %v2217 = vmul.f32 %v2209, %v779
      %v2218 = vadd.f32 %v2210, 1e-06
      %v2219 = vadd.f32 %v2211, 1e-06
      %v2220 = vadd.f32 %v2212, 1e-06
      %v2221 = vadd.f32 %v2213, 1e-06
      %v2222 = vadd.f32 %v2214, 1e-06
      %v2223 = vadd.f32 %v2215, 1e-06
      %v2224 = vadd.f32 %v2216, 1e-06
      %v2225 = vadd.f32 %v2217, 1e-06
      %v2226 = vrsqrt.pop %v2218
      %v2227 = vmul.f32 %v2226, %v2218
      %v2228 = vmul.f32 %v2227, %v2226
      %v2229 = vmul.f32 0.5, %v2228
      %v2230 = vsub.f32 1.5, %v2229
      %v2231 = vmul.f32 %v2226, %v2230
      %vm2232 = vweird.f32 %v2218
      %vm2233 = vweird.f32 %v2226
      %vm2234 = vmor %vm2232, %vm2233
      %v2235 = vsel %vm2234, %v2226, %v2231
      %v2236 = vrsqrt.pop %v2219
      %v2237 = vmul.f32 %v2236, %v2219
      %v2238 = vmul.f32 %v2237, %v2236
      %v2239 = vmul.f32 0.5, %v2238
      %v2240 = vsub.f32 1.5, %v2239
      %v2241 = vmul.f32 %v2236, %v2240
      %vm2242 = vweird.f32 %v2219
      %vm2243 = vweird.f32 %v2236
      %vm2244 = vmor %vm2242, %vm2243
      %v2245 = vsel %vm2244, %v2236, %v2241
      %v2246 = vrsqrt.pop %v2220
      %v2247 = vmul.f32 %v2246, %v2220
      %v2248 = vmul.f32 %v2247, %v2246
      %v2249 = vmul.f32 0.5, %v2248
      %v2250 = vsub.f32 1.5, %v2249
      %v2251 = vmul.f32 %v2246, %v2250
      %vm2252 = vweird.f32 %v2220
      %vm2253 = vweird.f32 %v2246
      %vm2254 = vmor %vm2252, %vm2253
      %v2255 = vsel %vm2254, %v2246, %v2251
      %v2256 = vrsqrt.pop %v2221
      %v2257 = vmul.f32 %v2256, %v2221
      %v2258 = vmul.f32 %v2257, %v2256
      %v2259 = vmul.f32 0.5, %v2258
      %v2260 = vsub.f32 1.5, %v2259
      %v2261 = vmul.f32 %v2256, %v2260
      %vm2262 = vweird.f32 %v2221
      %vm2263 = vweird.f32 %v2256
      %vm2264 = vmor %vm2262, %vm2263
      %v2265 = vsel %vm2264, %v2256, %v2261
      %v2266 = vrsqrt.pop %v2222
      %v2267 = vmul.f32 %v2266, %v2222
      %v2268 = vmul.f32 %v2267, %v2266
      %v2269 = vmul.f32 0.5, %v2268
      %v2270 = vsub.f32 1.5, %v2269
      %v2271 = vmul.f32 %v2266, %v2270
      %vm2272 = vweird.f32 %v2222
      %vm2273 = vweird.f32 %v2266
      %vm2274 = vmor %vm2272, %vm2273
      %v2275 = vsel %vm2274, %v2266, %v2271
      %v2276 = vrsqrt.pop %v2223
      %v2277 = vmul.f32 %v2276, %v2223
      %v2278 = vmul.f32 %v2277, %v2276
      %v2279 = vmul.f32 0.5, %v2278
      %v2280 = vsub.f32 1.5, %v2279
      %v2281 = vmul.f32 %v2276, %v2280
      %vm2282 = vweird.f32 %v2223
      %vm2283 = vweird.f32 %v2276
      %vm2284 = vmor %vm2282, %vm2283
      %v2285 = vsel %vm2284, %v2276, %v2281
      %v2286 = vrsqrt.pop %v2224
      %v2287 = vmul.f32 %v2286, %v2224
      %v2288 = vmul.f32 %v2287, %v2286
      %v2289 = vmul.f32 0.5, %v2288
      %v2290 = vsub.f32 1.5, %v2289
      %v2291 = vmul.f32 %v2286, %v2290
      %vm2292 = vweird.f32 %v2224
      %vm2293 = vweird.f32 %v2286
      %vm2294 = vmor %vm2292, %vm2293
      %v2295 = vsel %vm2294, %v2286, %v2291
      %v2296 = vrsqrt.pop %v2225
      %v2297 = vmul.f32 %v2296, %v2225
      %v2298 = vmul.f32 %v2297, %v2296
      %v2299 = vmul.f32 0.5, %v2298
      %v2300 = vsub.f32 1.5, %v2299
      %v2301 = vmul.f32 %v2296, %v2300
      %vm2302 = vweird.f32 %v2225
      %vm2303 = vweird.f32 %v2296
      %vm2304 = vmor %vm2302, %vm2303
      %v2305 = vsel %vm2304, %v2296, %v2301
      %v2306 = vmul.f32 %v2170, %v2235
      %v2307 = vmul.f32 %v2171, %v2245
      %v2308 = vmul.f32 %v2172, %v2255
      %v2309 = vmul.f32 %v2173, %v2265
      %v2310 = vmul.f32 %v2174, %v2275
      %v2311 = vmul.f32 %v2175, %v2285
      %v2312 = vmul.f32 %v2176, %v2295
      %v2313 = vmul.f32 %v2177, %v2305
      %v2315 = vperm.slane %v2135, 0
      %v2317 = vmul.f32 %v2306, %v2315
      %v2318 = vmul.f32 %v2307, %v2315
      %v2319 = vmul.f32 %v2308, %v2315
      %v2320 = vmul.f32 %v2309, %v2315
      %v2321 = vmul.f32 %v2310, %v2315
      %v2322 = vmul.f32 %v2311, %v2315
      %v2323 = vmul.f32 %v2312, %v2315
      %v2324 = vmul.f32 %v2313, %v2315
      %v2326 = vperm.slane %v2137, 0
      %v2328 = vadd.f32 %v2317, %v2326
      %v2329 = vadd.f32 %v2318, %v2326
      %v2330 = vadd.f32 %v2319, %v2326
      %v2331 = vadd.f32 %v2320, %v2326
      %v2332 = vadd.f32 %v2321, %v2326
      %v2333 = vadd.f32 %v2322, %v2326
      %v2334 = vadd.f32 %v2323, %v2326
      %v2335 = vadd.f32 %v2324, %v2326
      %v2336 = vpack.c.bf16 %v2329, %v2328
      %v2337 = vpack.c.bf16 %v2331, %v2330
      %v2338 = vpack.c.bf16 %v2333, %v2332
      %v2339 = vpack.c.bf16 %v2335, %v2334
      %s2340 = smul.addr %s958, 4
      %s2341 = scalar_lea.vmem %s11, %s2340
      %v2342 = vld [vmem:[%s2341] sm:$0xf]
      %v2343 = vld [vmem:[%s2341 + $0x4] sm:$0xf]
      %v2344 = vld [vmem:[%s2341 + $0x8] sm:$0xf]
      %v2345 = vld [vmem:[%s2341 + $0xc] sm:$0xf]
      %s2346 = scalar_lea.vmem %s12, %s35
      %v2347 = vld [vmem:[%s2346] sm:$0x1]
      %v2349 = vperm.slane %v2347, 0
      %v2355 = vunpack.c.l.b16 %v2342
      %v2356 = vunpack.c.l.b16 %v2343
      %v2357 = vunpack.c.l.b16 %v2344
      %v2358 = vunpack.c.l.b16 %v2345
      %v2359 = vpack.c.b16 %v2356, %v2355
      %v2360 = vpack.c.b16 %v2358, %v2357
      %v2364 = vsel %vm748, %v2336, 0
      %v2367 = vsel %vm748, %v2337, 0
      %v2370 = vsel %vm748, %v2338, 0
      %v2373 = vsel %vm748, %v2339, 0
      %2375 = vmatpush.bf16.msra.mxu0 0
      %2376 = vmatpush.bf16.msra.mxu0 0
      %2377 = vmatpush.bf16.msra.mxu0 0
      %2378 = vmatpush.bf16.msra.mxu0 0
      %2379 = vmatpush.bf16.msra.mxu0 0
      %2380 = vmatpush.bf16.msra.mxu0 0
      %2381 = vmatpush.bf16.msra.mxu0 %v2360
      %2382 = vmatpush.bf16.msra.mxu0 %v2359
      %2383 = vmatmul.bf16.gmra.mxu0 %v2364
      %v2384 = vpop.f32.mrf.mxu0
      %v2385 = vadd.f32 %v2349, %v2384
      %v2386 = vpop.f32.mrf.mxu0
      %v2387 = vadd.f32 %v2349, %v2386
      %2388 = vmatmul.bf16.gmra.mxu0 %v2367
      %v2389 = vpop.f32.mrf.mxu0
      %v2390 = vadd.f32 %v2349, %v2389
      %v2391 = vpop.f32.mrf.mxu0
      %v2392 = vadd.f32 %v2349, %v2391
      %2393 = vmatmul.bf16.gmra.mxu0 %v2370
      %v2394 = vpop.f32.mrf.mxu0
      %v2395 = vadd.f32 %v2349, %v2394
      %v2396 = vpop.f32.mrf.mxu0
      %v2397 = vadd.f32 %v2349, %v2396
      %2398 = vmatmul.bf16.gmra.mxu0 %v2373
      %v2399 = vpop.f32.mrf.mxu0
      %v2400 = vadd.f32 %v2349, %v2399
      %v2401 = vpop.f32.mrf.mxu0
      %v2402 = vadd.f32 %v2349, %v2401
      %2403 = vdwg.mxu0
      %v2404 = vmul.f32 %v2385, 0.5
      %v2405 = vmul.f32 %v2387, 0.5
      %v2406 = vmul.f32 %v2390, 0.5
      %v2407 = vmul.f32 %v2392, 0.5
      %v2408 = vmul.f32 %v2395, 0.5
      %v2409 = vmul.f32 %v2397, 0.5
      %v2410 = vmul.f32 %v2400, 0.5
      %v2411 = vmul.f32 %v2402, 0.5
      %v2412 = vmul.f32 %v2385, 0.044715
      %v2413 = vmul.f32 %v2387, 0.044715
      %v2414 = vmul.f32 %v2390, 0.044715
      %v2415 = vmul.f32 %v2392, 0.044715
      %v2416 = vmul.f32 %v2395, 0.044715
      %v2417 = vmul.f32 %v2397, 0.044715
      %v2418 = vmul.f32 %v2400, 0.044715
      %v2419 = vmul.f32 %v2402, 0.044715
      %v2420 = vmul.f32 %v2412, %v2385
      %v2421 = vmul.f32 %v2413, %v2387
      %v2422 = vmul.f32 %v2414, %v2390
      %v2423 = vmul.f32 %v2415, %v2392
      %v2424 = vmul.f32 %v2416, %v2395
      %v2425 = vmul.f32 %v2417, %v2397
      %v2426 = vmul.f32 %v2418, %v2400
      %v2427 = vmul.f32 %v2419, %v2402
      %v2428 = vmul.f32 %v2420, %v2385
      %v2429 = vmul.f32 %v2421, %v2387
      %v2430 = vmul.f32 %v2422, %v2390
      %v2431 = vmul.f32 %v2423, %v2392
      %v2432 = vmul.f32 %v2424, %v2395
      %v2433 = vmul.f32 %v2425, %v2397
      %v2434 = vmul.f32 %v2426, %v2400
      %v2435 = vmul.f32 %v2427, %v2402
      %v2436 = vadd.f32 %v2385, %v2428
      %v2437 = vadd.f32 %v2387, %v2429
      %v2438 = vadd.f32 %v2390, %v2430
      %v2439 = vadd.f32 %v2392, %v2431
      %v2440 = vadd.f32 %v2395, %v2432
      %v2441 = vadd.f32 %v2397, %v2433
      %v2442 = vadd.f32 %v2400, %v2434
      %v2443 = vadd.f32 %v2402, %v2435
      %v2444 = vmul.f32 %v2436, 0.7978846
      %v2445 = vmul.f32 %v2437, 0.7978846
      %v2446 = vmul.f32 %v2438, 0.7978846
      %v2447 = vmul.f32 %v2439, 0.7978846
      %v2448 = vmul.f32 %v2440, 0.7978846
      %v2449 = vmul.f32 %v2441, 0.7978846
      %v2450 = vmul.f32 %v2442, 0.7978846
      %v2451 = vmul.f32 %v2443, 0.7978846
      %v2452 = vtanh.pop %v2444
      %v2453 = vtanh.pop %v2445
      %v2454 = vtanh.pop %v2446
      %v2455 = vtanh.pop %v2447
      %v2456 = vtanh.pop %v2448
      %v2457 = vtanh.pop %v2449
      %v2458 = vtanh.pop %v2450
      %v2459 = vtanh.pop %v2451
      %v2460 = vadd.f32 %v2452, 1.0
      %v2461 = vadd.f32 %v2453, 1.0
      %v2462 = vadd.f32 %v2454, 1.0
      %v2463 = vadd.f32 %v2455, 1.0
      %v2464 = vadd.f32 %v2456, 1.0
      %v2465 = vadd.f32 %v2457, 1.0
      %v2466 = vadd.f32 %v2458, 1.0
      %v2467 = vadd.f32 %v2459, 1.0
      %v2468 = vmul.f32 %v2404, %v2460
      %v2469 = vmul.f32 %v2405, %v2461
      %v2470 = vmul.f32 %v2406, %v2462
      %v2471 = vmul.f32 %v2407, %v2463
      %v2472 = vmul.f32 %v2408, %v2464
      %v2473 = vmul.f32 %v2409, %v2465
      %v2474 = vmul.f32 %v2410, %v2466
      %v2475 = vmul.f32 %v2411, %v2467
      %v2476 = vpack.c.bf16 %v2469, %v2468
      %v2477 = vpack.c.bf16 %v2471, %v2470
      %v2478 = vpack.c.bf16 %v2473, %v2472
      %v2479 = vpack.c.bf16 %v2475, %v2474
      %s2480 = smul.u32 %s35, 8
      %s2481 = smul.addr %s2480, 4
      %s2482 = scalar_lea.vmem %s13, %s2481
      %v2483 = vld [vmem:[%s2482] sm:$0xf]
      %v2484 = vld [vmem:[%s2482 + $0x4] sm:$0xf]
      %v2485 = vld [vmem:[%s2482 + $0x8] sm:$0xf]
      %v2486 = vld [vmem:[%s2482 + $0xc] sm:$0xf]
      %v2487 = vld [vmem:[%s2482 + $0x10] sm:$0xf]
      %v2488 = vld [vmem:[%s2482 + $0x14] sm:$0xf]
      %v2489 = vld [vmem:[%s2482 + $0x18] sm:$0xf]
      %v2490 = vld [vmem:[%s2482 + $0x1c] sm:$0xf]
      %s2491 = scalar_lea.vmem %s14, %s35
      %v2492 = vld [vmem:[%s2491] sm:$0x1]
      %v2494 = vperm.slane %v2492, 0
      %v2504 = vunpack.c.l.b16 %v2483
      %v2505 = vunpack.c.l.b16 %v2484
      %v2506 = vunpack.c.l.b16 %v2485
      %v2507 = vunpack.c.l.b16 %v2486
      %v2508 = vunpack.c.l.b16 %v2487
      %v2509 = vunpack.c.l.b16 %v2488
      %v2510 = vunpack.c.l.b16 %v2489
      %v2511 = vunpack.c.l.b16 %v2490
      %v2512 = vpack.c.b16 %v2505, %v2504
      %v2513 = vpack.c.b16 %v2507, %v2506
      %v2514 = vpack.c.b16 %v2509, %v2508
      %v2515 = vpack.c.b16 %v2511, %v2510
      %v2521 = vsel %vm1106, %v2476, 0
      %v2524 = vsel %vm1106, %v2477, 0
      %v2527 = vsel %vm1106, %v2478, 0
      %v2530 = vsel %vm1106, %v2479, 0
      %2532 = vmatpush.bf16.msra.mxu0 0
      %2533 = vmatpush.bf16.msra.mxu0 0
      %2534 = vmatpush.bf16.msra.mxu0 0
      %2535 = vmatpush.bf16.msra.mxu0 0
      %2536 = vmatpush.bf16.msra.mxu0 %v2515
      %2537 = vmatpush.bf16.msra.mxu0 %v2514
      %2538 = vmatpush.bf16.msra.mxu0 %v2513
      %2539 = vmatpush.bf16.msra.mxu0 %v2512
      %2540 = vmatmul.bf16.gmra.mxu0 %v2521
      %v2541 = vpop.f32.mrf.mxu0
      %v2542 = vadd.f32 %v2494, %v2541
      %v2543 = vpop.f32.mrf.mxu0
      %v2544 = vadd.f32 %v2494, %v2543
      %2545 = vmatmul.bf16.gmra.mxu0 %v2524
      %v2546 = vpop.f32.mrf.mxu0
      %v2547 = vadd.f32 %v2494, %v2546
      %v2548 = vpop.f32.mrf.mxu0
      %v2549 = vadd.f32 %v2494, %v2548
      %2550 = vmatmul.bf16.gmra.mxu0 %v2527
      %v2551 = vpop.f32.mrf.mxu0
      %v2552 = vadd.f32 %v2494, %v2551
      %v2553 = vpop.f32.mrf.mxu0
      %v2554 = vadd.f32 %v2494, %v2553
      %2555 = vmatmul.bf16.gmra.mxu0 %v2530
      %v2556 = vpop.f32.mrf.mxu0
      %v2557 = vadd.f32 %v2494, %v2556
      %v2558 = vpop.f32.mrf.mxu0
      %v2559 = vadd.f32 %v2494, %v2558
      %2560 = vdwg.mxu0
      %v2561 = vadd.f32 %v2126, %v2542
      %v2562 = vadd.f32 %v2127, %v2544
      %v2563 = vadd.f32 %v2128, %v2547
      %v2564 = vadd.f32 %v2129, %v2549
      %v2565 = vadd.f32 %v2130, %v2552
      %v2566 = vadd.f32 %v2131, %v2554
      %v2567 = vadd.f32 %v2132, %v2557
      %v2568 = vadd.f32 %v2133, %v2559
      %2569 = vst.msk [vmem:[#allocation2] sm:$0xff] %vm748, %v2561
      %2570 = vst.msk [vmem:[#allocation2 + $0x8] sm:$0xff] %vm748, %v2562
      %2571 = vst.msk [vmem:[#allocation2 + $0x10] sm:$0xff] %vm748, %v2563
      %2572 = vst.msk [vmem:[#allocation2 + $0x18] sm:$0xff] %vm748, %v2564
      %2573 = vst.msk [vmem:[#allocation2 + $0x20] sm:$0xff] %vm748, %v2565
      %2574 = vst.msk [vmem:[#allocation2 + $0x28] sm:$0xff] %vm748, %v2566
      %2575 = vst.msk [vmem:[#allocation2 + $0x30] sm:$0xff] %vm748, %v2567
      %2576 = vst.msk [vmem:[#allocation2 + $0x38] sm:$0xff] %vm748, %v2568
      %p2577 = scmp.ge.s32.totalorder %s35, 7
      %p2578 = scmp.lt.s32.totalorder %s35, 11
      %p2579 = pnand %p2577, %p2578
      %p2580 = pneg %p2579
      // Predicated region
      $region101: #{_lambda_.2} parent=95 // pred_check
        _
      $region102: #{_lambda_.2} parent=95 // pred_check_branch
        %2582 = sbr.rel (%p2579) target = $region104
      $region103: #{_lambda_.2} parent=95 // pred_region
        %s2583 = ssub.s32 %s35, 7
        %v2584 = vpack.c.bf16 %v2562, %v2561
        %v2585 = vpack.c.bf16 %v2564, %v2563
        %v2586 = vpack.c.bf16 %v2566, %v2565
        %v2587 = vpack.c.bf16 %v2568, %v2567
        %s2588 = smul.u32 %s2583, 4
        %s2589 = smul.addr %s2588, 4
        %s2590 = scalar_lea.vmem %s17, %s2589
        %v2591 = vld [vmem:[%s2590] sm:$0xf]
        %v2592 = vld [vmem:[%s2590 + $0x4] sm:$0xf]
        %v2593 = vld [vmem:[%s2590 + $0x8] sm:$0xf]
        %v2594 = vld [vmem:[%s2590 + $0xc] sm:$0xf]
        %s2595 = scalar_lea.vmem %s18, %s2583
        %v2596 = vld [vmem:[%s2595] sm:$0x1]
        %v2598 = vperm.slane %v2596, 0
        %v2604 = vunpack.c.l.b16 %v2591
        %v2605 = vunpack.c.l.b16 %v2592
        %v2606 = vunpack.c.l.b16 %v2593
        %v2607 = vunpack.c.l.b16 %v2594
        %v2608 = vpack.c.b16 %v2605, %v2604
        %v2609 = vpack.c.b16 %v2607, %v2606
        %v2613 = vsel %vm748, %v2584, 0
        %v2616 = vsel %vm748, %v2585, 0
        %v2619 = vsel %vm748, %v2586, 0
        %v2622 = vsel %vm748, %v2587, 0
        %2624 = vmatpush.bf16.msra.mxu0 0
        %2625 = vmatpush.bf16.msra.mxu0 0
        %2626 = vmatpush.bf16.msra.mxu0 0
        %2627 = vmatpush.bf16.msra.mxu0 0
        %2628 = vmatpush.bf16.msra.mxu0 0
        %2629 = vmatpush.bf16.msra.mxu0 0
        %2630 = vmatpush.bf16.msra.mxu0 %v2609
        %2631 = vmatpush.bf16.msra.mxu0 %v2608
        %2632 = vmatmul.bf16.gmra.mxu0 %v2613
        %v2633 = vpop.f32.mrf.mxu0
        %v2634 = vadd.f32 %v2598, %v2633
        %v2635 = vpop.f32.mrf.mxu0
        %v2636 = vadd.f32 %v2598, %v2635
        %2637 = vmatmul.bf16.gmra.mxu0 %v2616
        %v2638 = vpop.f32.mrf.mxu0
        %v2639 = vadd.f32 %v2598, %v2638
        %v2640 = vpop.f32.mrf.mxu0
        %v2641 = vadd.f32 %v2598, %v2640
        %2642 = vmatmul.bf16.gmra.mxu0 %v2619
        %v2643 = vpop.f32.mrf.mxu0
        %v2644 = vadd.f32 %v2598, %v2643
        %v2645 = vpop.f32.mrf.mxu0
        %v2646 = vadd.f32 %v2598, %v2645
        %2647 = vmatmul.bf16.gmra.mxu0 %v2622
        %v2648 = vpop.f32.mrf.mxu0
        %v2649 = vadd.f32 %v2598, %v2648
        %v2650 = vpop.f32.mrf.mxu0
        %v2651 = vadd.f32 %v2598, %v2650
        %2652 = vdwg.mxu0
        %vm2653 = vcmask 130048
        %2654 = vst.msk [vmem:[%s636] sm:$0xff] %vm2653, %v2634
        %2655 = vst.msk [vmem:[%s636 + $0x8] sm:$0xff] %vm2653, %v2636
        %2656 = vst.msk [vmem:[%s636 + $0x10] sm:$0xff] %vm2653, %v2639
        %2657 = vst.msk [vmem:[%s636 + $0x18] sm:$0xff] %vm2653, %v2641
        %2658 = vst.msk [vmem:[%s636 + $0x20] sm:$0xff] %vm2653, %v2644
        %2659 = vst.msk [vmem:[%s636 + $0x28] sm:$0xff] %vm2653, %v2646
        %2660 = vst.msk [vmem:[%s636 + $0x30] sm:$0xff] %vm2653, %v2649
        %2661 = vst.msk [vmem:[%s636 + $0x38] sm:$0xff] %vm2653, %v2651
      $region104: #{_lambda_.2} parent=95 // pred_fallthru
        _
      %p2662 = scmp.eq.s32.totalorder %s35, 11
      // Predicated region
      $region105: #{_lambda_.2} parent=95 // pred_check
        %p2663 = pneg %p2662
      $region106: #{_lambda_.2} parent=95 // pred_check_branch
        %2665 = sbr.rel (%p2663) target = $region108
      $region107: #{_lambda_.2} parent=95 // pred_region
        %v2666 = vld [vmem:[%s15] sm:$0x1]
        %v2667 = vld [vmem:[%s16] sm:$0x1]
        %v2668 = vsel %vm748, %v2561, 0.0
        %2669 = vadd.xlane.f32.xlu0 %v2668
        %v2670 = vpop.xlane.xlu0 %2669
        %v2671 = vsel %vm748, %v2562, 0.0
        %2672 = vadd.xlane.f32.xlu0 %v2671
        %v2673 = vpop.xlane.xlu0 %2672
        %v2674 = vsel %vm748, %v2563, 0.0
        %2675 = vadd.xlane.f32.xlu0 %v2674
        %v2676 = vpop.xlane.xlu0 %2675
        %v2677 = vsel %vm748, %v2564, 0.0
        %2678 = vadd.xlane.f32.xlu0 %v2677
        %v2679 = vpop.xlane.xlu0 %2678
        %v2680 = vsel %vm748, %v2565, 0.0
        %2681 = vadd.xlane.f32.xlu0 %v2680
        %v2682 = vpop.xlane.xlu0 %2681
        %v2683 = vsel %vm748, %v2566, 0.0
        %2684 = vadd.xlane.f32.xlu0 %v2683
        %v2685 = vpop.xlane.xlu0 %2684
        %v2686 = vsel %vm748, %v2567, 0.0
        %2687 = vadd.xlane.f32.xlu0 %v2686
        %v2688 = vpop.xlane.xlu0 %2687
        %v2689 = vsel %vm748, %v2568, 0.0
        %2690 = vadd.xlane.f32.xlu0 %v2689
        %v2691 = vpop.xlane.xlu0 %2690
        %v2692 = vmul.f32 %v2670, %v779
        %v2693 = vmul.f32 %v2673, %v779
        %v2694 = vmul.f32 %v2676, %v779
        %v2695 = vmul.f32 %v2679, %v779
        %v2696 = vmul.f32 %v2682, %v779
        %v2697 = vmul.f32 %v2685, %v779
        %v2698 = vmul.f32 %v2688, %v779
        %v2699 = vmul.f32 %v2691, %v779
        %v2700 = vsub.f32 %v2561, %v2692
        %v2701 = vsub.f32 %v2562, %v2693
        %v2702 = vsub.f32 %v2563, %v2694
        %v2703 = vsub.f32 %v2564, %v2695
        %v2704 = vsub.f32 %v2565, %v2696
        %v2705 = vsub.f32 %v2566, %v2697
        %v2706 = vsub.f32 %v2567, %v2698
        %v2707 = vsub.f32 %v2568, %v2699
        %v2708 = vmul.f32 %v2700, %v2700
        %v2709 = vmul.f32 %v2701, %v2701
        %v2710 = vmul.f32 %v2702, %v2702
        %v2711 = vmul.f32 %v2703, %v2703
        %v2712 = vmul.f32 %v2704, %v2704
        %v2713 = vmul.f32 %v2705, %v2705
        %v2714 = vmul.f32 %v2706, %v2706
        %v2715 = vmul.f32 %v2707, %v2707
        %v2716 = vsel %vm748, %v2708, 0.0
        %2717 = vadd.xlane.f32.xlu0 %v2716
        %v2718 = vpop.xlane.xlu0 %2717
        %v2719 = vsel %vm748, %v2709, 0.0
        %2720 = vadd.xlane.f32.xlu0 %v2719
        %v2721 = vpop.xlane.xlu0 %2720
        %v2722 = vsel %vm748, %v2710, 0.0
        %2723 = vadd.xlane.f32.xlu0 %v2722
        %v2724 = vpop.xlane.xlu0 %2723
        %v2725 = vsel %vm748, %v2711, 0.0
        %2726 = vadd.xlane.f32.xlu0 %v2725
        %v2727 = vpop.xlane.xlu0 %2726
        %v2728 = vsel %vm748, %v2712, 0.0
        %2729 = vadd.xlane.f32.xlu0 %v2728
        %v2730 = vpop.xlane.xlu0 %2729
        %v2731 = vsel %vm748, %v2713, 0.0
        %2732 = vadd.xlane.f32.xlu0 %v2731
        %v2733 = vpop.xlane.xlu0 %2732
        %v2734 = vsel %vm748, %v2714, 0.0
        %2735 = vadd.xlane.f32.xlu0 %v2734
        %v2736 = vpop.xlane.xlu0 %2735
        %v2737 = vsel %vm748, %v2715, 0.0
        %2738 = vadd.xlane.f32.xlu0 %v2737
        %v2739 = vpop.xlane.xlu0 %2738
        %v2740 = vmul.f32 %v2718, %v779
        %v2741 = vmul.f32 %v2721, %v779
        %v2742 = vmul.f32 %v2724, %v779
        %v2743 = vmul.f32 %v2727, %v779
        %v2744 = vmul.f32 %v2730, %v779
        %v2745 = vmul.f32 %v2733, %v779
        %v2746 = vmul.f32 %v2736, %v779
        %v2747 = vmul.f32 %v2739, %v779
        %v2748 = vadd.f32 %v2740, 1e-06
        %v2749 = vadd.f32 %v2741, 1e-06
        %v2750 = vadd.f32 %v2742, 1e-06
        %v2751 = vadd.f32 %v2743, 1e-06
        %v2752 = vadd.f32 %v2744, 1e-06
        %v2753 = vadd.f32 %v2745, 1e-06
        %v2754 = vadd.f32 %v2746, 1e-06
        %v2755 = vadd.f32 %v2747, 1e-06
        %v2756 = vrsqrt.pop %v2748
        %v2757 = vmul.f32 %v2756, %v2748
        %v2758 = vmul.f32 %v2757, %v2756
        %v2759 = vmul.f32 0.5, %v2758
        %v2760 = vsub.f32 1.5, %v2759
        %v2761 = vmul.f32 %v2756, %v2760
        %vm2762 = vweird.f32 %v2748
        %vm2763 = vweird.f32 %v2756
        %vm2764 = vmor %vm2762, %vm2763
        %v2765 = vsel %vm2764, %v2756, %v2761
        %v2766 = vrsqrt.pop %v2749
        %v2767 = vmul.f32 %v2766, %v2749
        %v2768 = vmul.f32 %v2767, %v2766
        %v2769 = vmul.f32 0.5, %v2768
        %v2770 = vsub.f32 1.5, %v2769
        %v2771 = vmul.f32 %v2766, %v2770
        %vm2772 = vweird.f32 %v2749
        %vm2773 = vweird.f32 %v2766
        %vm2774 = vmor %vm2772, %vm2773
        %v2775 = vsel %vm2774, %v2766, %v2771
        %v2776 = vrsqrt.pop %v2750
        %v2777 = vmul.f32 %v2776, %v2750
        %v2778 = vmul.f32 %v2777, %v2776
        %v2779 = vmul.f32 0.5, %v2778
        %v2780 = vsub.f32 1.5, %v2779
        %v2781 = vmul.f32 %v2776, %v2780
        %vm2782 = vweird.f32 %v2750
        %vm2783 = vweird.f32 %v2776
        %vm2784 = vmor %vm2782, %vm2783
        %v2785 = vsel %vm2784, %v2776, %v2781
        %v2786 = vrsqrt.pop %v2751
        %v2787 = vmul.f32 %v2786, %v2751
        %v2788 = vmul.f32 %v2787, %v2786
        %v2789 = vmul.f32 0.5, %v2788
        %v2790 = vsub.f32 1.5, %v2789
        %v2791 = vmul.f32 %v2786, %v2790
        %vm2792 = vweird.f32 %v2751
        %vm2793 = vweird.f32 %v2786
        %vm2794 = vmor %vm2792, %vm2793
        %v2795 = vsel %vm2794, %v2786, %v2791
        %v2796 = vrsqrt.pop %v2752
        %v2797 = vmul.f32 %v2796, %v2752
        %v2798 = vmul.f32 %v2797, %v2796
        %v2799 = vmul.f32 0.5, %v2798
        %v2800 = vsub.f32 1.5, %v2799
        %v2801 = vmul.f32 %v2796, %v2800
        %vm2802 = vweird.f32 %v2752
        %vm2803 = vweird.f32 %v2796
        %vm2804 = vmor %vm2802, %vm2803
        %v2805 = vsel %vm2804, %v2796, %v2801
        %v2806 = vrsqrt.pop %v2753
        %v2807 = vmul.f32 %v2806, %v2753
        %v2808 = vmul.f32 %v2807, %v2806
        %v2809 = vmul.f32 0.5, %v2808
        %v2810 = vsub.f32 1.5, %v2809
        %v2811 = vmul.f32 %v2806, %v2810
        %vm2812 = vweird.f32 %v2753
        %vm2813 = vweird.f32 %v2806
        %vm2814 = vmor %vm2812, %vm2813
        %v2815 = vsel %vm2814, %v2806, %v2811
        %v2816 = vrsqrt.pop %v2754
        %v2817 = vmul.f32 %v2816, %v2754
        %v2818 = vmul.f32 %v2817, %v2816
        %v2819 = vmul.f32 0.5, %v2818
        %v2820 = vsub.f32 1.5, %v2819
        %v2821 = vmul.f32 %v2816, %v2820
        %vm2822 = vweird.f32 %v2754
        %vm2823 = vweird.f32 %v2816
        %vm2824 = vmor %vm2822, %vm2823
        %v2825 = vsel %vm2824, %v2816, %v2821
        %v2826 = vrsqrt.pop %v2755
        %v2827 = vmul.f32 %v2826, %v2755
        %v2828 = vmul.f32 %v2827, %v2826
        %v2829 = vmul.f32 0.5, %v2828
        %v2830 = vsub.f32 1.5, %v2829
        %v2831 = vmul.f32 %v2826, %v2830
        %vm2832 = vweird.f32 %v2755
        %vm2833 = vweird.f32 %v2826
        %vm2834 = vmor %vm2832, %vm2833
        %v2835 = vsel %vm2834, %v2826, %v2831
        %v2836 = vmul.f32 %v2700, %v2765
        %v2837 = vmul.f32 %v2701, %v2775
        %v2838 = vmul.f32 %v2702, %v2785
        %v2839 = vmul.f32 %v2703, %v2795
        %v2840 = vmul.f32 %v2704, %v2805
        %v2841 = vmul.f32 %v2705, %v2815
        %v2842 = vmul.f32 %v2706, %v2825
        %v2843 = vmul.f32 %v2707, %v2835
        %v2845 = vperm.slane %v2666, 0
        %v2847 = vmul.f32 %v2836, %v2845
        %v2848 = vmul.f32 %v2837, %v2845
        %v2849 = vmul.f32 %v2838, %v2845
        %v2850 = vmul.f32 %v2839, %v2845
        %v2851 = vmul.f32 %v2840, %v2845
        %v2852 = vmul.f32 %v2841, %v2845
        %v2853 = vmul.f32 %v2842, %v2845
        %v2854 = vmul.f32 %v2843, %v2845
        %v2856 = vperm.slane %v2667, 0
        %v2858 = vadd.f32 %v2847, %v2856
        %v2859 = vadd.f32 %v2848, %v2856
        %v2860 = vadd.f32 %v2849, %v2856
        %v2861 = vadd.f32 %v2850, %v2856
        %v2862 = vadd.f32 %v2851, %v2856
        %v2863 = vadd.f32 %v2852, %v2856
        %v2864 = vadd.f32 %v2853, %v2856
        %v2865 = vadd.f32 %v2854, %v2856
        %v2866 = vpack.c.bf16 %v2859, %v2858
        %v2867 = vpack.c.bf16 %v2861, %v2860
        %v2868 = vpack.c.bf16 %v2863, %v2862
        %v2869 = vpack.c.bf16 %v2865, %v2864
        %s2870 = scalar_lea.vmem %s17, 64
        %v2871 = vld [vmem:[%s2870] sm:$0xf]
        %v2872 = vld [vmem:[%s2870 + $0x4] sm:$0xf]
        %v2873 = vld [vmem:[%s2870 + $0x8] sm:$0xf]
        %v2874 = vld [vmem:[%s2870 + $0xc] sm:$0xf]
        %s2875 = scalar_lea.vmem %s18, 4
        %v2876 = vld [vmem:[%s2875] sm:$0x1]
        %v2878 = vperm.slane %v2876, 0
        %v2884 = vunpack.c.l.b16 %v2871
        %v2885 = vunpack.c.l.b16 %v2872
        %v2886 = vunpack.c.l.b16 %v2873
        %v2887 = vunpack.c.l.b16 %v2874
        %v2888 = vpack.c.b16 %v2885, %v2884
        %v2889 = vpack.c.b16 %v2887, %v2886
        %v2893 = vsel %vm748, %v2866, 0
        %v2896 = vsel %vm748, %v2867, 0
        %v2899 = vsel %vm748, %v2868, 0
        %v2902 = vsel %vm748, %v2869, 0
        %2904 = vmatpush.bf16.msra.mxu0 0
        %2905 = vmatpush.bf16.msra.mxu0 0
        %2906 = vmatpush.bf16.msra.mxu0 0
        %2907 = vmatpush.bf16.msra.mxu0 0
        %2908 = vmatpush.bf16.msra.mxu0 0
        %2909 = vmatpush.bf16.msra.mxu0 0
        %2910 = vmatpush.bf16.msra.mxu0 %v2889
        %2911 = vmatpush.bf16.msra.mxu0 %v2888
        %2912 = vmatmul.bf16.gmra.mxu0 %v2893
        %v2913 = vpop.f32.mrf.mxu0
        %v2914 = vadd.f32 %v2878, %v2913
        %v2915 = vpop.f32.mrf.mxu0
        %v2916 = vadd.f32 %v2878, %v2915
        %2917 = vmatmul.bf16.gmra.mxu0 %v2896
        %v2918 = vpop.f32.mrf.mxu0
        %v2919 = vadd.f32 %v2878, %v2918
        %v2920 = vpop.f32.mrf.mxu0
        %v2921 = vadd.f32 %v2878, %v2920
        %2922 = vmatmul.bf16.gmra.mxu0 %v2899
        %v2923 = vpop.f32.mrf.mxu0
        %v2924 = vadd.f32 %v2878, %v2923
        %v2925 = vpop.f32.mrf.mxu0
        %v2926 = vadd.f32 %v2878, %v2925
        %2927 = vmatmul.bf16.gmra.mxu0 %v2902
        %v2928 = vpop.f32.mrf.mxu0
        %v2929 = vadd.f32 %v2878, %v2928
        %v2930 = vpop.f32.mrf.mxu0
        %v2931 = vadd.f32 %v2878, %v2930
        %2932 = vdwg.mxu0
        %vm2933 = vcmask 130048
        %2934 = vst.msk [vmem:[%s636] sm:$0xff] %vm2933, %v2914
        %2935 = vst.msk [vmem:[%s636 + $0x8] sm:$0xff] %vm2933, %v2916
        %2936 = vst.msk [vmem:[%s636 + $0x10] sm:$0xff] %vm2933, %v2919
        %2937 = vst.msk [vmem:[%s636 + $0x18] sm:$0xff] %vm2933, %v2921
        %2938 = vst.msk [vmem:[%s636 + $0x20] sm:$0xff] %vm2933, %v2924
        %2939 = vst.msk [vmem:[%s636 + $0x28] sm:$0xff] %vm2933, %v2926
        %2940 = vst.msk [vmem:[%s636 + $0x30] sm:$0xff] %vm2933, %v2929
        %2941 = vst.msk [vmem:[%s636 + $0x38] sm:$0xff] %vm2933, %v2931
      $region108: #{_lambda_.2} parent=95 // pred_fallthru
        _
      %s2942 = ssub.s32 %s35, 7
      %p2943 = scmp.gt.s32.totalorder %s2942, 0
      %s2944 = scalar_select %p2943, %s2942, 0
      %p2945 = scmp.lt.s32.totalorder %s2944, 4
      %s2946 = scalar_select %p2945, %s2944, 4
      %p2947 = scmp.lt.s32.totalorder %s34, 1
      %s2948 = scalar_select %p2947, %s34, 1
      %s2949 = smul.addr %s2948, 8
      %s2950 = smul.addr %s2946, 16
      %s2951 = sadd.s32 %s2949, %s2950
      %s2952 = smul.addr %s2951, 8
      %s2953 = scalar_lea.vmem %s19, %s2952
      // Predicated region
      $region109: #{_lambda_.2} parent=95 // pred_check
        %p2954 = pneg %p472
      $region110: #{_lambda_.2} parent=95 // pred_check_branch
        %2956 = sbr.rel (%p2954) target = $region112
      $region111: #{_lambda_.2} parent=95 // pred_region
        %s2957 = ssub.s32 %s35, 7
        %p2958 = scmp.gt.s32.totalorder %s2957, 0
        %s2959 = scalar_select %p2958, %s2957, 0
      $region112: #{_lambda_.2} parent=95 // pred_fallthru
        _
    $region96: #{_lambda_.2} parent=5 // pred_fallthru
      _
    %p2960 = scmp.le.s32.totalorder 2, %s25
    // Predicated region
    $region113: #{_lambda_.2} parent=5 // pred_check
      %p2961 = pneg %p2960
    $region114: #{_lambda_.2} parent=5 // pred_check_branch
      %2963 = sbr.rel (%p2961) target = $region116
    $region115: #{_lambda_.2} parent=5 // pred_region
      %s2964 = ssub.s32 %s25, 2
      // Predicated region
      $region117: #{_lambda_.2} parent=115 // pred_check
        %p2965 = pneg %p478
      $region118: #{_lambda_.2} parent=115 // pred_check_branch
        %2967 = sbr.rel (%p2965) target = $region120
      $region119: #{_lambda_.2} parent=115 // pred_region
        %s2968 = ssub.s32 %s37, 7
        %p2969 = scmp.gt.s32.totalorder %s2968, 0
        %s2970 = scalar_select %p2969, %s2968, 0
        %p2971 = scmp.lt.s32.totalorder %s2970, 4
        %s2972 = scalar_select %p2971, %s2970, 4
        %p2973 = scmp.lt.s32.totalorder %s36, 1
        %s2974 = scalar_select %p2973, %s36, 1
        %s2975 = smul.addr %s2974, 8
        %s2976 = smul.addr %s2972, 16
        %s2977 = sadd.s32 %s2975, %s2976
        %s2978 = smul.addr %s2977, 8
        %s2979 = scalar_lea.vmem %s19, %s2978
      $region120: #{_lambda_.2} parent=115 // pred_fallthru
        _
    $region116: #{_lambda_.2} parent=5 // pred_fallthru
      _
  $region6: #{_lambda_.2} parent=0 // loop_footer
    %s29 = sadd.s32 1, %s25
  $region7: #{_lambda_.2} parent=0 // loop_footer_branch
    %24 = sbr.rel target = $region3
  $region8: #{_lambda_.2} parent=0 // loop_exit
    _

</llo_original>
